<compile_context>
chip_gen: v5e
topology: v5e:2x2
jax: 0.10.0
libtpu: 0.0.40
codegen_flags: <defaults>
</compile_context>

<pallas_src>
import functools

import jax
import jax.numpy as jnp
from jax import lax
from jax.experimental import pallas as pl
from jax.experimental.pallas import tpu as pltpu


def _mlp_kernel(x_ref, w1_ref, b1_ref, w2_ref, b2_ref, o_ref):
    # x: [TB, D_in], w1: [H, D_in], b1: [1, H], w2: [D_out_p, H], b2: [1, D_out_p]
    x = x_ref[...]
    # First matmul: contract x dim 1 with W1 dim 1 (no transpose materialized).
    h = lax.dot_general(
        x.astype(w1_ref.dtype), w1_ref[...],
        dimension_numbers=(((1,), (1,)), ((), ())),
        preferred_element_type=jnp.float32)
    # Bias + ReLU in f32 on the VPU.
    h = jnp.maximum(h + b1_ref[...].astype(jnp.float32), 0.0)
    # Second matmul: contract h dim 1 with W2 dim 1.
    y = lax.dot_general(
        h.astype(w2_ref.dtype), w2_ref[...],
        dimension_numbers=(((1,), (1,)), ((), ())),
        preferred_element_type=jnp.float32)
    o_ref[...] = (y + b2_ref[...].astype(jnp.float32)).astype(o_ref.dtype)


@functools.partial(jax.jit, static_argnames=("block_b",))
def eva_classifier_forward(x, w1, b1, w2, b2, *, block_b=128):
    """x: [B, D_in]; w1: [H, D_in]; b1: [H]; w2: [D_out, H]; b2: [D_out].

    For v7x, pick block_b <= B/2 so the grid has >= 2 parallel steps (one per TC).
    """
    B, d_in = x.shape
    h_dim = w1.shape[0]
    d_out = w2.shape[0]

    # Lane-dense output: pad D_out up to a multiple of 128 with zero rows/entries.
    d_out_p = max(128, ((d_out + 127) // 128) * 128)
    if d_out_p != d_out:
        w2 = jnp.pad(w2, ((0, d_out_p - d_out), (0, 0)))
        b2 = jnp.pad(b2, ((0, d_out_p - d_out),))

    b1r = b1.reshape(1, h_dim)
    b2r = b2.reshape(1, d_out_p)

    # Sublane-aligned batch tile; Pallas masks the edge tile if B % block_b != 0.
    block_b = max(8, min(block_b, B))
    block_b = ((block_b + 7) // 8) * 8

    grid = (pl.cdiv(B, block_b),)

    # Weights / biases have a constant index_map -> single-buffer them in VMEM.
    resident = dict(pipeline_mode=pl.Buffered(buffer_count=1))

    out = pl.pallas_call(
        _mlp_kernel,
        out_shape=jax.ShapeDtypeStruct((B, d_out_p), x.dtype),
        grid_spec=pltpu.PrefetchScalarGridSpec(
            num_scalar_prefetch=0,
            grid=grid,
            in_specs=[
                pl.BlockSpec((block_b, d_in), lambda i: (i, 0)),          # x (streamed)
                pl.BlockSpec((h_dim, d_in), lambda i: (0, 0), **resident),   # W1
                pl.BlockSpec((1, h_dim), lambda i: (0, 0), **resident),      # b1
                pl.BlockSpec((d_out_p, h_dim), lambda i: (0, 0), **resident),  # W2 (padded)
                pl.BlockSpec((1, d_out_p), lambda i: (0, 0), **resident),      # b2 (padded)
            ],
            out_specs=pl.BlockSpec((block_b, d_out_p), lambda i: (i, 0)),
        ),
        compiler_params=pltpu.CompilerParams(
            dimension_semantics=("parallel",),         # batch axis -> both TCs on v7x
            vmem_limit_bytes=32 * 1024 * 1024,         # explicit budget, safe on 64 MiB v7x
        ),
    )(x, w1, b1r, w2, b2r)

    return out[:, :d_out]


def init_params(key, input_size, nn_size, output_size):
    """Deterministic init mimicking torch.nn.Linear defaults (uniform +-1/sqrt(fan_in))."""
    k1, k2, k3, k4 = jax.random.split(key, 4)
    bound1 = 1.0 / (input_size ** 0.5)
    bound2 = 1.0 / (nn_size ** 0.5)
    w1 = jax.random.uniform(k1, (nn_size, input_size), jnp.float32, -bound1, bound1)
    b1 = jax.random.uniform(k2, (nn_size,), jnp.float32, -bound1, bound1)
    w2 = jax.random.uniform(k3, (output_size, nn_size), jnp.float32, -bound2, bound2)
    b2 = jax.random.uniform(k4, (output_size,), jnp.float32, -bound2, bound2)
    return w1, b1, w2, b2


if __name__ == "__main__":
    # Module defaults: 1024 -> 512 -> 2.  Batch 256 with block_b=128 gives a
    # 2-step parallel grid (keeps both v7x TensorCores busy) with wide MXU tiles.
    input_size, nn_size, output_size = 1024, 512, 2
    batch = 256

    key = jax.random.PRNGKey(0)
    kx, kp = jax.random.split(key)
    x = jax.random.normal(kx, (batch, input_size), jnp.float32)
    w1, b1, w2, b2 = init_params(kp, input_size, nn_size, output_size)

    # f32-weight path (tight numerical check).
    out = eva_classifier_forward(x, w1, b1, w2, b2, block_b=128)
    out = jax.block_until_ready(out)
    ref = jnp.maximum(x @ w1.T + b1, 0.0) @ w2.T + b2
    assert out.shape == (batch, output_size)
    assert jnp.allclose(out, ref, atol=1e-4, rtol=1e-4), "f32 mismatch vs JAX reference"

    # bf16-weight path (halved weight HBM/VMEM traffic, full-rate MXU on v6e/v7x).
    w1b = w1.astype(jnp.bfloat16)
    w2b = w2.astype(jnp.bfloat16)
    out_bf16 = eva_classifier_forward(x, w1b, b1, w2b, b2, block_b=128)
    out_bf16 = jax.block_until_ready(out_bf16)
    ref_bf16 = (jnp.maximum(x @ w1b.astype(jnp.float32).T + b1, 0.0)
                @ w2b.astype(jnp.float32).T + b2)
    assert out_bf16.shape == (batch, output_size)
    assert jnp.allclose(out_bf16, ref_bf16, atol=2e-2, rtol=2e-2), "bf16 mismatch vs reference"

    print("KERNEL_OK")
</pallas_src>

<mosaic_0001>
module attributes {stable_mosaic.version = 11 : i64} {
  func.func @_mlp_kernel(%arg0: i32, %arg1: memref<128x1024xf32, #tpu.memory_space<vmem>>, %arg2: memref<512x1024xf32, #tpu.memory_space<vmem>>, %arg3: memref<1x512xf32, #tpu.memory_space<vmem>>, %arg4: memref<128x512xf32, #tpu.memory_space<vmem>>, %arg5: memref<1x128xf32, #tpu.memory_space<vmem>>, %arg6: memref<128x128xf32, #tpu.memory_space<vmem>>) attributes {dimension_semantics = [#tpu.dimension_semantics<parallel>], iteration_bounds = array<i64: 2>, scalar_prefetch = 0 : i64, scratch_operands = 0 : i64, tpu.core_type = #tpu.core_type<tc>, window_params = [{transform_indices = @transform_0, window_bounds = array<i64: 128, 1024>}, {pipeline_mode = #tpu.pipeline_mode<synchronous>, transform_indices = @transform_1, window_bounds = array<i64: 512, 1024>}, {pipeline_mode = #tpu.pipeline_mode<synchronous>, transform_indices = @transform_2, window_bounds = array<i64: 1, 512>}, {pipeline_mode = #tpu.pipeline_mode<synchronous>, transform_indices = @transform_3, window_bounds = array<i64: 128, 512>}, {pipeline_mode = #tpu.pipeline_mode<synchronous>, transform_indices = @transform_4, window_bounds = array<i64: 1, 128>}, {transform_indices = @transform_5, window_bounds = array<i64: 128, 128>}]} {
    %c0 = arith.constant 0 : index
    %c0_0 = arith.constant 0 : index
    %0 = vector.load %arg1[%c0, %c0_0] : memref<128x1024xf32, #tpu.memory_space<vmem>>, vector<128x1024xf32>
    %c0_1 = arith.constant 0 : index
    %c0_2 = arith.constant 0 : index
    %1 = vector.load %arg2[%c0_1, %c0_2] : memref<512x1024xf32, #tpu.memory_space<vmem>>, vector<512x1024xf32>
    %cst = arith.constant dense<0.000000e+00> : vector<128x512xf32>
    %2 = tpu.matmul %0, %1, %cst {dimension_numbers = #tpu.dot_dimension_numbers<[1], [1], [0], [0], [0, 0, 1, 0], [], []>} : vector<128x1024xf32>, vector<512x1024xf32>, vector<128x512xf32> -> vector<128x512xf32>
    %c0_3 = arith.constant 0 : index
    %c0_4 = arith.constant 0 : index
    %3 = vector.load %arg3[%c0_3, %c0_4] : memref<1x512xf32, #tpu.memory_space<vmem>>, vector<1x512xf32>
    %4 = vector.broadcast %3 : vector<1x512xf32> to vector<128x512xf32>
    %5 = arith.addf %2, %4 : vector<128x512xf32>
    %cst_5 = arith.constant 0.000000e+00 : f32
    %6 = vector.broadcast %cst_5 : f32 to vector<128x512xf32>
    %7 = arith.maximumf %5, %6 : vector<128x512xf32>
    %c0_6 = arith.constant 0 : index
    %c0_7 = arith.constant 0 : index
    %8 = vector.load %arg4[%c0_6, %c0_7] : memref<128x512xf32, #tpu.memory_space<vmem>>, vector<128x512xf32>
    %cst_8 = arith.constant dense<0.000000e+00> : vector<128x128xf32>
    %9 = tpu.matmul %7, %8, %cst_8 {dimension_numbers = #tpu.dot_dimension_numbers<[1], [1], [0], [0], [0, 0, 1, 0], [], []>} : vector<128x512xf32>, vector<128x512xf32>, vector<128x128xf32> -> vector<128x128xf32>
    %c0_9 = arith.constant 0 : index
    %c0_10 = arith.constant 0 : index
    %10 = vector.load %arg5[%c0_9, %c0_10] : memref<1x128xf32, #tpu.memory_space<vmem>>, vector<1x128xf32>
    %11 = vector.broadcast %10 : vector<1x128xf32> to vector<128x128xf32>
    %12 = arith.addf %9, %11 : vector<128x128xf32>
    %c0_11 = arith.constant 0 : index
    %c0_12 = arith.constant 0 : index
    %13 = vector.load %arg6[%c0_11, %c0_12] : memref<128x128xf32, #tpu.memory_space<vmem>>, vector<128x128xf32>
    tpu.vector_store %arg6[%c0_11, %c0_12], %12 {strides = array<i32>} : memref<128x128xf32, #tpu.memory_space<vmem>>, vector<128x128xf32>,
    return
  }
  func.func @transform_0(%arg0: i32) -> (i32, i32) {
    %c0_i32 = arith.constant 0 : i32
    %c0_i32_0 = arith.constant 0 : i32
    return %arg0, %c0_i32 : i32, i32
  }
  func.func @transform_1(%arg0: i32) -> (i32, i32) {
    %c0_i32 = arith.constant 0 : i32
    %c0_i32_0 = arith.constant 0 : i32
    %c0_i32_1 = arith.constant 0 : i32
    return %c0_i32, %c0_i32_0 : i32, i32
  }
  func.func @transform_2(%arg0: i32) -> (i32, i32) {
    %c0_i32 = arith.constant 0 : i32
    %c0_i32_0 = arith.constant 0 : i32
    %c0_i32_1 = arith.constant 0 : i32
    return %c0_i32, %c0_i32_0 : i32, i32
  }
  func.func @transform_3(%arg0: i32) -> (i32, i32) {
    %c0_i32 = arith.constant 0 : i32
    %c0_i32_0 = arith.constant 0 : i32
    %c0_i32_1 = arith.constant 0 : i32
    return %c0_i32, %c0_i32_0 : i32, i32
  }
  func.func @transform_4(%arg0: i32) -> (i32, i32) {
    %c0_i32 = arith.constant 0 : i32
    %c0_i32_0 = arith.constant 0 : i32
    %c0_i32_1 = arith.constant 0 : i32
    return %c0_i32, %c0_i32_0 : i32, i32
  }
  func.func @transform_5(%arg0: i32) -> (i32, i32) {
    %c0_i32 = arith.constant 0 : i32
    %c0_i32_0 = arith.constant 0 : i32
    return %arg0, %c0_i32 : i32, i32
  }
}

</mosaic_0001>

<llo_original>
// kernel: eva_classifier_forward.1
$region0: #{eva_classifier_forward.1}
  #allocation0 [shape = 'u32[]', space=smem, size = 0x4, offset = 0x4, fixed_abs, tag = 'smem constant byte address 0x4 - core index']
  #allocation1 [shape = 'u32[72,128]{1,0:T(1,128)}', space=vmem, size = 0x9000, scoped, tag = 'internal scratch']
  %s0 = inlined_call_operand.hbm [shape: f32[256,1024], index: 0, kind: input, shape index: {}]
  %s1 = inlined_call_operand.hbm [shape: f32[512,1024], index: 1, kind: input, shape index: {}]
  %s2 = inlined_call_operand.hbm [shape: f32[1,512], index: 2, kind: input, shape index: {}]
  %s3 = inlined_call_operand.vmem [shape: f32[128,512], index: 3, kind: input, shape index: {}]
  %s4 = inlined_call_operand.vmem [shape: f32[1,128], index: 4, kind: input, shape index: {}]
  %s5 = inlined_call_operand.vmem [shape: f32[256,128], index: 5, kind: output, shape index: {}]
  %s6 = sld [smem:[#allocation0]]
  $region65: #{eva_classifier_forward.1} parent=0
    _
  %s8 = ssub.s32 1, %s6
  %s9 = scalar_select 0, %s8, %s6
  $region1: #{eva_classifier_forward.1} parent=0
    #allocation2 [shape = 'u8[1048576]{0}', space=vmem, size = 0x100000, scoped, tag = 'input window, operand 0']
    #allocation3 [shape = 's32[2]{0}', space=sflag, size = 0x8, scoped, tag = 'scoped memory for eva_classifier_forward.1']
    #allocation4 [shape = 'u8[2097152]{0}', space=vmem, size = 0x200000, scoped, tag = 'input window, operand 1, single buffered']
    #allocation5 [shape = 's32[1]{0}', space=sflag, size = 0x4, scoped, tag = 'scoped memory for eva_classifier_forward.1']
    #allocation6 [shape = 'u8[2048]{0}', space=vmem, size = 0x800, scoped, tag = 'input window, operand 2, single buffered']
    %10 = vsyncpa [#allocation3], 0
    %s11 = scalar_lea.sflag [#allocation3], 1
    %12 = vsyncpa %s11, 0
    %13 = vsyncpa [#allocation5], 0
    loop: start=0, step=1, limit=4
    $region2: #{eva_classifier_forward.1} parent=1 // loop_pre_header
      _
    $region3: #{eva_classifier_forward.1} parent=1 // loop_header
      %s15 = sphi 0, %s19
      %p16 = scmp.ge.s32.totalorder %s15, 4
      %s25 = sphi 0, %s27
      %s28 = sphi 0, %s25
      %s29 = sphi 0, %s28
      %s45 = sphi 0, %s29
      %s49 = sphi 0, %s49
      %s51 = sphi 0, %s49
      %s52 = sphi 0, %s51
      %s66 = sphi 0, %s52
      %s70 = sphi 0, %s70
      %s72 = sphi 0, %s70
      %s73 = sphi 0, %s72
      %s87 = sphi 0, %s73
      %s91 = sphi 0, %s91
      %s93 = sphi 0, %s91
      %s94 = sphi 0, %s93
      %s108 = sphi 0, %s94
      %s112 = sphi 0, %s112
      %s114 = sphi 0, %s112
      %s115 = sphi 0, %s114
      %s129 = sphi 0, %s115
      %s135 = sphi 0, %s137
      %s138 = sphi 0, %s135
      %s139 = sphi 0, %s138
      %s155 = sphi 0, %s139
    $region4: #{eva_classifier_forward.1} parent=1 // loop_header_branch
      %18 = sbr.rel (%p16) target = $region8
    $region5: #{eva_classifier_forward.1} parent=1 // loop_body
      %s20 = ssub.s32 %s15, 1
      %s21 = ssub.s32 %s15, 2
      %s22 = sadd.s32 %s15, 1
      %s23 = ssub.s32 %s15, %s22
      %p24 = scmp.eq.s32.totalorder %s23, 0
      %s26 = sadd.s32 %s25, 1
      %s27 = scalar_select %p24, %s25, %s26
      %p30 = pneg %p24
      %p31 = scmp.eq.s32.totalorder %s15, 1
      %p32 = por %p30, %p31
      %p33 = scmp.ne.s32.totalorder %s25, %s28
      %p34 = scmp.eq.s32.totalorder %s15, 0
      %p35 = por %p33, %p34
      %p36 = scmp.ne.s32.totalorder %s25, %s28
      %p37 = scmp.eq.s32.totalorder %s20, 1
      %p38 = por %p36, %p37
      %p39 = scmp.ne.s32.totalorder %s28, %s29
      %p40 = scmp.eq.s32.totalorder %s20, 0
      %p41 = por %p39, %p40
      %p42 = scmp.ne.s32.totalorder %s28, %s29
      %p43 = scmp.eq.s32.totalorder %s21, 1
      %p44 = por %p42, %p43
      %p46 = scmp.ne.s32.totalorder %s29, %s45
      %p47 = scmp.eq.s32.totalorder %s21, 0
      %p48 = por %p46, %p47
      %s50 = sadd.s32 %s49, 1
      %p53 = scmp.eq.s32.totalorder %s15, 1
      %p54 = scmp.ne.s32.totalorder %s49, %s51
      %p55 = scmp.eq.s32.totalorder %s15, 0
      %p56 = por %p54, %p55
      %p57 = scmp.ne.s32.totalorder %s49, %s51
      %p58 = scmp.eq.s32.totalorder %s20, 1
      %p59 = por %p57, %p58
      %p60 = scmp.ne.s32.totalorder %s51, %s52
      %p61 = scmp.eq.s32.totalorder %s20, 0
      %p62 = por %p60, %p61
      %p63 = scmp.ne.s32.totalorder %s51, %s52
      %p64 = scmp.eq.s32.totalorder %s21, 1
      %p65 = por %p63, %p64
      %p67 = scmp.ne.s32.totalorder %s52, %s66
      %p68 = scmp.eq.s32.totalorder %s21, 0
      %p69 = por %p67, %p68
      %s71 = sadd.s32 %s70, 1
      %p74 = scmp.eq.s32.totalorder %s15, 1
      %p75 = scmp.ne.s32.totalorder %s70, %s72
      %p76 = scmp.eq.s32.totalorder %s15, 0
      %p77 = por %p75, %p76
      %p78 = scmp.ne.s32.totalorder %s70, %s72
      %p79 = scmp.eq.s32.totalorder %s20, 1
      %p80 = por %p78, %p79
      %p81 = scmp.ne.s32.totalorder %s72, %s73
      %p82 = scmp.eq.s32.totalorder %s20, 0
      %p83 = por %p81, %p82
      %p84 = scmp.ne.s32.totalorder %s72, %s73
      %p85 = scmp.eq.s32.totalorder %s21, 1
      %p86 = por %p84, %p85
      %p88 = scmp.ne.s32.totalorder %s73, %s87
      %p89 = scmp.eq.s32.totalorder %s21, 0
      %p90 = por %p88, %p89
      %s92 = sadd.s32 %s91, 1
      %p95 = scmp.eq.s32.totalorder %s15, 1
      %p96 = scmp.ne.s32.totalorder %s91, %s93
      %p97 = scmp.eq.s32.totalorder %s15, 0
      %p98 = por %p96, %p97
      %p99 = scmp.ne.s32.totalorder %s91, %s93
      %p100 = scmp.eq.s32.totalorder %s20, 1
      %p101 = por %p99, %p100
      %p102 = scmp.ne.s32.totalorder %s93, %s94
      %p103 = scmp.eq.s32.totalorder %s20, 0
      %p104 = por %p102, %p103
      %p105 = scmp.ne.s32.totalorder %s93, %s94
      %p106 = scmp.eq.s32.totalorder %s21, 1
      %p107 = por %p105, %p106
      %p109 = scmp.ne.s32.totalorder %s94, %s108
      %p110 = scmp.eq.s32.totalorder %s21, 0
      %p111 = por %p109, %p110
      %s113 = sadd.s32 %s112, 1
      %p116 = scmp.eq.s32.totalorder %s15, 1
      %p117 = scmp.ne.s32.totalorder %s112, %s114
      %p118 = scmp.eq.s32.totalorder %s15, 0
      %p119 = por %p117, %p118
      %p120 = scmp.ne.s32.totalorder %s112, %s114
      %p121 = scmp.eq.s32.totalorder %s20, 1
      %p122 = por %p120, %p121
      %p123 = scmp.ne.s32.totalorder %s114, %s115
      %p124 = scmp.eq.s32.totalorder %s20, 0
      %p125 = por %p123, %p124
      %p126 = scmp.ne.s32.totalorder %s114, %s115
      %p127 = scmp.eq.s32.totalorder %s21, 1
      %p128 = por %p126, %p127
      %p130 = scmp.ne.s32.totalorder %s115, %s129
      %p131 = scmp.eq.s32.totalorder %s21, 0
      %p132 = por %p130, %p131
      %s133 = ssub.s32 %s15, %s22
      %p134 = scmp.eq.s32.totalorder %s133, 0
      %s136 = sadd.s32 %s135, 1
      %s137 = scalar_select %p134, %s135, %s136
      %p140 = pneg %p134
      %p141 = scmp.eq.s32.totalorder %s15, 1
      %p142 = por %p140, %p141
      %p143 = scmp.ne.s32.totalorder %s135, %s138
      %p144 = scmp.eq.s32.totalorder %s15, 0
      %p145 = por %p143, %p144
      %p146 = scmp.ne.s32.totalorder %s135, %s138
      %p147 = scmp.eq.s32.totalorder %s20, 1
      %p148 = por %p146, %p147
      %p149 = scmp.ne.s32.totalorder %s138, %s139
      %p150 = scmp.eq.s32.totalorder %s20, 0
      %p151 = por %p149, %p150
      %p152 = scmp.ne.s32.totalorder %s138, %s139
      %p153 = scmp.eq.s32.totalorder %s21, 1
      %p154 = por %p152, %p153
      %p156 = scmp.ne.s32.totalorder %s139, %s155
      %p157 = scmp.eq.s32.totalorder %s21, 0
      %p158 = por %p156, %p157
      %p159 = scmp.le.s32.totalorder 1, %s15
      %p160 = scmp.lt.s32.totalorder %s15, 3
      %p161 = pnand %p159, %p160
      %p162 = pneg %p161
      // Predicated region
      $region9: #{eva_classifier_forward.1} parent=5 // pred_check
        _
      $region10: #{eva_classifier_forward.1} parent=5 // pred_check_branch
        %164 = sbr.rel (%p161) target = $region12
      $region11: #{eva_classifier_forward.1} parent=5 // pred_region
        %s165 = ssub.s32 %s15, 1
        // Predicated region
        $region13: #{eva_classifier_forward.1} parent=11 // pred_check
          %p166 = pneg %p62
        $region14: #{eva_classifier_forward.1} parent=11 // pred_check_branch
          %168 = sbr.rel (%p166) target = $region16
        $region15: #{eva_classifier_forward.1} parent=11 // pred_region
          %170 = vsyncadd [#allocation5], 0
          %s171 = sshll.u32 %s1, 4
          %s172 = int_to_ptr.hbm [resolvable:$true] %s171
          %s173 = sshll.u32 [#allocation4], 4
          %s174 = int_to_ptr.vmem [resolvable:$true] %s173
          %179 = dma.hbm_to_vmem [thread:$0]  %s172, 65536, %s174, [#allocation5], 1024, 1024, 64
        $region16: #{eva_classifier_forward.1} parent=11 // pred_fallthru
          _
        // Predicated region
        $region17: #{eva_classifier_forward.1} parent=11 // pred_check
          %p180 = pneg %p83
        $region18: #{eva_classifier_forward.1} parent=11 // pred_check_branch
          %182 = sbr.rel (%p180) target = $region20
        $region19: #{eva_classifier_forward.1} parent=11 // pred_region
          %184 = vsyncadd [#allocation5], 0
          %s186 = sshll.u32 %s2, 4
          %s187 = int_to_ptr.hbm [resolvable:$true] %s186
          %s188 = sshll.u32 [#allocation6], 4
          %s189 = int_to_ptr.vmem [resolvable:$true] %s188
          %191 = dma.hbm_to_vmem [thread:$0]  %s187, 64, %s189, [#allocation5]
        $region20: #{eva_classifier_forward.1} parent=11 // pred_fallthru
          _
        // Predicated region
        $region21: #{eva_classifier_forward.1} parent=11 // pred_check
          %p192 = pneg %p104
        $region22: #{eva_classifier_forward.1} parent=11 // pred_check_branch
          %194 = sbr.rel (%p192) target = $region24
        $region23: #{eva_classifier_forward.1} parent=11 // pred_region
          _
        $region24: #{eva_classifier_forward.1} parent=11 // pred_fallthru
          _
        // Predicated region
        $region25: #{eva_classifier_forward.1} parent=11 // pred_check
          %p195 = pneg %p125
        $region26: #{eva_classifier_forward.1} parent=11 // pred_check_branch
          %197 = sbr.rel (%p195) target = $region28
        $region27: #{eva_classifier_forward.1} parent=11 // pred_region
          _
        $region28: #{eva_classifier_forward.1} parent=11 // pred_fallthru
          _
      $region12: #{eva_classifier_forward.1} parent=5 // pred_fallthru
        _
      %p198 = scmp.lt.s32.totalorder %s15, 2
      // Predicated region
      $region29: #{eva_classifier_forward.1} parent=5 // pred_check
        %p199 = pneg %p198
      $region30: #{eva_classifier_forward.1} parent=5 // pred_check_branch
        %201 = sbr.rel (%p199) target = $region32
      $region31: #{eva_classifier_forward.1} parent=5 // pred_region
        // Predicated region
        $region33: #{eva_classifier_forward.1} parent=31 // pred_check
          %p202 = pneg %p35
        $region34: #{eva_classifier_forward.1} parent=31 // pred_check_branch
          %204 = sbr.rel (%p202) target = $region36
        $region35: #{eva_classifier_forward.1} parent=31 // pred_region
          %s205 = sand.u32 %s25, 1
          %s206 = scalar_lea.sflag [#allocation3], %s205
          %s207 = sand.u32 %s25, 1
          %s208 = smul.addr %s207, 1024
          %s209 = scalar_lea.vmem [#allocation2], %s208
          %s210 = smul.u32 16, %s15
          %212 = vsyncadd %s206, 0
          %s213 = smul.addr %s210, 8
          %s214 = smul.addr %s213, 8
          %s215 = scalar_lea.hbm %s0, %s214
          %s216 = sshll.u32 %s215, 4
          %s217 = int_to_ptr.hbm [resolvable:$true] %s216
          %s218 = sshll.u32 %s209, 4
          %s219 = int_to_ptr.vmem [resolvable:$true] %s218
          %224 = dma.hbm_to_vmem [thread:$0]  %s217, 16384, %s219, %s206, 1024, 1024, 64
        $region36: #{eva_classifier_forward.1} parent=31 // pred_fallthru
          _
      $region32: #{eva_classifier_forward.1} parent=5 // pred_fallthru
        _
      %p225 = scmp.le.s32.totalorder 1, %s15
      %p226 = scmp.lt.s32.totalorder %s15, 3
      %p227 = pnand %p225, %p226
      %p228 = pneg %p227
      // Predicated region
      $region37: #{eva_classifier_forward.1} parent=5 // pred_check
        _
      $region38: #{eva_classifier_forward.1} parent=5 // pred_check_branch
        %230 = sbr.rel (%p227) target = $region40
      $region39: #{eva_classifier_forward.1} parent=5 // pred_region
        %s231 = ssub.s32 %s15, 1
        %s232 = sand.u32 %s28, 1
        %s233 = scalar_lea.sflag [#allocation3], %s232
        %s234 = sand.u32 %s28, 1
        %s235 = smul.addr %s234, 1024
        %s236 = scalar_lea.vmem [#allocation2], %s235
        // Predicated region
        $region41: #{eva_classifier_forward.1} parent=39 // pred_check
          %p237 = pneg %p41
        $region42: #{eva_classifier_forward.1} parent=39 // pred_check_branch
          %239 = sbr.rel (%p237) target = $region44
        $region43: #{eva_classifier_forward.1} parent=39 // pred_region
          %241 = dma.done %s233, 16384
        $region44: #{eva_classifier_forward.1} parent=39 // pred_fallthru
          _
        // Predicated region
        $region45: #{eva_classifier_forward.1} parent=39 // pred_check
          %p242 = pneg %p62
        $region46: #{eva_classifier_forward.1} parent=39 // pred_check_branch
          %244 = sbr.rel (%p242) target = $region48
        $region47: #{eva_classifier_forward.1} parent=39 // pred_region
          %246 = dma.done [#allocation5], 65536
        $region48: #{eva_classifier_forward.1} parent=39 // pred_fallthru
          _
        // Predicated region
        $region49: #{eva_classifier_forward.1} parent=39 // pred_check
          %p247 = pneg %p83
        $region50: #{eva_classifier_forward.1} parent=39 // pred_check_branch
          %249 = sbr.rel (%p247) target = $region52
        $region51: #{eva_classifier_forward.1} parent=39 // pred_region
          %251 = dma.done [#allocation5], 64
        $region52: #{eva_classifier_forward.1} parent=39 // pred_fallthru
          _
        %s252 = sand.u32 %s28, 1
        %s253 = scalar_lea.sflag [#allocation3], %s252
        %s254 = sand.u32 %s28, 1
        %s255 = smul.addr %s254, 1024
        %s256 = scalar_lea.vmem [#allocation2], %s255
        %p257 = pneg %p41
        %p258 = pneg %p38
        %p259 = pneg %p62
        %p260 = pneg %p59
        %p261 = pneg %p83
        %p262 = pneg %p80
        %p263 = pneg %p104
        %p264 = pneg %p101
        %p265 = pneg %p125
        %p266 = pneg %p122
        %p267 = pneg %p151
        %p268 = pneg %p148
        %s269 = smul.u32 16, %s20
        %p270 = scmp.lt.s32.totalorder %s269, 31
        %s271 = scalar_select %p270, %s269, 31
        %s272 = smul.addr %s271, 8
        %s273 = scalar_lea.vmem %s5, %s272
        %s274 = smul.u32 16, %s20
        %s275 = smul.u32 16, %s20
        %p276 = scmp.lt.s32.totalorder %s275, 31
        %s277 = scalar_select %p276, %s275, 31
        %s278 = smul.addr %s277, 8
        %s279 = scalar_lea.vmem %s5, %s278
        %s280 = smul.u32 16, %s20
        %v281 = vld [vmem:[%s236] sm:$0xff]
        %v282 = vld [vmem:[%s236 + $0x8] sm:$0xff]
        %v283 = vld [vmem:[%s236 + $0x10] sm:$0xff]
        %v284 = vld [vmem:[%s236 + $0x18] sm:$0xff]
        %v285 = vld [vmem:[%s236 + $0x20] sm:$0xff]
        %v286 = vld [vmem:[%s236 + $0x28] sm:$0xff]
        %v287 = vld [vmem:[%s236 + $0x30] sm:$0xff]
        %v288 = vld [vmem:[%s236 + $0x38] sm:$0xff]
        %v289 = vld [vmem:[%s236 + $0x40] sm:$0xff]
        %v290 = vld [vmem:[%s236 + $0x48] sm:$0xff]
        %v291 = vld [vmem:[%s236 + $0x50] sm:$0xff]
        %v292 = vld [vmem:[%s236 + $0x58] sm:$0xff]
        %v293 = vld [vmem:[%s236 + $0x60] sm:$0xff]
        %v294 = vld [vmem:[%s236 + $0x68] sm:$0xff]
        %v295 = vld [vmem:[%s236 + $0x70] sm:$0xff]
        %v296 = vld [vmem:[%s236 + $0x78] sm:$0xff]
        %v297 = vld [vmem:[%s236 + $0x80] sm:$0xff]
        %v298 = vld [vmem:[%s236 + $0x88] sm:$0xff]
        %v299 = vld [vmem:[%s236 + $0x90] sm:$0xff]
        %v300 = vld [vmem:[%s236 + $0x98] sm:$0xff]
        %v301 = vld [vmem:[%s236 + $0xa0] sm:$0xff]
        %v302 = vld [vmem:[%s236 + $0xa8] sm:$0xff]
        %v303 = vld [vmem:[%s236 + $0xb0] sm:$0xff]
        %v304 = vld [vmem:[%s236 + $0xb8] sm:$0xff]
        %v305 = vld [vmem:[%s236 + $0xc0] sm:$0xff]
        %v306 = vld [vmem:[%s236 + $0xc8] sm:$0xff]
        %v307 = vld [vmem:[%s236 + $0xd0] sm:$0xff]
        %v308 = vld [vmem:[%s236 + $0xd8] sm:$0xff]
        %v309 = vld [vmem:[%s236 + $0xe0] sm:$0xff]
        %v310 = vld [vmem:[%s236 + $0xe8] sm:$0xff]
        %v311 = vld [vmem:[%s236 + $0xf0] sm:$0xff]
        %v312 = vld [vmem:[%s236 + $0xf8] sm:$0xff]
        %v313 = vld [vmem:[%s236 + $0x100] sm:$0xff]
        %v314 = vld [vmem:[%s236 + $0x108] sm:$0xff]
        %v315 = vld [vmem:[%s236 + $0x110] sm:$0xff]
        %v316 = vld [vmem:[%s236 + $0x118] sm:$0xff]
        %v317 = vld [vmem:[%s236 + $0x120] sm:$0xff]
        %v318 = vld [vmem:[%s236 + $0x128] sm:$0xff]
        %v319 = vld [vmem:[%s236 + $0x130] sm:$0xff]
        %v320 = vld [vmem:[%s236 + $0x138] sm:$0xff]
        %v321 = vld [vmem:[%s236 + $0x140] sm:$0xff]
        %v322 = vld [vmem:[%s236 + $0x148] sm:$0xff]
        %v323 = vld [vmem:[%s236 + $0x150] sm:$0xff]
        %v324 = vld [vmem:[%s236 + $0x158] sm:$0xff]
        %v325 = vld [vmem:[%s236 + $0x160] sm:$0xff]
        %v326 = vld [vmem:[%s236 + $0x168] sm:$0xff]
        %v327 = vld [vmem:[%s236 + $0x170] sm:$0xff]
        %v328 = vld [vmem:[%s236 + $0x178] sm:$0xff]
        %v329 = vld [vmem:[%s236 + $0x180] sm:$0xff]
        %v330 = vld [vmem:[%s236 + $0x188] sm:$0xff]
        %v331 = vld [vmem:[%s236 + $0x190] sm:$0xff]
        %v332 = vld [vmem:[%s236 + $0x198] sm:$0xff]
        %v333 = vld [vmem:[%s236 + $0x1a0] sm:$0xff]
        %v334 = vld [vmem:[%s236 + $0x1a8] sm:$0xff]
        %v335 = vld [vmem:[%s236 + $0x1b0] sm:$0xff]
        %v336 = vld [vmem:[%s236 + $0x1b8] sm:$0xff]
        %v337 = vld [vmem:[%s236 + $0x1c0] sm:$0xff]
        %v338 = vld [vmem:[%s236 + $0x1c8] sm:$0xff]
        %v339 = vld [vmem:[%s236 + $0x1d0] sm:$0xff]
        %v340 = vld [vmem:[%s236 + $0x1d8] sm:$0xff]
        %v341 = vld [vmem:[%s236 + $0x1e0] sm:$0xff]
        %v342 = vld [vmem:[%s236 + $0x1e8] sm:$0xff]
        %v343 = vld [vmem:[%s236 + $0x1f0] sm:$0xff]
        %v344 = vld [vmem:[%s236 + $0x1f8] sm:$0xff]
        %v345 = vld [vmem:[%s236 + $0x200] sm:$0xff]
        %v346 = vld [vmem:[%s236 + $0x208] sm:$0xff]
        %v347 = vld [vmem:[%s236 + $0x210] sm:$0xff]
        %v348 = vld [vmem:[%s236 + $0x218] sm:$0xff]
        %v349 = vld [vmem:[%s236 + $0x220] sm:$0xff]
        %v350 = vld [vmem:[%s236 + $0x228] sm:$0xff]
        %v351 = vld [vmem:[%s236 + $0x230] sm:$0xff]
        %v352 = vld [vmem:[%s236 + $0x238] sm:$0xff]
        %v353 = vld [vmem:[%s236 + $0x240] sm:$0xff]
        %v354 = vld [vmem:[%s236 + $0x248] sm:$0xff]
        %v355 = vld [vmem:[%s236 + $0x250] sm:$0xff]
        %v356 = vld [vmem:[%s236 + $0x258] sm:$0xff]
        %v357 = vld [vmem:[%s236 + $0x260] sm:$0xff]
        %v358 = vld [vmem:[%s236 + $0x268] sm:$0xff]
        %v359 = vld [vmem:[%s236 + $0x270] sm:$0xff]
        %v360 = vld [vmem:[%s236 + $0x278] sm:$0xff]
        %v361 = vld [vmem:[%s236 + $0x280] sm:$0xff]
        %v362 = vld [vmem:[%s236 + $0x288] sm:$0xff]
        %v363 = vld [vmem:[%s236 + $0x290] sm:$0xff]
        %v364 = vld [vmem:[%s236 + $0x298] sm:$0xff]
        %v365 = vld [vmem:[%s236 + $0x2a0] sm:$0xff]
        %v366 = vld [vmem:[%s236 + $0x2a8] sm:$0xff]
        %v367 = vld [vmem:[%s236 + $0x2b0] sm:$0xff]
        %v368 = vld [vmem:[%s236 + $0x2b8] sm:$0xff]
        %v369 = vld [vmem:[%s236 + $0x2c0] sm:$0xff]
        %v370 = vld [vmem:[%s236 + $0x2c8] sm:$0xff]
        %v371 = vld [vmem:[%s236 + $0x2d0] sm:$0xff]
        %v372 = vld [vmem:[%s236 + $0x2d8] sm:$0xff]
        %v373 = vld [vmem:[%s236 + $0x2e0] sm:$0xff]
        %v374 = vld [vmem:[%s236 + $0x2e8] sm:$0xff]
        %v375 = vld [vmem:[%s236 + $0x2f0] sm:$0xff]
        %v376 = vld [vmem:[%s236 + $0x2f8] sm:$0xff]
        %v377 = vld [vmem:[%s236 + $0x300] sm:$0xff]
        %v378 = vld [vmem:[%s236 + $0x308] sm:$0xff]
        %v379 = vld [vmem:[%s236 + $0x310] sm:$0xff]
        %v380 = vld [vmem:[%s236 + $0x318] sm:$0xff]
        %v381 = vld [vmem:[%s236 + $0x320] sm:$0xff]
        %v382 = vld [vmem:[%s236 + $0x328] sm:$0xff]
        %v383 = vld [vmem:[%s236 + $0x330] sm:$0xff]
        %v384 = vld [vmem:[%s236 + $0x338] sm:$0xff]
        %v385 = vld [vmem:[%s236 + $0x340] sm:$0xff]
        %v386 = vld [vmem:[%s236 + $0x348] sm:$0xff]
        %v387 = vld [vmem:[%s236 + $0x350] sm:$0xff]
        %v388 = vld [vmem:[%s236 + $0x358] sm:$0xff]
        %v389 = vld [vmem:[%s236 + $0x360] sm:$0xff]
        %v390 = vld [vmem:[%s236 + $0x368] sm:$0xff]
        %v391 = vld [vmem:[%s236 + $0x370] sm:$0xff]
        %v392 = vld [vmem:[%s236 + $0x378] sm:$0xff]
        %v393 = vld [vmem:[%s236 + $0x380] sm:$0xff]
        %v394 = vld [vmem:[%s236 + $0x388] sm:$0xff]
        %v395 = vld [vmem:[%s236 + $0x390] sm:$0xff]
        %v396 = vld [vmem:[%s236 + $0x398] sm:$0xff]
        %v397 = vld [vmem:[%s236 + $0x3a0] sm:$0xff]
        %v398 = vld [vmem:[%s236 + $0x3a8] sm:$0xff]
        %v399 = vld [vmem:[%s236 + $0x3b0] sm:$0xff]
        %v400 = vld [vmem:[%s236 + $0x3b8] sm:$0xff]
        %v401 = vld [vmem:[%s236 + $0x3c0] sm:$0xff]
        %v402 = vld [vmem:[%s236 + $0x3c8] sm:$0xff]
        %v403 = vld [vmem:[%s236 + $0x3d0] sm:$0xff]
        %v404 = vld [vmem:[%s236 + $0x3d8] sm:$0xff]
        %v405 = vld [vmem:[%s236 + $0x3e0] sm:$0xff]
        %v406 = vld [vmem:[%s236 + $0x3e8] sm:$0xff]
        %v407 = vld [vmem:[%s236 + $0x3f0] sm:$0xff]
        %v408 = vld [vmem:[%s236 + $0x3f8] sm:$0xff]
        %v409 = vld [vmem:[#allocation4] sm:$0xff]
        %v410 = vld [vmem:[#allocation4 + $0x8] sm:$0xff]
        %v411 = vld [vmem:[#allocation4 + $0x10] sm:$0xff]
        %v412 = vld [vmem:[#allocation4 + $0x18] sm:$0xff]
        %v413 = vld [vmem:[#allocation4 + $0x20] sm:$0xff]
        %v414 = vld [vmem:[#allocation4 + $0x28] sm:$0xff]
        %v415 = vld [vmem:[#allocation4 + $0x30] sm:$0xff]
        %v416 = vld [vmem:[#allocation4 + $0x38] sm:$0xff]
        %v417 = vld [vmem:[#allocation4 + $0x40] sm:$0xff]
        %v418 = vld [vmem:[#allocation4 + $0x48] sm:$0xff]
        %v419 = vld [vmem:[#allocation4 + $0x50] sm:$0xff]
        %v420 = vld [vmem:[#allocation4 + $0x58] sm:$0xff]
        %v421 = vld [vmem:[#allocation4 + $0x60] sm:$0xff]
        %v422 = vld [vmem:[#allocation4 + $0x68] sm:$0xff]
        %v423 = vld [vmem:[#allocation4 + $0x70] sm:$0xff]
        %v424 = vld [vmem:[#allocation4 + $0x78] sm:$0xff]
        %v425 = vld [vmem:[#allocation4 + $0x80] sm:$0xff]
        %v426 = vld [vmem:[#allocation4 + $0x88] sm:$0xff]
        %v427 = vld [vmem:[#allocation4 + $0x90] sm:$0xff]
        %v428 = vld [vmem:[#allocation4 + $0x98] sm:$0xff]
        %v429 = vld [vmem:[#allocation4 + $0xa0] sm:$0xff]
        %v430 = vld [vmem:[#allocation4 + $0xa8] sm:$0xff]
        %v431 = vld [vmem:[#allocation4 + $0xb0] sm:$0xff]
        %v432 = vld [vmem:[#allocation4 + $0xb8] sm:$0xff]
        %v433 = vld [vmem:[#allocation4 + $0xc0] sm:$0xff]
        %v434 = vld [vmem:[#allocation4 + $0xc8] sm:$0xff]
        %v435 = vld [vmem:[#allocation4 + $0xd0] sm:$0xff]
        %v436 = vld [vmem:[#allocation4 + $0xd8] sm:$0xff]
        %v437 = vld [vmem:[#allocation4 + $0xe0] sm:$0xff]
        %v438 = vld [vmem:[#allocation4 + $0xe8] sm:$0xff]
        %v439 = vld [vmem:[#allocation4 + $0xf0] sm:$0xff]
        %v440 = vld [vmem:[#allocation4 + $0xf8] sm:$0xff]
        %v441 = vld [vmem:[#allocation4 + $0x100] sm:$0xff]
        %v442 = vld [vmem:[#allocation4 + $0x108] sm:$0xff]
        %v443 = vld [vmem:[#allocation4 + $0x110] sm:$0xff]
        %v444 = vld [vmem:[#allocation4 + $0x118] sm:$0xff]
        %v445 = vld [vmem:[#allocation4 + $0x120] sm:$0xff]
        %v446 = vld [vmem:[#allocation4 + $0x128] sm:$0xff]
        %v447 = vld [vmem:[#allocation4 + $0x130] sm:$0xff]
        %v448 = vld [vmem:[#allocation4 + $0x138] sm:$0xff]
        %v449 = vld [vmem:[#allocation4 + $0x140] sm:$0xff]
        %v450 = vld [vmem:[#allocation4 + $0x148] sm:$0xff]
        %v451 = vld [vmem:[#allocation4 + $0x150] sm:$0xff]
        %v452 = vld [vmem:[#allocation4 + $0x158] sm:$0xff]
        %v453 = vld [vmem:[#allocation4 + $0x160] sm:$0xff]
        %v454 = vld [vmem:[#allocation4 + $0x168] sm:$0xff]
        %v455 = vld [vmem:[#allocation4 + $0x170] sm:$0xff]
        %v456 = vld [vmem:[#allocation4 + $0x178] sm:$0xff]
        %v457 = vld [vmem:[#allocation4 + $0x180] sm:$0xff]
        %v458 = vld [vmem:[#allocation4 + $0x188] sm:$0xff]
        %v459 = vld [vmem:[#allocation4 + $0x190] sm:$0xff]
        %v460 = vld [vmem:[#allocation4 + $0x198] sm:$0xff]
        %v461 = vld [vmem:[#allocation4 + $0x1a0] sm:$0xff]
        %v462 = vld [vmem:[#allocation4 + $0x1a8] sm:$0xff]
        %v463 = vld [vmem:[#allocation4 + $0x1b0] sm:$0xff]
        %v464 = vld [vmem:[#allocation4 + $0x1b8] sm:$0xff]
        %v465 = vld [vmem:[#allocation4 + $0x1c0] sm:$0xff]
        %v466 = vld [vmem:[#allocation4 + $0x1c8] sm:$0xff]
        %v467 = vld [vmem:[#allocation4 + $0x1d0] sm:$0xff]
        %v468 = vld [vmem:[#allocation4 + $0x1d8] sm:$0xff]
        %v469 = vld [vmem:[#allocation4 + $0x1e0] sm:$0xff]
        %v470 = vld [vmem:[#allocation4 + $0x1e8] sm:$0xff]
        %v471 = vld [vmem:[#allocation4 + $0x1f0] sm:$0xff]
        %v472 = vld [vmem:[#allocation4 + $0x1f8] sm:$0xff]
        %v473 = vld [vmem:[#allocation4 + $0x200] sm:$0xff]
        %v474 = vld [vmem:[#allocation4 + $0x208] sm:$0xff]
        %v475 = vld [vmem:[#allocation4 + $0x210] sm:$0xff]
        %v476 = vld [vmem:[#allocation4 + $0x218] sm:$0xff]
        %v477 = vld [vmem:[#allocation4 + $0x220] sm:$0xff]
        %v478 = vld [vmem:[#allocation4 + $0x228] sm:$0xff]
        %v479 = vld [vmem:[#allocation4 + $0x230] sm:$0xff]
        %v480 = vld [vmem:[#allocation4 + $0x238] sm:$0xff]
        %v481 = vld [vmem:[#allocation4 + $0x240] sm:$0xff]
        %v482 = vld [vmem:[#allocation4 + $0x248] sm:$0xff]
        %v483 = vld [vmem:[#allocation4 + $0x250] sm:$0xff]
        %v484 = vld [vmem:[#allocation4 + $0x258] sm:$0xff]
        %v485 = vld [vmem:[#allocation4 + $0x260] sm:$0xff]
        %v486 = vld [vmem:[#allocation4 + $0x268] sm:$0xff]
        %v487 = vld [vmem:[#allocation4 + $0x270] sm:$0xff]
        %v488 = vld [vmem:[#allocation4 + $0x278] sm:$0xff]
        %v489 = vld [vmem:[#allocation4 + $0x280] sm:$0xff]
        %v490 = vld [vmem:[#allocation4 + $0x288] sm:$0xff]
        %v491 = vld [vmem:[#allocation4 + $0x290] sm:$0xff]
        %v492 = vld [vmem:[#allocation4 + $0x298] sm:$0xff]
        %v493 = vld [vmem:[#allocation4 + $0x2a0] sm:$0xff]
        %v494 = vld [vmem:[#allocation4 + $0x2a8] sm:$0xff]
        %v495 = vld [vmem:[#allocation4 + $0x2b0] sm:$0xff]
        %v496 = vld [vmem:[#allocation4 + $0x2b8] sm:$0xff]
        %v497 = vld [vmem:[#allocation4 + $0x2c0] sm:$0xff]
        %v498 = vld [vmem:[#allocation4 + $0x2c8] sm:$0xff]
        %v499 = vld [vmem:[#allocation4 + $0x2d0] sm:$0xff]
        %v500 = vld [vmem:[#allocation4 + $0x2d8] sm:$0xff]
        %v501 = vld [vmem:[#allocation4 + $0x2e0] sm:$0xff]
        %v502 = vld [vmem:[#allocation4 + $0x2e8] sm:$0xff]
        %v503 = vld [vmem:[#allocation4 + $0x2f0] sm:$0xff]
        %v504 = vld [vmem:[#allocation4 + $0x2f8] sm:$0xff]
        %v505 = vld [vmem:[#allocation4 + $0x300] sm:$0xff]
        %v506 = vld [vmem:[#allocation4 + $0x308] sm:$0xff]
        %v507 = vld [vmem:[#allocation4 + $0x310] sm:$0xff]
        %v508 = vld [vmem:[#allocation4 + $0x318] sm:$0xff]
        %v509 = vld [vmem:[#allocation4 + $0x320] sm:$0xff]
        %v510 = vld [vmem:[#allocation4 + $0x328] sm:$0xff]
        %v511 = vld [vmem:[#allocation4 + $0x330] sm:$0xff]
        %v512 = vld [vmem:[#allocation4 + $0x338] sm:$0xff]
        %v513 = vld [vmem:[#allocation4 + $0x340] sm:$0xff]
        %v514 = vld [vmem:[#allocation4 + $0x348] sm:$0xff]
        %v515 = vld [vmem:[#allocation4 + $0x350] sm:$0xff]
        %v516 = vld [vmem:[#allocation4 + $0x358] sm:$0xff]
        %v517 = vld [vmem:[#allocation4 + $0x360] sm:$0xff]
        %v518 = vld [vmem:[#allocation4 + $0x368] sm:$0xff]
        %v519 = vld [vmem:[#allocation4 + $0x370] sm:$0xff]
        %v520 = vld [vmem:[#allocation4 + $0x378] sm:$0xff]
        %v521 = vld [vmem:[#allocation4 + $0x380] sm:$0xff]
        %v522 = vld [vmem:[#allocation4 + $0x388] sm:$0xff]
        %v523 = vld [vmem:[#allocation4 + $0x390] sm:$0xff]
        %v524 = vld [vmem:[#allocation4 + $0x398] sm:$0xff]
        %v525 = vld [vmem:[#allocation4 + $0x3a0] sm:$0xff]
        %v526 = vld [vmem:[#allocation4 + $0x3a8] sm:$0xff]
        %v527 = vld [vmem:[#allocation4 + $0x3b0] sm:$0xff]
        %v528 = vld [vmem:[#allocation4 + $0x3b8] sm:$0xff]
        %v529 = vld [vmem:[#allocation4 + $0x3c0] sm:$0xff]
        %v530 = vld [vmem:[#allocation4 + $0x3c8] sm:$0xff]
        %v531 = vld [vmem:[#allocation4 + $0x3d0] sm:$0xff]
        %v532 = vld [vmem:[#allocation4 + $0x3d8] sm:$0xff]
        %v533 = vld [vmem:[#allocation4 + $0x3e0] sm:$0xff]
        %v534 = vld [vmem:[#allocation4 + $0x3e8] sm:$0xff]
        %v535 = vld [vmem:[#allocation4 + $0x3f0] sm:$0xff]
        %v536 = vld [vmem:[#allocation4 + $0x3f8] sm:$0xff]
        %v537 = vld [vmem:[#allocation4 + $0x400] sm:$0xff]
        %v538 = vld [vmem:[#allocation4 + $0x408] sm:$0xff]
        %v539 = vld [vmem:[#allocation4 + $0x410] sm:$0xff]
        %v540 = vld [vmem:[#allocation4 + $0x418] sm:$0xff]
        %v541 = vld [vmem:[#allocation4 + $0x420] sm:$0xff]
        %v542 = vld [vmem:[#allocation4 + $0x428] sm:$0xff]
        %v543 = vld [vmem:[#allocation4 + $0x430] sm:$0xff]
        %v544 = vld [vmem:[#allocation4 + $0x438] sm:$0xff]
        %v545 = vld [vmem:[#allocation4 + $0x440] sm:$0xff]
        %v546 = vld [vmem:[#allocation4 + $0x448] sm:$0xff]
        %v547 = vld [vmem:[#allocation4 + $0x450] sm:$0xff]
        %v548 = vld [vmem:[#allocation4 + $0x458] sm:$0xff]
        %v549 = vld [vmem:[#allocation4 + $0x460] sm:$0xff]
        %v550 = vld [vmem:[#allocation4 + $0x468] sm:$0xff]
        %v551 = vld [vmem:[#allocation4 + $0x470] sm:$0xff]
        %v552 = vld [vmem:[#allocation4 + $0x478] sm:$0xff]
        %v553 = vld [vmem:[#allocation4 + $0x480] sm:$0xff]
        %v554 = vld [vmem:[#allocation4 + $0x488] sm:$0xff]
        %v555 = vld [vmem:[#allocation4 + $0x490] sm:$0xff]
        %v556 = vld [vmem:[#allocation4 + $0x498] sm:$0xff]
        %v557 = vld [vmem:[#allocation4 + $0x4a0] sm:$0xff]
        %v558 = vld [vmem:[#allocation4 + $0x4a8] sm:$0xff]
        %v559 = vld [vmem:[#allocation4 + $0x4b0] sm:$0xff]
        %v560 = vld [vmem:[#allocation4 + $0x4b8] sm:$0xff]
        %v561 = vld [vmem:[#allocation4 + $0x4c0] sm:$0xff]
        %v562 = vld [vmem:[#allocation4 + $0x4c8] sm:$0xff]
        %v563 = vld [vmem:[#allocation4 + $0x4d0] sm:$0xff]
        %v564 = vld [vmem:[#allocation4 + $0x4d8] sm:$0xff]
        %v565 = vld [vmem:[#allocation4 + $0x4e0] sm:$0xff]
        %v566 = vld [vmem:[#allocation4 + $0x4e8] sm:$0xff]
        %v567 = vld [vmem:[#allocation4 + $0x4f0] sm:$0xff]
        %v568 = vld [vmem:[#allocation4 + $0x4f8] sm:$0xff]
        %v569 = vld [vmem:[#allocation4 + $0x500] sm:$0xff]
        %v570 = vld [vmem:[#allocation4 + $0x508] sm:$0xff]
        %v571 = vld [vmem:[#allocation4 + $0x510] sm:$0xff]
        %v572 = vld [vmem:[#allocation4 + $0x518] sm:$0xff]
        %v573 = vld [vmem:[#allocation4 + $0x520] sm:$0xff]
        %v574 = vld [vmem:[#allocation4 + $0x528] sm:$0xff]
        %v575 = vld [vmem:[#allocation4 + $0x530] sm:$0xff]
        %v576 = vld [vmem:[#allocation4 + $0x538] sm:$0xff]
        %v577 = vld [vmem:[#allocation4 + $0x540] sm:$0xff]
        %v578 = vld [vmem:[#allocation4 + $0x548] sm:$0xff]
        %v579 = vld [vmem:[#allocation4 + $0x550] sm:$0xff]
        %v580 = vld [vmem:[#allocation4 + $0x558] sm:$0xff]
        %v581 = vld [vmem:[#allocation4 + $0x560] sm:$0xff]
        %v582 = vld [vmem:[#allocation4 + $0x568] sm:$0xff]
        %v583 = vld [vmem:[#allocation4 + $0x570] sm:$0xff]
        %v584 = vld [vmem:[#allocation4 + $0x578] sm:$0xff]
        %v585 = vld [vmem:[#allocation4 + $0x580] sm:$0xff]
        %v586 = vld [vmem:[#allocation4 + $0x588] sm:$0xff]
        %v587 = vld [vmem:[#allocation4 + $0x590] sm:$0xff]
        %v588 = vld [vmem:[#allocation4 + $0x598] sm:$0xff]
        %v589 = vld [vmem:[#allocation4 + $0x5a0] sm:$0xff]
        %v590 = vld [vmem:[#allocation4 + $0x5a8] sm:$0xff]
        %v591 = vld [vmem:[#allocation4 + $0x5b0] sm:$0xff]
        %v592 = vld [vmem:[#allocation4 + $0x5b8] sm:$0xff]
        %v593 = vld [vmem:[#allocation4 + $0x5c0] sm:$0xff]
        %v594 = vld [vmem:[#allocation4 + $0x5c8] sm:$0xff]
        %v595 = vld [vmem:[#allocation4 + $0x5d0] sm:$0xff]
        %v596 = vld [vmem:[#allocation4 + $0x5d8] sm:$0xff]
        %v597 = vld [vmem:[#allocation4 + $0x5e0] sm:$0xff]
        %v598 = vld [vmem:[#allocation4 + $0x5e8] sm:$0xff]
        %v599 = vld [vmem:[#allocation4 + $0x5f0] sm:$0xff]
        %v600 = vld [vmem:[#allocation4 + $0x5f8] sm:$0xff]
        %v601 = vld [vmem:[#allocation4 + $0x600] sm:$0xff]
        %v602 = vld [vmem:[#allocation4 + $0x608] sm:$0xff]
        %v603 = vld [vmem:[#allocation4 + $0x610] sm:$0xff]
        %v604 = vld [vmem:[#allocation4 + $0x618] sm:$0xff]
        %v605 = vld [vmem:[#allocation4 + $0x620] sm:$0xff]
        %v606 = vld [vmem:[#allocation4 + $0x628] sm:$0xff]
        %v607 = vld [vmem:[#allocation4 + $0x630] sm:$0xff]
        %v608 = vld [vmem:[#allocation4 + $0x638] sm:$0xff]
        %v609 = vld [vmem:[#allocation4 + $0x640] sm:$0xff]
        %v610 = vld [vmem:[#allocation4 + $0x648] sm:$0xff]
        %v611 = vld [vmem:[#allocation4 + $0x650] sm:$0xff]
        %v612 = vld [vmem:[#allocation4 + $0x658] sm:$0xff]
        %v613 = vld [vmem:[#allocation4 + $0x660] sm:$0xff]
        %v614 = vld [vmem:[#allocation4 + $0x668] sm:$0xff]
        %v615 = vld [vmem:[#allocation4 + $0x670] sm:$0xff]
        %v616 = vld [vmem:[#allocation4 + $0x678] sm:$0xff]
        %v617 = vld [vmem:[#allocation4 + $0x680] sm:$0xff]
        %v618 = vld [vmem:[#allocation4 + $0x688] sm:$0xff]
        %v619 = vld [vmem:[#allocation4 + $0x690] sm:$0xff]
        %v620 = vld [vmem:[#allocation4 + $0x698] sm:$0xff]
        %v621 = vld [vmem:[#allocation4 + $0x6a0] sm:$0xff]
        %v622 = vld [vmem:[#allocation4 + $0x6a8] sm:$0xff]
        %v623 = vld [vmem:[#allocation4 + $0x6b0] sm:$0xff]
        %v624 = vld [vmem:[#allocation4 + $0x6b8] sm:$0xff]
        %v625 = vld [vmem:[#allocation4 + $0x6c0] sm:$0xff]
        %v626 = vld [vmem:[#allocation4 + $0x6c8] sm:$0xff]
        %v627 = vld [vmem:[#allocation4 + $0x6d0] sm:$0xff]
        %v628 = vld [vmem:[#allocation4 + $0x6d8] sm:$0xff]
        %v629 = vld [vmem:[#allocation4 + $0x6e0] sm:$0xff]
        %v630 = vld [vmem:[#allocation4 + $0x6e8] sm:$0xff]
        %v631 = vld [vmem:[#allocation4 + $0x6f0] sm:$0xff]
        %v632 = vld [vmem:[#allocation4 + $0x6f8] sm:$0xff]
        %v633 = vld [vmem:[#allocation4 + $0x700] sm:$0xff]
        %v634 = vld [vmem:[#allocation4 + $0x708] sm:$0xff]
        %v635 = vld [vmem:[#allocation4 + $0x710] sm:$0xff]
        %v636 = vld [vmem:[#allocation4 + $0x718] sm:$0xff]
        %v637 = vld [vmem:[#allocation4 + $0x720] sm:$0xff]
        %v638 = vld [vmem:[#allocation4 + $0x728] sm:$0xff]
        %v639 = vld [vmem:[#allocation4 + $0x730] sm:$0xff]
        %v640 = vld [vmem:[#allocation4 + $0x738] sm:$0xff]
        %v641 = vld [vmem:[#allocation4 + $0x740] sm:$0xff]
        %v642 = vld [vmem:[#allocation4 + $0x748] sm:$0xff]
        %v643 = vld [vmem:[#allocation4 + $0x750] sm:$0xff]
        %v644 = vld [vmem:[#allocation4 + $0x758] sm:$0xff]
        %v645 = vld [vmem:[#allocation4 + $0x760] sm:$0xff]
        %v646 = vld [vmem:[#allocation4 + $0x768] sm:$0xff]
        %v647 = vld [vmem:[#allocation4 + $0x770] sm:$0xff]
        %v648 = vld [vmem:[#allocation4 + $0x778] sm:$0xff]
        %v649 = vld [vmem:[#allocation4 + $0x780] sm:$0xff]
        %v650 = vld [vmem:[#allocation4 + $0x788] sm:$0xff]
        %v651 = vld [vmem:[#allocation4 + $0x790] sm:$0xff]
        %v652 = vld [vmem:[#allocation4 + $0x798] sm:$0xff]
        %v653 = vld [vmem:[#allocation4 + $0x7a0] sm:$0xff]
        %v654 = vld [vmem:[#allocation4 + $0x7a8] sm:$0xff]
        %v655 = vld [vmem:[#allocation4 + $0x7b0] sm:$0xff]
        %v656 = vld [vmem:[#allocation4 + $0x7b8] sm:$0xff]
        %v657 = vld [vmem:[#allocation4 + $0x7c0] sm:$0xff]
        %v658 = vld [vmem:[#allocation4 + $0x7c8] sm:$0xff]
        %v659 = vld [vmem:[#allocation4 + $0x7d0] sm:$0xff]
        %v660 = vld [vmem:[#allocation4 + $0x7d8] sm:$0xff]
        %v661 = vld [vmem:[#allocation4 + $0x7e0] sm:$0xff]
        %v662 = vld [vmem:[#allocation4 + $0x7e8] sm:$0xff]
        %v663 = vld [vmem:[#allocation4 + $0x7f0] sm:$0xff]
        %v664 = vld [vmem:[#allocation4 + $0x7f8] sm:$0xff]
        %v665 = vld [vmem:[#allocation4 + $0x800] sm:$0xff]
        %v666 = vld [vmem:[#allocation4 + $0x808] sm:$0xff]
        %v667 = vld [vmem:[#allocation4 + $0x810] sm:$0xff]
        %v668 = vld [vmem:[#allocation4 + $0x818] sm:$0xff]
        %v669 = vld [vmem:[#allocation4 + $0x820] sm:$0xff]
        %v670 = vld [vmem:[#allocation4 + $0x828] sm:$0xff]
        %v671 = vld [vmem:[#allocation4 + $0x830] sm:$0xff]
        %v672 = vld [vmem:[#allocation4 + $0x838] sm:$0xff]
        %v673 = vld [vmem:[#allocation4 + $0x840] sm:$0xff]
        %v674 = vld [vmem:[#allocation4 + $0x848] sm:$0xff]
        %v675 = vld [vmem:[#allocation4 + $0x850] sm:$0xff]
        %v676 = vld [vmem:[#allocation4 + $0x858] sm:$0xff]
        %v677 = vld [vmem:[#allocation4 + $0x860] sm:$0xff]
        %v678 = vld [vmem:[#allocation4 + $0x868] sm:$0xff]
        %v679 = vld [vmem:[#allocation4 + $0x870] sm:$0xff]
        %v680 = vld [vmem:[#allocation4 + $0x878] sm:$0xff]
        %v681 = vld [vmem:[#allocation4 + $0x880] sm:$0xff]
        %v682 = vld [vmem:[#allocation4 + $0x888] sm:$0xff]
        %v683 = vld [vmem:[#allocation4 + $0x890] sm:$0xff]
        %v684 = vld [vmem:[#allocation4 + $0x898] sm:$0xff]
        %v685 = vld [vmem:[#allocation4 + $0x8a0] sm:$0xff]
        %v686 = vld [vmem:[#allocation4 + $0x8a8] sm:$0xff]
        %v687 = vld [vmem:[#allocation4 + $0x8b0] sm:$0xff]
        %v688 = vld [vmem:[#allocation4 + $0x8b8] sm:$0xff]
        %v689 = vld [vmem:[#allocation4 + $0x8c0] sm:$0xff]
        %v690 = vld [vmem:[#allocation4 + $0x8c8] sm:$0xff]
        %v691 = vld [vmem:[#allocation4 + $0x8d0] sm:$0xff]
        %v692 = vld [vmem:[#allocation4 + $0x8d8] sm:$0xff]
        %v693 = vld [vmem:[#allocation4 + $0x8e0] sm:$0xff]
        %v694 = vld [vmem:[#allocation4 + $0x8e8] sm:$0xff]
        %v695 = vld [vmem:[#allocation4 + $0x8f0] sm:$0xff]
        %v696 = vld [vmem:[#allocation4 + $0x8f8] sm:$0xff]
        %v697 = vld [vmem:[#allocation4 + $0x900] sm:$0xff]
        %v698 = vld [vmem:[#allocation4 + $0x908] sm:$0xff]
        %v699 = vld [vmem:[#allocation4 + $0x910] sm:$0xff]
        %v700 = vld [vmem:[#allocation4 + $0x918] sm:$0xff]
        %v701 = vld [vmem:[#allocation4 + $0x920] sm:$0xff]
        %v702 = vld [vmem:[#allocation4 + $0x928] sm:$0xff]
        %v703 = vld [vmem:[#allocation4 + $0x930] sm:$0xff]
        %v704 = vld [vmem:[#allocation4 + $0x938] sm:$0xff]
        %v705 = vld [vmem:[#allocation4 + $0x940] sm:$0xff]
        %v706 = vld [vmem:[#allocation4 + $0x948] sm:$0xff]
        %v707 = vld [vmem:[#allocation4 + $0x950] sm:$0xff]
        %v708 = vld [vmem:[#allocation4 + $0x958] sm:$0xff]
        %v709 = vld [vmem:[#allocation4 + $0x960] sm:$0xff]
        %v710 = vld [vmem:[#allocation4 + $0x968] sm:$0xff]
        %v711 = vld [vmem:[#allocation4 + $0x970] sm:$0xff]
        %v712 = vld [vmem:[#allocation4 + $0x978] sm:$0xff]
        %v713 = vld [vmem:[#allocation4 + $0x980] sm:$0xff]
        %v714 = vld [vmem:[#allocation4 + $0x988] sm:$0xff]
        %v715 = vld [vmem:[#allocation4 + $0x990] sm:$0xff]
        %v716 = vld [vmem:[#allocation4 + $0x998] sm:$0xff]
        %v717 = vld [vmem:[#allocation4 + $0x9a0] sm:$0xff]
        %v718 = vld [vmem:[#allocation4 + $0x9a8] sm:$0xff]
        %v719 = vld [vmem:[#allocation4 + $0x9b0] sm:$0xff]
        %v720 = vld [vmem:[#allocation4 + $0x9b8] sm:$0xff]
        %v721 = vld [vmem:[#allocation4 + $0x9c0] sm:$0xff]
        %v722 = vld [vmem:[#allocation4 + $0x9c8] sm:$0xff]
        %v723 = vld [vmem:[#allocation4 + $0x9d0] sm:$0xff]
        %v724 = vld [vmem:[#allocation4 + $0x9d8] sm:$0xff]
        %v725 = vld [vmem:[#allocation4 + $0x9e0] sm:$0xff]
        %v726 = vld [vmem:[#allocation4 + $0x9e8] sm:$0xff]
        %v727 = vld [vmem:[#allocation4 + $0x9f0] sm:$0xff]
        %v728 = vld [vmem:[#allocation4 + $0x9f8] sm:$0xff]
        %v729 = vld [vmem:[#allocation4 + $0xa00] sm:$0xff]
        %v730 = vld [vmem:[#allocation4 + $0xa08] sm:$0xff]
        %v731 = vld [vmem:[#allocation4 + $0xa10] sm:$0xff]
        %v732 = vld [vmem:[#allocation4 + $0xa18] sm:$0xff]
        %v733 = vld [vmem:[#allocation4 + $0xa20] sm:$0xff]
        %v734 = vld [vmem:[#allocation4 + $0xa28] sm:$0xff]
        %v735 = vld [vmem:[#allocation4 + $0xa30] sm:$0xff]
        %v736 = vld [vmem:[#allocation4 + $0xa38] sm:$0xff]
        %v737 = vld [vmem:[#allocation4 + $0xa40] sm:$0xff]
        %v738 = vld [vmem:[#allocation4 + $0xa48] sm:$0xff]
        %v739 = vld [vmem:[#allocation4 + $0xa50] sm:$0xff]
        %v740 = vld [vmem:[#allocation4 + $0xa58] sm:$0xff]
        %v741 = vld [vmem:[#allocation4 + $0xa60] sm:$0xff]
        %v742 = vld [vmem:[#allocation4 + $0xa68] sm:$0xff]
        %v743 = vld [vmem:[#allocation4 + $0xa70] sm:$0xff]
        %v744 = vld [vmem:[#allocation4 + $0xa78] sm:$0xff]
        %v745 = vld [vmem:[#allocation4 + $0xa80] sm:$0xff]
        %v746 = vld [vmem:[#allocation4 + $0xa88] sm:$0xff]
        %v747 = vld [vmem:[#allocation4 + $0xa90] sm:$0xff]
        %v748 = vld [vmem:[#allocation4 + $0xa98] sm:$0xff]
        %v749 = vld [vmem:[#allocation4 + $0xaa0] sm:$0xff]
        %v750 = vld [vmem:[#allocation4 + $0xaa8] sm:$0xff]
        %v751 = vld [vmem:[#allocation4 + $0xab0] sm:$0xff]
        %v752 = vld [vmem:[#allocation4 + $0xab8] sm:$0xff]
        %v753 = vld [vmem:[#allocation4 + $0xac0] sm:$0xff]
        %v754 = vld [vmem:[#allocation4 + $0xac8] sm:$0xff]
        %v755 = vld [vmem:[#allocation4 + $0xad0] sm:$0xff]
        %v756 = vld [vmem:[#allocation4 + $0xad8] sm:$0xff]
        %v757 = vld [vmem:[#allocation4 + $0xae0] sm:$0xff]
        %v758 = vld [vmem:[#allocation4 + $0xae8] sm:$0xff]
        %v759 = vld [vmem:[#allocation4 + $0xaf0] sm:$0xff]
        %v760 = vld [vmem:[#allocation4 + $0xaf8] sm:$0xff]
        %v761 = vld [vmem:[#allocation4 + $0xb00] sm:$0xff]
        %v762 = vld [vmem:[#allocation4 + $0xb08] sm:$0xff]
        %v763 = vld [vmem:[#allocation4 + $0xb10] sm:$0xff]
        %v764 = vld [vmem:[#allocation4 + $0xb18] sm:$0xff]
        %v765 = vld [vmem:[#allocation4 + $0xb20] sm:$0xff]
        %v766 = vld [vmem:[#allocation4 + $0xb28] sm:$0xff]
        %v767 = vld [vmem:[#allocation4 + $0xb30] sm:$0xff]
        %v768 = vld [vmem:[#allocation4 + $0xb38] sm:$0xff]
        %v769 = vld [vmem:[#allocation4 + $0xb40] sm:$0xff]
        %v770 = vld [vmem:[#allocation4 + $0xb48] sm:$0xff]
        %v771 = vld [vmem:[#allocation4 + $0xb50] sm:$0xff]
        %v772 = vld [vmem:[#allocation4 + $0xb58] sm:$0xff]
        %v773 = vld [vmem:[#allocation4 + $0xb60] sm:$0xff]
        %v774 = vld [vmem:[#allocation4 + $0xb68] sm:$0xff]
        %v775 = vld [vmem:[#allocation4 + $0xb70] sm:$0xff]
        %v776 = vld [vmem:[#allocation4 + $0xb78] sm:$0xff]
        %v777 = vld [vmem:[#allocation4 + $0xb80] sm:$0xff]
        %v778 = vld [vmem:[#allocation4 + $0xb88] sm:$0xff]
        %v779 = vld [vmem:[#allocation4 + $0xb90] sm:$0xff]
        %v780 = vld [vmem:[#allocation4 + $0xb98] sm:$0xff]
        %v781 = vld [vmem:[#allocation4 + $0xba0] sm:$0xff]
        %v782 = vld [vmem:[#allocation4 + $0xba8] sm:$0xff]
        %v783 = vld [vmem:[#allocation4 + $0xbb0] sm:$0xff]
        %v784 = vld [vmem:[#allocation4 + $0xbb8] sm:$0xff]
        %v785 = vld [vmem:[#allocation4 + $0xbc0] sm:$0xff]
        %v786 = vld [vmem:[#allocation4 + $0xbc8] sm:$0xff]
        %v787 = vld [vmem:[#allocation4 + $0xbd0] sm:$0xff]
        %v788 = vld [vmem:[#allocation4 + $0xbd8] sm:$0xff]
        %v789 = vld [vmem:[#allocation4 + $0xbe0] sm:$0xff]
        %v790 = vld [vmem:[#allocation4 + $0xbe8] sm:$0xff]
        %v791 = vld [vmem:[#allocation4 + $0xbf0] sm:$0xff]
        %v792 = vld [vmem:[#allocation4 + $0xbf8] sm:$0xff]
        %v793 = vld [vmem:[#allocation4 + $0xc00] sm:$0xff]
        %v794 = vld [vmem:[#allocation4 + $0xc08] sm:$0xff]
        %v795 = vld [vmem:[#allocation4 + $0xc10] sm:$0xff]
        %v796 = vld [vmem:[#allocation4 + $0xc18] sm:$0xff]
        %v797 = vld [vmem:[#allocation4 + $0xc20] sm:$0xff]
        %v798 = vld [vmem:[#allocation4 + $0xc28] sm:$0xff]
        %v799 = vld [vmem:[#allocation4 + $0xc30] sm:$0xff]
        %v800 = vld [vmem:[#allocation4 + $0xc38] sm:$0xff]
        %v801 = vld [vmem:[#allocation4 + $0xc40] sm:$0xff]
        %v802 = vld [vmem:[#allocation4 + $0xc48] sm:$0xff]
        %v803 = vld [vmem:[#allocation4 + $0xc50] sm:$0xff]
        %v804 = vld [vmem:[#allocation4 + $0xc58] sm:$0xff]
        %v805 = vld [vmem:[#allocation4 + $0xc60] sm:$0xff]
        %v806 = vld [vmem:[#allocation4 + $0xc68] sm:$0xff]
        %v807 = vld [vmem:[#allocation4 + $0xc70] sm:$0xff]
        %v808 = vld [vmem:[#allocation4 + $0xc78] sm:$0xff]
        %v809 = vld [vmem:[#allocation4 + $0xc80] sm:$0xff]
        %v810 = vld [vmem:[#allocation4 + $0xc88] sm:$0xff]
        %v811 = vld [vmem:[#allocation4 + $0xc90] sm:$0xff]
        %v812 = vld [vmem:[#allocation4 + $0xc98] sm:$0xff]
        %v813 = vld [vmem:[#allocation4 + $0xca0] sm:$0xff]
        %v814 = vld [vmem:[#allocation4 + $0xca8] sm:$0xff]
        %v815 = vld [vmem:[#allocation4 + $0xcb0] sm:$0xff]
        %v816 = vld [vmem:[#allocation4 + $0xcb8] sm:$0xff]
        %v817 = vld [vmem:[#allocation4 + $0xcc0] sm:$0xff]
        %v818 = vld [vmem:[#allocation4 + $0xcc8] sm:$0xff]
        %v819 = vld [vmem:[#allocation4 + $0xcd0] sm:$0xff]
        %v820 = vld [vmem:[#allocation4 + $0xcd8] sm:$0xff]
        %v821 = vld [vmem:[#allocation4 + $0xce0] sm:$0xff]
        %v822 = vld [vmem:[#allocation4 + $0xce8] sm:$0xff]
        %v823 = vld [vmem:[#allocation4 + $0xcf0] sm:$0xff]
        %v824 = vld [vmem:[#allocation4 + $0xcf8] sm:$0xff]
        %v825 = vld [vmem:[#allocation4 + $0xd00] sm:$0xff]
        %v826 = vld [vmem:[#allocation4 + $0xd08] sm:$0xff]
        %v827 = vld [vmem:[#allocation4 + $0xd10] sm:$0xff]
        %v828 = vld [vmem:[#allocation4 + $0xd18] sm:$0xff]
        %v829 = vld [vmem:[#allocation4 + $0xd20] sm:$0xff]
        %v830 = vld [vmem:[#allocation4 + $0xd28] sm:$0xff]
        %v831 = vld [vmem:[#allocation4 + $0xd30] sm:$0xff]
        %v832 = vld [vmem:[#allocation4 + $0xd38] sm:$0xff]
        %v833 = vld [vmem:[#allocation4 + $0xd40] sm:$0xff]
        %v834 = vld [vmem:[#allocation4 + $0xd48] sm:$0xff]
        %v835 = vld [vmem:[#allocation4 + $0xd50] sm:$0xff]
        %v836 = vld [vmem:[#allocation4 + $0xd58] sm:$0xff]
        %v837 = vld [vmem:[#allocation4 + $0xd60] sm:$0xff]
        %v838 = vld [vmem:[#allocation4 + $0xd68] sm:$0xff]
        %v839 = vld [vmem:[#allocation4 + $0xd70] sm:$0xff]
        %v840 = vld [vmem:[#allocation4 + $0xd78] sm:$0xff]
        %v841 = vld [vmem:[#allocation4 + $0xd80] sm:$0xff]
        %v842 = vld [vmem:[#allocation4 + $0xd88] sm:$0xff]
        %v843 = vld [vmem:[#allocation4 + $0xd90] sm:$0xff]
        %v844 = vld [vmem:[#allocation4 + $0xd98] sm:$0xff]
        %v845 = vld [vmem:[#allocation4 + $0xda0] sm:$0xff]
        %v846 = vld [vmem:[#allocation4 + $0xda8] sm:$0xff]
        %v847 = vld [vmem:[#allocation4 + $0xdb0] sm:$0xff]
        %v848 = vld [vmem:[#allocation4 + $0xdb8] sm:$0xff]
        %v849 = vld [vmem:[#allocation4 + $0xdc0] sm:$0xff]
        %v850 = vld [vmem:[#allocation4 + $0xdc8] sm:$0xff]
        %v851 = vld [vmem:[#allocation4 + $0xdd0] sm:$0xff]
        %v852 = vld [vmem:[#allocation4 + $0xdd8] sm:$0xff]
        %v853 = vld [vmem:[#allocation4 + $0xde0] sm:$0xff]
        %v854 = vld [vmem:[#allocation4 + $0xde8] sm:$0xff]
        %v855 = vld [vmem:[#allocation4 + $0xdf0] sm:$0xff]
        %v856 = vld [vmem:[#allocation4 + $0xdf8] sm:$0xff]
        %v857 = vld [vmem:[#allocation4 + $0xe00] sm:$0xff]
        %v858 = vld [vmem:[#allocation4 + $0xe08] sm:$0xff]
        %v859 = vld [vmem:[#allocation4 + $0xe10] sm:$0xff]
        %v860 = vld [vmem:[#allocation4 + $0xe18] sm:$0xff]
        %v861 = vld [vmem:[#allocation4 + $0xe20] sm:$0xff]
        %v862 = vld [vmem:[#allocation4 + $0xe28] sm:$0xff]
        %v863 = vld [vmem:[#allocation4 + $0xe30] sm:$0xff]
        %v864 = vld [vmem:[#allocation4 + $0xe38] sm:$0xff]
        %v865 = vld [vmem:[#allocation4 + $0xe40] sm:$0xff]
        %v866 = vld [vmem:[#allocation4 + $0xe48] sm:$0xff]
        %v867 = vld [vmem:[#allocation4 + $0xe50] sm:$0xff]
        %v868 = vld [vmem:[#allocation4 + $0xe58] sm:$0xff]
        %v869 = vld [vmem:[#allocation4 + $0xe60] sm:$0xff]
        %v870 = vld [vmem:[#allocation4 + $0xe68] sm:$0xff]
        %v871 = vld [vmem:[#allocation4 + $0xe70] sm:$0xff]
        %v872 = vld [vmem:[#allocation4 + $0xe78] sm:$0xff]
        %v873 = vld [vmem:[#allocation4 + $0xe80] sm:$0xff]
        %v874 = vld [vmem:[#allocation4 + $0xe88] sm:$0xff]
        %v875 = vld [vmem:[#allocation4 + $0xe90] sm:$0xff]
        %v876 = vld [vmem:[#allocation4 + $0xe98] sm:$0xff]
        %v877 = vld [vmem:[#allocation4 + $0xea0] sm:$0xff]
        %v878 = vld [vmem:[#allocation4 + $0xea8] sm:$0xff]
        %v879 = vld [vmem:[#allocation4 + $0xeb0] sm:$0xff]
        %v880 = vld [vmem:[#allocation4 + $0xeb8] sm:$0xff]
        %v881 = vld [vmem:[#allocation4 + $0xec0] sm:$0xff]
        %v882 = vld [vmem:[#allocation4 + $0xec8] sm:$0xff]
        %v883 = vld [vmem:[#allocation4 + $0xed0] sm:$0xff]
        %v884 = vld [vmem:[#allocation4 + $0xed8] sm:$0xff]
        %v885 = vld [vmem:[#allocation4 + $0xee0] sm:$0xff]
        %v886 = vld [vmem:[#allocation4 + $0xee8] sm:$0xff]
        %v887 = vld [vmem:[#allocation4 + $0xef0] sm:$0xff]
        %v888 = vld [vmem:[#allocation4 + $0xef8] sm:$0xff]
        %v889 = vld [vmem:[#allocation4 + $0xf00] sm:$0xff]
        %v890 = vld [vmem:[#allocation4 + $0xf08] sm:$0xff]
        %v891 = vld [vmem:[#allocation4 + $0xf10] sm:$0xff]
        %v892 = vld [vmem:[#allocation4 + $0xf18] sm:$0xff]
        %v893 = vld [vmem:[#allocation4 + $0xf20] sm:$0xff]
        %v894 = vld [vmem:[#allocation4 + $0xf28] sm:$0xff]
        %v895 = vld [vmem:[#allocation4 + $0xf30] sm:$0xff]
        %v896 = vld [vmem:[#allocation4 + $0xf38] sm:$0xff]
        %v897 = vld [vmem:[#allocation4 + $0xf40] sm:$0xff]
        %v898 = vld [vmem:[#allocation4 + $0xf48] sm:$0xff]
        %v899 = vld [vmem:[#allocation4 + $0xf50] sm:$0xff]
        %v900 = vld [vmem:[#allocation4 + $0xf58] sm:$0xff]
        %v901 = vld [vmem:[#allocation4 + $0xf60] sm:$0xff]
        %v902 = vld [vmem:[#allocation4 + $0xf68] sm:$0xff]
        %v903 = vld [vmem:[#allocation4 + $0xf70] sm:$0xff]
        %v904 = vld [vmem:[#allocation4 + $0xf78] sm:$0xff]
        %v905 = vld [vmem:[#allocation4 + $0xf80] sm:$0xff]
        %v906 = vld [vmem:[#allocation4 + $0xf88] sm:$0xff]
        %v907 = vld [vmem:[#allocation4 + $0xf90] sm:$0xff]
        %v908 = vld [vmem:[#allocation4 + $0xf98] sm:$0xff]
        %v909 = vld [vmem:[#allocation4 + $0xfa0] sm:$0xff]
        %v910 = vld [vmem:[#allocation4 + $0xfa8] sm:$0xff]
        %v911 = vld [vmem:[#allocation4 + $0xfb0] sm:$0xff]
        %v912 = vld [vmem:[#allocation4 + $0xfb8] sm:$0xff]
        %v913 = vld [vmem:[#allocation4 + $0xfc0] sm:$0xff]
        %v914 = vld [vmem:[#allocation4 + $0xfc8] sm:$0xff]
        %v915 = vld [vmem:[#allocation4 + $0xfd0] sm:$0xff]
        %v916 = vld [vmem:[#allocation4 + $0xfd8] sm:$0xff]
        %v917 = vld [vmem:[#allocation4 + $0xfe0] sm:$0xff]
        %v918 = vld [vmem:[#allocation4 + $0xfe8] sm:$0xff]
        %v919 = vld [vmem:[#allocation4 + $0xff0] sm:$0xff]
        %v920 = vld [vmem:[#allocation4 + $0xff8] sm:$0xff]
        %v921 = vld [vmem:[#allocation6] sm:$0xf]
        %v923 = vperm.slane %v921, 0
        %v924 = vperm.slane %v921, 1
        %v925 = vperm.slane %v921, 2
        %v926 = vperm.slane %v921, 3
        %931 = vmatpush.xpose.msra.mxu0 %v529
        %932 = vmatpush.xpose.msra.mxu0 %v521
        %933 = vmatpush.xpose.msra.mxu0 %v513
        %934 = vmatpush.xpose.msra.mxu0 %v505
        %935 = vmatpush.xpose.msra.mxu0 %v497
        %936 = vmatpush.xpose.msra.mxu0 %v489
        %937 = vmatpush.xpose.msra.mxu0 %v481
        %938 = vmatpush.xpose.msra.mxu0 %v473
        %939 = vmatpush.xpose.msra.mxu0 %v465
        %940 = vmatpush.xpose.msra.mxu0 %v457
        %941 = vmatpush.xpose.msra.mxu0 %v449
        %942 = vmatpush.xpose.msra.mxu0 %v441
        %943 = vmatpush.xpose.msra.mxu0 %v433
        %944 = vmatpush.xpose.msra.mxu0 %v425
        %945 = vmatpush.xpose.msra.mxu0 %v417
        %946 = vmatpush.xpose.msra.mxu0 %v409
        %947 = vmatmul.f32.gmra.mxu0 %v281
        %v948 = vpop.f32.mrf.mxu0
        %v949 = vadd.f32 %v923, %v948
        %950 = vmatmul.f32.gmra.mxu0 %v289
        %v951 = vpop.f32.mrf.mxu0
        %v952 = vadd.f32 %v923, %v951
        %953 = vmatmul.f32.gmra.mxu0 %v297
        %v954 = vpop.f32.mrf.mxu0
        %v955 = vadd.f32 %v923, %v954
        %956 = vmatmul.f32.gmra.mxu0 %v305
        %v957 = vpop.f32.mrf.mxu0
        %v958 = vadd.f32 %v923, %v957
        %959 = vmatmul.f32.gmra.mxu0 %v313
        %v960 = vpop.f32.mrf.mxu0
        %v961 = vadd.f32 %v923, %v960
        %962 = vmatmul.f32.gmra.mxu0 %v321
        %v963 = vpop.f32.mrf.mxu0
        %v964 = vadd.f32 %v923, %v963
        %965 = vmatmul.f32.gmra.mxu0 %v329
        %v966 = vpop.f32.mrf.mxu0
        %v967 = vadd.f32 %v923, %v966
        %968 = vmatmul.f32.gmra.mxu0 %v337
        %v969 = vpop.f32.mrf.mxu0
        %v970 = vadd.f32 %v923, %v969
        %971 = vmatmul.f32.gmra.mxu0 %v345
        %v972 = vpop.f32.mrf.mxu0
        %v973 = vadd.f32 %v923, %v972
        %974 = vmatmul.f32.gmra.mxu0 %v353
        %v975 = vpop.f32.mrf.mxu0
        %v976 = vadd.f32 %v923, %v975
        %977 = vmatmul.f32.gmra.mxu0 %v361
        %v978 = vpop.f32.mrf.mxu0
        %v979 = vadd.f32 %v923, %v978
        %980 = vmatmul.f32.gmra.mxu0 %v369
        %v981 = vpop.f32.mrf.mxu0
        %v982 = vadd.f32 %v923, %v981
        %983 = vmatmul.f32.gmra.mxu0 %v377
        %v984 = vpop.f32.mrf.mxu0
        %v985 = vadd.f32 %v923, %v984
        %986 = vmatmul.f32.gmra.mxu0 %v385
        %v987 = vpop.f32.mrf.mxu0
        %v988 = vadd.f32 %v923, %v987
        %989 = vmatmul.f32.gmra.mxu0 %v393
        %v990 = vpop.f32.mrf.mxu0
        %v991 = vadd.f32 %v923, %v990
        %992 = vmatmul.f32.gmra.mxu0 %v401
        %v993 = vpop.f32.mrf.mxu0
        %v994 = vadd.f32 %v923, %v993
        %995 = vdwg.mxu0
        %996 = vmatpush.xpose.msra.mxu0 %v530
        %997 = vmatpush.xpose.msra.mxu0 %v522
        %998 = vmatpush.xpose.msra.mxu0 %v514
        %999 = vmatpush.xpose.msra.mxu0 %v506
        %1000 = vmatpush.xpose.msra.mxu0 %v498
        %1001 = vmatpush.xpose.msra.mxu0 %v490
        %1002 = vmatpush.xpose.msra.mxu0 %v482
        %1003 = vmatpush.xpose.msra.mxu0 %v474
        %1004 = vmatpush.xpose.msra.mxu0 %v466
        %1005 = vmatpush.xpose.msra.mxu0 %v458
        %1006 = vmatpush.xpose.msra.mxu0 %v450
        %1007 = vmatpush.xpose.msra.mxu0 %v442
        %1008 = vmatpush.xpose.msra.mxu0 %v434
        %1009 = vmatpush.xpose.msra.mxu0 %v426
        %1010 = vmatpush.xpose.msra.mxu0 %v418
        %1011 = vmatpush.xpose.msra.mxu0 %v410
        %1012 = vmatmul.f32.gmra.mxu0 %v282
        %v1013 = vpop.f32.mrf.mxu0
        %v1014 = vadd.f32 %v949, %v1013
        %1015 = vmatmul.f32.gmra.mxu0 %v290
        %v1016 = vpop.f32.mrf.mxu0
        %v1017 = vadd.f32 %v952, %v1016
        %1018 = vmatmul.f32.gmra.mxu0 %v298
        %v1019 = vpop.f32.mrf.mxu0
        %v1020 = vadd.f32 %v955, %v1019
        %1021 = vmatmul.f32.gmra.mxu0 %v306
        %v1022 = vpop.f32.mrf.mxu0
        %v1023 = vadd.f32 %v958, %v1022
        %1024 = vmatmul.f32.gmra.mxu0 %v314
        %v1025 = vpop.f32.mrf.mxu0
        %v1026 = vadd.f32 %v961, %v1025
        %1027 = vmatmul.f32.gmra.mxu0 %v322
        %v1028 = vpop.f32.mrf.mxu0
        %v1029 = vadd.f32 %v964, %v1028
        %1030 = vmatmul.f32.gmra.mxu0 %v330
        %v1031 = vpop.f32.mrf.mxu0
        %v1032 = vadd.f32 %v967, %v1031
        %1033 = vmatmul.f32.gmra.mxu0 %v338
        %v1034 = vpop.f32.mrf.mxu0
        %v1035 = vadd.f32 %v970, %v1034
        %1036 = vmatmul.f32.gmra.mxu0 %v346
        %v1037 = vpop.f32.mrf.mxu0
        %v1038 = vadd.f32 %v973, %v1037
        %1039 = vmatmul.f32.gmra.mxu0 %v354
        %v1040 = vpop.f32.mrf.mxu0
        %v1041 = vadd.f32 %v976, %v1040
        %1042 = vmatmul.f32.gmra.mxu0 %v362
        %v1043 = vpop.f32.mrf.mxu0
        %v1044 = vadd.f32 %v979, %v1043
        %1045 = vmatmul.f32.gmra.mxu0 %v370
        %v1046 = vpop.f32.mrf.mxu0
        %v1047 = vadd.f32 %v982, %v1046
        %1048 = vmatmul.f32.gmra.mxu0 %v378
        %v1049 = vpop.f32.mrf.mxu0
        %v1050 = vadd.f32 %v985, %v1049
        %1051 = vmatmul.f32.gmra.mxu0 %v386
        %v1052 = vpop.f32.mrf.mxu0
        %v1053 = vadd.f32 %v988, %v1052
        %1054 = vmatmul.f32.gmra.mxu0 %v394
        %v1055 = vpop.f32.mrf.mxu0
        %v1056 = vadd.f32 %v991, %v1055
        %1057 = vmatmul.f32.gmra.mxu0 %v402
        %v1058 = vpop.f32.mrf.mxu0
        %v1059 = vadd.f32 %v994, %v1058
        %1060 = vdwg.mxu0
        %1061 = vmatpush.xpose.msra.mxu0 %v531
        %1062 = vmatpush.xpose.msra.mxu0 %v523
        %1063 = vmatpush.xpose.msra.mxu0 %v515
        %1064 = vmatpush.xpose.msra.mxu0 %v507
        %1065 = vmatpush.xpose.msra.mxu0 %v499
        %1066 = vmatpush.xpose.msra.mxu0 %v491
        %1067 = vmatpush.xpose.msra.mxu0 %v483
        %1068 = vmatpush.xpose.msra.mxu0 %v475
        %1069 = vmatpush.xpose.msra.mxu0 %v467
        %1070 = vmatpush.xpose.msra.mxu0 %v459
        %1071 = vmatpush.xpose.msra.mxu0 %v451
        %1072 = vmatpush.xpose.msra.mxu0 %v443
        %1073 = vmatpush.xpose.msra.mxu0 %v435
        %1074 = vmatpush.xpose.msra.mxu0 %v427
        %1075 = vmatpush.xpose.msra.mxu0 %v419
        %1076 = vmatpush.xpose.msra.mxu0 %v411
        %1077 = vmatmul.f32.gmra.mxu0 %v283
        %v1078 = vpop.f32.mrf.mxu0
        %v1079 = vadd.f32 %v1014, %v1078
        %1080 = vmatmul.f32.gmra.mxu0 %v291
        %v1081 = vpop.f32.mrf.mxu0
        %v1082 = vadd.f32 %v1017, %v1081
        %1083 = vmatmul.f32.gmra.mxu0 %v299
        %v1084 = vpop.f32.mrf.mxu0
        %v1085 = vadd.f32 %v1020, %v1084
        %1086 = vmatmul.f32.gmra.mxu0 %v307
        %v1087 = vpop.f32.mrf.mxu0
        %v1088 = vadd.f32 %v1023, %v1087
        %1089 = vmatmul.f32.gmra.mxu0 %v315
        %v1090 = vpop.f32.mrf.mxu0
        %v1091 = vadd.f32 %v1026, %v1090
        %1092 = vmatmul.f32.gmra.mxu0 %v323
        %v1093 = vpop.f32.mrf.mxu0
        %v1094 = vadd.f32 %v1029, %v1093
        %1095 = vmatmul.f32.gmra.mxu0 %v331
        %v1096 = vpop.f32.mrf.mxu0
        %v1097 = vadd.f32 %v1032, %v1096
        %1098 = vmatmul.f32.gmra.mxu0 %v339
        %v1099 = vpop.f32.mrf.mxu0
        %v1100 = vadd.f32 %v1035, %v1099
        %1101 = vmatmul.f32.gmra.mxu0 %v347
        %v1102 = vpop.f32.mrf.mxu0
        %v1103 = vadd.f32 %v1038, %v1102
        %1104 = vmatmul.f32.gmra.mxu0 %v355
        %v1105 = vpop.f32.mrf.mxu0
        %v1106 = vadd.f32 %v1041, %v1105
        %1107 = vmatmul.f32.gmra.mxu0 %v363
        %v1108 = vpop.f32.mrf.mxu0
        %v1109 = vadd.f32 %v1044, %v1108
        %1110 = vmatmul.f32.gmra.mxu0 %v371
        %v1111 = vpop.f32.mrf.mxu0
        %v1112 = vadd.f32 %v1047, %v1111
        %1113 = vmatmul.f32.gmra.mxu0 %v379
        %v1114 = vpop.f32.mrf.mxu0
        %v1115 = vadd.f32 %v1050, %v1114
        %1116 = vmatmul.f32.gmra.mxu0 %v387
        %v1117 = vpop.f32.mrf.mxu0
        %v1118 = vadd.f32 %v1053, %v1117
        %1119 = vmatmul.f32.gmra.mxu0 %v395
        %v1120 = vpop.f32.mrf.mxu0
        %v1121 = vadd.f32 %v1056, %v1120
        %1122 = vmatmul.f32.gmra.mxu0 %v403
        %v1123 = vpop.f32.mrf.mxu0
        %v1124 = vadd.f32 %v1059, %v1123
        %1125 = vdwg.mxu0
        %1126 = vmatpush.xpose.msra.mxu0 %v532
        %1127 = vmatpush.xpose.msra.mxu0 %v524
        %1128 = vmatpush.xpose.msra.mxu0 %v516
        %1129 = vmatpush.xpose.msra.mxu0 %v508
        %1130 = vmatpush.xpose.msra.mxu0 %v500
        %1131 = vmatpush.xpose.msra.mxu0 %v492
        %1132 = vmatpush.xpose.msra.mxu0 %v484
        %1133 = vmatpush.xpose.msra.mxu0 %v476
        %1134 = vmatpush.xpose.msra.mxu0 %v468
        %1135 = vmatpush.xpose.msra.mxu0 %v460
        %1136 = vmatpush.xpose.msra.mxu0 %v452
        %1137 = vmatpush.xpose.msra.mxu0 %v444
        %1138 = vmatpush.xpose.msra.mxu0 %v436
        %1139 = vmatpush.xpose.msra.mxu0 %v428
        %1140 = vmatpush.xpose.msra.mxu0 %v420
        %1141 = vmatpush.xpose.msra.mxu0 %v412
        %1142 = vmatmul.f32.gmra.mxu0 %v284
        %v1143 = vpop.f32.mrf.mxu0
        %v1144 = vadd.f32 %v1079, %v1143
        %1145 = vmatmul.f32.gmra.mxu0 %v292
        %v1146 = vpop.f32.mrf.mxu0
        %v1147 = vadd.f32 %v1082, %v1146
        %1148 = vmatmul.f32.gmra.mxu0 %v300
        %v1149 = vpop.f32.mrf.mxu0
        %v1150 = vadd.f32 %v1085, %v1149
        %1151 = vmatmul.f32.gmra.mxu0 %v308
        %v1152 = vpop.f32.mrf.mxu0
        %v1153 = vadd.f32 %v1088, %v1152
        %1154 = vmatmul.f32.gmra.mxu0 %v316
        %v1155 = vpop.f32.mrf.mxu0
        %v1156 = vadd.f32 %v1091, %v1155
        %1157 = vmatmul.f32.gmra.mxu0 %v324
        %v1158 = vpop.f32.mrf.mxu0
        %v1159 = vadd.f32 %v1094, %v1158
        %1160 = vmatmul.f32.gmra.mxu0 %v332
        %v1161 = vpop.f32.mrf.mxu0
        %v1162 = vadd.f32 %v1097, %v1161
        %1163 = vmatmul.f32.gmra.mxu0 %v340
        %v1164 = vpop.f32.mrf.mxu0
        %v1165 = vadd.f32 %v1100, %v1164
        %1166 = vmatmul.f32.gmra.mxu0 %v348
        %v1167 = vpop.f32.mrf.mxu0
        %v1168 = vadd.f32 %v1103, %v1167
        %1169 = vmatmul.f32.gmra.mxu0 %v356
        %v1170 = vpop.f32.mrf.mxu0
        %v1171 = vadd.f32 %v1106, %v1170
        %1172 = vmatmul.f32.gmra.mxu0 %v364
        %v1173 = vpop.f32.mrf.mxu0
        %v1174 = vadd.f32 %v1109, %v1173
        %1175 = vmatmul.f32.gmra.mxu0 %v372
        %v1176 = vpop.f32.mrf.mxu0
        %v1177 = vadd.f32 %v1112, %v1176
        %1178 = vmatmul.f32.gmra.mxu0 %v380
        %v1179 = vpop.f32.mrf.mxu0
        %v1180 = vadd.f32 %v1115, %v1179
        %1181 = vmatmul.f32.gmra.mxu0 %v388
        %v1182 = vpop.f32.mrf.mxu0
        %v1183 = vadd.f32 %v1118, %v1182
        %1184 = vmatmul.f32.gmra.mxu0 %v396
        %v1185 = vpop.f32.mrf.mxu0
        %v1186 = vadd.f32 %v1121, %v1185
        %1187 = vmatmul.f32.gmra.mxu0 %v404
        %v1188 = vpop.f32.mrf.mxu0
        %v1189 = vadd.f32 %v1124, %v1188
        %1190 = vdwg.mxu0
        %1191 = vmatpush.xpose.msra.mxu0 %v533
        %1192 = vmatpush.xpose.msra.mxu0 %v525
        %1193 = vmatpush.xpose.msra.mxu0 %v517
        %1194 = vmatpush.xpose.msra.mxu0 %v509
        %1195 = vmatpush.xpose.msra.mxu0 %v501
        %1196 = vmatpush.xpose.msra.mxu0 %v493
        %1197 = vmatpush.xpose.msra.mxu0 %v485
        %1198 = vmatpush.xpose.msra.mxu0 %v477
        %1199 = vmatpush.xpose.msra.mxu0 %v469
        %1200 = vmatpush.xpose.msra.mxu0 %v461
        %1201 = vmatpush.xpose.msra.mxu0 %v453
        %1202 = vmatpush.xpose.msra.mxu0 %v445
        %1203 = vmatpush.xpose.msra.mxu0 %v437
        %1204 = vmatpush.xpose.msra.mxu0 %v429
        %1205 = vmatpush.xpose.msra.mxu0 %v421
        %1206 = vmatpush.xpose.msra.mxu0 %v413
        %1207 = vmatmul.f32.gmra.mxu0 %v285
        %v1208 = vpop.f32.mrf.mxu0
        %v1209 = vadd.f32 %v1144, %v1208
        %1210 = vmatmul.f32.gmra.mxu0 %v293
        %v1211 = vpop.f32.mrf.mxu0
        %v1212 = vadd.f32 %v1147, %v1211
        %1213 = vmatmul.f32.gmra.mxu0 %v301
        %v1214 = vpop.f32.mrf.mxu0
        %v1215 = vadd.f32 %v1150, %v1214
        %1216 = vmatmul.f32.gmra.mxu0 %v309
        %v1217 = vpop.f32.mrf.mxu0
        %v1218 = vadd.f32 %v1153, %v1217
        %1219 = vmatmul.f32.gmra.mxu0 %v317
        %v1220 = vpop.f32.mrf.mxu0
        %v1221 = vadd.f32 %v1156, %v1220
        %1222 = vmatmul.f32.gmra.mxu0 %v325
        %v1223 = vpop.f32.mrf.mxu0
        %v1224 = vadd.f32 %v1159, %v1223
        %1225 = vmatmul.f32.gmra.mxu0 %v333
        %v1226 = vpop.f32.mrf.mxu0
        %v1227 = vadd.f32 %v1162, %v1226
        %1228 = vmatmul.f32.gmra.mxu0 %v341
        %v1229 = vpop.f32.mrf.mxu0
        %v1230 = vadd.f32 %v1165, %v1229
        %1231 = vmatmul.f32.gmra.mxu0 %v349
        %v1232 = vpop.f32.mrf.mxu0
        %v1233 = vadd.f32 %v1168, %v1232
        %1234 = vmatmul.f32.gmra.mxu0 %v357
        %v1235 = vpop.f32.mrf.mxu0
        %v1236 = vadd.f32 %v1171, %v1235
        %1237 = vmatmul.f32.gmra.mxu0 %v365
        %v1238 = vpop.f32.mrf.mxu0
        %v1239 = vadd.f32 %v1174, %v1238
        %1240 = vmatmul.f32.gmra.mxu0 %v373
        %v1241 = vpop.f32.mrf.mxu0
        %v1242 = vadd.f32 %v1177, %v1241
        %1243 = vmatmul.f32.gmra.mxu0 %v381
        %v1244 = vpop.f32.mrf.mxu0
        %v1245 = vadd.f32 %v1180, %v1244
        %1246 = vmatmul.f32.gmra.mxu0 %v389
        %v1247 = vpop.f32.mrf.mxu0
        %v1248 = vadd.f32 %v1183, %v1247
        %1249 = vmatmul.f32.gmra.mxu0 %v397
        %v1250 = vpop.f32.mrf.mxu0
        %v1251 = vadd.f32 %v1186, %v1250
        %1252 = vmatmul.f32.gmra.mxu0 %v405
        %v1253 = vpop.f32.mrf.mxu0
        %v1254 = vadd.f32 %v1189, %v1253
        %1255 = vdwg.mxu0
        %1256 = vmatpush.xpose.msra.mxu0 %v534
        %1257 = vmatpush.xpose.msra.mxu0 %v526
        %1258 = vmatpush.xpose.msra.mxu0 %v518
        %1259 = vmatpush.xpose.msra.mxu0 %v510
        %1260 = vmatpush.xpose.msra.mxu0 %v502
        %1261 = vmatpush.xpose.msra.mxu0 %v494
        %1262 = vmatpush.xpose.msra.mxu0 %v486
        %1263 = vmatpush.xpose.msra.mxu0 %v478
        %1264 = vmatpush.xpose.msra.mxu0 %v470
        %1265 = vmatpush.xpose.msra.mxu0 %v462
        %1266 = vmatpush.xpose.msra.mxu0 %v454
        %1267 = vmatpush.xpose.msra.mxu0 %v446
        %1268 = vmatpush.xpose.msra.mxu0 %v438
        %1269 = vmatpush.xpose.msra.mxu0 %v430
        %1270 = vmatpush.xpose.msra.mxu0 %v422
        %1271 = vmatpush.xpose.msra.mxu0 %v414
        %1272 = vmatmul.f32.gmra.mxu0 %v286
        %v1273 = vpop.f32.mrf.mxu0
        %v1274 = vadd.f32 %v1209, %v1273
        %1275 = vmatmul.f32.gmra.mxu0 %v294
        %v1276 = vpop.f32.mrf.mxu0
        %v1277 = vadd.f32 %v1212, %v1276
        %1278 = vmatmul.f32.gmra.mxu0 %v302
        %v1279 = vpop.f32.mrf.mxu0
        %v1280 = vadd.f32 %v1215, %v1279
        %1281 = vmatmul.f32.gmra.mxu0 %v310
        %v1282 = vpop.f32.mrf.mxu0
        %v1283 = vadd.f32 %v1218, %v1282
        %1284 = vmatmul.f32.gmra.mxu0 %v318
        %v1285 = vpop.f32.mrf.mxu0
        %v1286 = vadd.f32 %v1221, %v1285
        %1287 = vmatmul.f32.gmra.mxu0 %v326
        %v1288 = vpop.f32.mrf.mxu0
        %v1289 = vadd.f32 %v1224, %v1288
        %1290 = vmatmul.f32.gmra.mxu0 %v334
        %v1291 = vpop.f32.mrf.mxu0
        %v1292 = vadd.f32 %v1227, %v1291
        %1293 = vmatmul.f32.gmra.mxu0 %v342
        %v1294 = vpop.f32.mrf.mxu0
        %v1295 = vadd.f32 %v1230, %v1294
        %1296 = vmatmul.f32.gmra.mxu0 %v350
        %v1297 = vpop.f32.mrf.mxu0
        %v1298 = vadd.f32 %v1233, %v1297
        %1299 = vmatmul.f32.gmra.mxu0 %v358
        %v1300 = vpop.f32.mrf.mxu0
        %v1301 = vadd.f32 %v1236, %v1300
        %1302 = vmatmul.f32.gmra.mxu0 %v366
        %v1303 = vpop.f32.mrf.mxu0
        %v1304 = vadd.f32 %v1239, %v1303
        %1305 = vmatmul.f32.gmra.mxu0 %v374
        %v1306 = vpop.f32.mrf.mxu0
        %v1307 = vadd.f32 %v1242, %v1306
        %1308 = vmatmul.f32.gmra.mxu0 %v382
        %v1309 = vpop.f32.mrf.mxu0
        %v1310 = vadd.f32 %v1245, %v1309
        %1311 = vmatmul.f32.gmra.mxu0 %v390
        %v1312 = vpop.f32.mrf.mxu0
        %v1313 = vadd.f32 %v1248, %v1312
        %1314 = vmatmul.f32.gmra.mxu0 %v398
        %v1315 = vpop.f32.mrf.mxu0
        %v1316 = vadd.f32 %v1251, %v1315
        %1317 = vmatmul.f32.gmra.mxu0 %v406
        %v1318 = vpop.f32.mrf.mxu0
        %v1319 = vadd.f32 %v1254, %v1318
        %1320 = vdwg.mxu0
        %1321 = vmatpush.xpose.msra.mxu0 %v535
        %1322 = vmatpush.xpose.msra.mxu0 %v527
        %1323 = vmatpush.xpose.msra.mxu0 %v519
        %1324 = vmatpush.xpose.msra.mxu0 %v511
        %1325 = vmatpush.xpose.msra.mxu0 %v503
        %1326 = vmatpush.xpose.msra.mxu0 %v495
        %1327 = vmatpush.xpose.msra.mxu0 %v487
        %1328 = vmatpush.xpose.msra.mxu0 %v479
        %1329 = vmatpush.xpose.msra.mxu0 %v471
        %1330 = vmatpush.xpose.msra.mxu0 %v463
        %1331 = vmatpush.xpose.msra.mxu0 %v455
        %1332 = vmatpush.xpose.msra.mxu0 %v447
        %1333 = vmatpush.xpose.msra.mxu0 %v439
        %1334 = vmatpush.xpose.msra.mxu0 %v431
        %1335 = vmatpush.xpose.msra.mxu0 %v423
        %1336 = vmatpush.xpose.msra.mxu0 %v415
        %1337 = vmatmul.f32.gmra.mxu0 %v287
        %v1338 = vpop.f32.mrf.mxu0
        %v1339 = vadd.f32 %v1274, %v1338
        %1340 = vmatmul.f32.gmra.mxu0 %v295
        %v1341 = vpop.f32.mrf.mxu0
        %v1342 = vadd.f32 %v1277, %v1341
        %1343 = vmatmul.f32.gmra.mxu0 %v303
        %v1344 = vpop.f32.mrf.mxu0
        %v1345 = vadd.f32 %v1280, %v1344
        %1346 = vmatmul.f32.gmra.mxu0 %v311
        %v1347 = vpop.f32.mrf.mxu0
        %v1348 = vadd.f32 %v1283, %v1347
        %1349 = vmatmul.f32.gmra.mxu0 %v319
        %v1350 = vpop.f32.mrf.mxu0
        %v1351 = vadd.f32 %v1286, %v1350
        %1352 = vmatmul.f32.gmra.mxu0 %v327
        %v1353 = vpop.f32.mrf.mxu0
        %v1354 = vadd.f32 %v1289, %v1353
        %1355 = vmatmul.f32.gmra.mxu0 %v335
        %v1356 = vpop.f32.mrf.mxu0
        %v1357 = vadd.f32 %v1292, %v1356
        %1358 = vmatmul.f32.gmra.mxu0 %v343
        %v1359 = vpop.f32.mrf.mxu0
        %v1360 = vadd.f32 %v1295, %v1359
        %1361 = vmatmul.f32.gmra.mxu0 %v351
        %v1362 = vpop.f32.mrf.mxu0
        %v1363 = vadd.f32 %v1298, %v1362
        %1364 = vmatmul.f32.gmra.mxu0 %v359
        %v1365 = vpop.f32.mrf.mxu0
        %v1366 = vadd.f32 %v1301, %v1365
        %1367 = vmatmul.f32.gmra.mxu0 %v367
        %v1368 = vpop.f32.mrf.mxu0
        %v1369 = vadd.f32 %v1304, %v1368
        %1370 = vmatmul.f32.gmra.mxu0 %v375
        %v1371 = vpop.f32.mrf.mxu0
        %v1372 = vadd.f32 %v1307, %v1371
        %1373 = vmatmul.f32.gmra.mxu0 %v383
        %v1374 = vpop.f32.mrf.mxu0
        %v1375 = vadd.f32 %v1310, %v1374
        %1376 = vmatmul.f32.gmra.mxu0 %v391
        %v1377 = vpop.f32.mrf.mxu0
        %v1378 = vadd.f32 %v1313, %v1377
        %1379 = vmatmul.f32.gmra.mxu0 %v399
        %v1380 = vpop.f32.mrf.mxu0
        %v1381 = vadd.f32 %v1316, %v1380
        %1382 = vmatmul.f32.gmra.mxu0 %v407
        %v1383 = vpop.f32.mrf.mxu0
        %v1384 = vadd.f32 %v1319, %v1383
        %1385 = vdwg.mxu0
        %1386 = vmatpush.xpose.msra.mxu0 %v536
        %1387 = vmatpush.xpose.msra.mxu0 %v528
        %1388 = vmatpush.xpose.msra.mxu0 %v520
        %1389 = vmatpush.xpose.msra.mxu0 %v512
        %1390 = vmatpush.xpose.msra.mxu0 %v504
        %1391 = vmatpush.xpose.msra.mxu0 %v496
        %1392 = vmatpush.xpose.msra.mxu0 %v488
        %1393 = vmatpush.xpose.msra.mxu0 %v480
        %1394 = vmatpush.xpose.msra.mxu0 %v472
        %1395 = vmatpush.xpose.msra.mxu0 %v464
        %1396 = vmatpush.xpose.msra.mxu0 %v456
        %1397 = vmatpush.xpose.msra.mxu0 %v448
        %1398 = vmatpush.xpose.msra.mxu0 %v440
        %1399 = vmatpush.xpose.msra.mxu0 %v432
        %1400 = vmatpush.xpose.msra.mxu0 %v424
        %1401 = vmatpush.xpose.msra.mxu0 %v416
        %1402 = vmatmul.f32.gmra.mxu0 %v288
        %v1403 = vpop.f32.mrf.mxu0
        %v1404 = vadd.f32 %v1339, %v1403
        %1405 = vmatmul.f32.gmra.mxu0 %v296
        %v1406 = vpop.f32.mrf.mxu0
        %v1407 = vadd.f32 %v1342, %v1406
        %1408 = vmatmul.f32.gmra.mxu0 %v304
        %v1409 = vpop.f32.mrf.mxu0
        %v1410 = vadd.f32 %v1345, %v1409
        %1411 = vmatmul.f32.gmra.mxu0 %v312
        %v1412 = vpop.f32.mrf.mxu0
        %v1413 = vadd.f32 %v1348, %v1412
        %1414 = vmatmul.f32.gmra.mxu0 %v320
        %v1415 = vpop.f32.mrf.mxu0
        %v1416 = vadd.f32 %v1351, %v1415
        %1417 = vmatmul.f32.gmra.mxu0 %v328
        %v1418 = vpop.f32.mrf.mxu0
        %v1419 = vadd.f32 %v1354, %v1418
        %1420 = vmatmul.f32.gmra.mxu0 %v336
        %v1421 = vpop.f32.mrf.mxu0
        %v1422 = vadd.f32 %v1357, %v1421
        %1423 = vmatmul.f32.gmra.mxu0 %v344
        %v1424 = vpop.f32.mrf.mxu0
        %v1425 = vadd.f32 %v1360, %v1424
        %1426 = vmatmul.f32.gmra.mxu0 %v352
        %v1427 = vpop.f32.mrf.mxu0
        %v1428 = vadd.f32 %v1363, %v1427
        %1429 = vmatmul.f32.gmra.mxu0 %v360
        %v1430 = vpop.f32.mrf.mxu0
        %v1431 = vadd.f32 %v1366, %v1430
        %1432 = vmatmul.f32.gmra.mxu0 %v368
        %v1433 = vpop.f32.mrf.mxu0
        %v1434 = vadd.f32 %v1369, %v1433
        %1435 = vmatmul.f32.gmra.mxu0 %v376
        %v1436 = vpop.f32.mrf.mxu0
        %v1437 = vadd.f32 %v1372, %v1436
        %1438 = vmatmul.f32.gmra.mxu0 %v384
        %v1439 = vpop.f32.mrf.mxu0
        %v1440 = vadd.f32 %v1375, %v1439
        %1441 = vmatmul.f32.gmra.mxu0 %v392
        %v1442 = vpop.f32.mrf.mxu0
        %v1443 = vadd.f32 %v1378, %v1442
        %1444 = vmatmul.f32.gmra.mxu0 %v400
        %v1445 = vpop.f32.mrf.mxu0
        %v1446 = vadd.f32 %v1381, %v1445
        %1447 = vmatmul.f32.gmra.mxu0 %v408
        %v1448 = vpop.f32.mrf.mxu0
        %v1449 = vadd.f32 %v1384, %v1448
        %1450 = vdwg.mxu0
        %1451 = vmatpush.xpose.msra.mxu0 %v657
        %1452 = vmatpush.xpose.msra.mxu0 %v649
        %1453 = vmatpush.xpose.msra.mxu0 %v641
        %1454 = vmatpush.xpose.msra.mxu0 %v633
        %1455 = vmatpush.xpose.msra.mxu0 %v625
        %1456 = vmatpush.xpose.msra.mxu0 %v617
        %1457 = vmatpush.xpose.msra.mxu0 %v609
        %1458 = vmatpush.xpose.msra.mxu0 %v601
        %1459 = vmatpush.xpose.msra.mxu0 %v593
        %1460 = vmatpush.xpose.msra.mxu0 %v585
        %1461 = vmatpush.xpose.msra.mxu0 %v577
        %1462 = vmatpush.xpose.msra.mxu0 %v569
        %1463 = vmatpush.xpose.msra.mxu0 %v561
        %1464 = vmatpush.xpose.msra.mxu0 %v553
        %1465 = vmatpush.xpose.msra.mxu0 %v545
        %1466 = vmatpush.xpose.msra.mxu0 %v537
        %1467 = vmatmul.f32.gmra.mxu0 %v281
        %v1468 = vpop.f32.mrf.mxu0
        %v1469 = vadd.f32 %v924, %v1468
        %1470 = vmatmul.f32.gmra.mxu0 %v289
        %v1471 = vpop.f32.mrf.mxu0
        %v1472 = vadd.f32 %v924, %v1471
        %1473 = vmatmul.f32.gmra.mxu0 %v297
        %v1474 = vpop.f32.mrf.mxu0
        %v1475 = vadd.f32 %v924, %v1474
        %1476 = vmatmul.f32.gmra.mxu0 %v305
        %v1477 = vpop.f32.mrf.mxu0
        %v1478 = vadd.f32 %v924, %v1477
        %1479 = vmatmul.f32.gmra.mxu0 %v313
        %v1480 = vpop.f32.mrf.mxu0
        %v1481 = vadd.f32 %v924, %v1480
        %1482 = vmatmul.f32.gmra.mxu0 %v321
        %v1483 = vpop.f32.mrf.mxu0
        %v1484 = vadd.f32 %v924, %v1483
        %1485 = vmatmul.f32.gmra.mxu0 %v329
        %v1486 = vpop.f32.mrf.mxu0
        %v1487 = vadd.f32 %v924, %v1486
        %1488 = vmatmul.f32.gmra.mxu0 %v337
        %v1489 = vpop.f32.mrf.mxu0
        %v1490 = vadd.f32 %v924, %v1489
        %1491 = vmatmul.f32.gmra.mxu0 %v345
        %v1492 = vpop.f32.mrf.mxu0
        %v1493 = vadd.f32 %v924, %v1492
        %1494 = vmatmul.f32.gmra.mxu0 %v353
        %v1495 = vpop.f32.mrf.mxu0
        %v1496 = vadd.f32 %v924, %v1495
        %1497 = vmatmul.f32.gmra.mxu0 %v361
        %v1498 = vpop.f32.mrf.mxu0
        %v1499 = vadd.f32 %v924, %v1498
        %1500 = vmatmul.f32.gmra.mxu0 %v369
        %v1501 = vpop.f32.mrf.mxu0
        %v1502 = vadd.f32 %v924, %v1501
        %1503 = vmatmul.f32.gmra.mxu0 %v377
        %v1504 = vpop.f32.mrf.mxu0
        %v1505 = vadd.f32 %v924, %v1504
        %1506 = vmatmul.f32.gmra.mxu0 %v385
        %v1507 = vpop.f32.mrf.mxu0
        %v1508 = vadd.f32 %v924, %v1507
        %1509 = vmatmul.f32.gmra.mxu0 %v393
        %v1510 = vpop.f32.mrf.mxu0
        %v1511 = vadd.f32 %v924, %v1510
        %1512 = vmatmul.f32.gmra.mxu0 %v401
        %v1513 = vpop.f32.mrf.mxu0
        %v1514 = vadd.f32 %v924, %v1513
        %1515 = vdwg.mxu0
        %1516 = vmatpush.xpose.msra.mxu0 %v658
        %1517 = vmatpush.xpose.msra.mxu0 %v650
        %1518 = vmatpush.xpose.msra.mxu0 %v642
        %1519 = vmatpush.xpose.msra.mxu0 %v634
        %1520 = vmatpush.xpose.msra.mxu0 %v626
        %1521 = vmatpush.xpose.msra.mxu0 %v618
        %1522 = vmatpush.xpose.msra.mxu0 %v610
        %1523 = vmatpush.xpose.msra.mxu0 %v602
        %1524 = vmatpush.xpose.msra.mxu0 %v594
        %1525 = vmatpush.xpose.msra.mxu0 %v586
        %1526 = vmatpush.xpose.msra.mxu0 %v578
        %1527 = vmatpush.xpose.msra.mxu0 %v570
        %1528 = vmatpush.xpose.msra.mxu0 %v562
        %1529 = vmatpush.xpose.msra.mxu0 %v554
        %1530 = vmatpush.xpose.msra.mxu0 %v546
        %1531 = vmatpush.xpose.msra.mxu0 %v538
        %1532 = vmatmul.f32.gmra.mxu0 %v282
        %v1533 = vpop.f32.mrf.mxu0
        %v1534 = vadd.f32 %v1469, %v1533
        %1535 = vmatmul.f32.gmra.mxu0 %v290
        %v1536 = vpop.f32.mrf.mxu0
        %v1537 = vadd.f32 %v1472, %v1536
        %1538 = vmatmul.f32.gmra.mxu0 %v298
        %v1539 = vpop.f32.mrf.mxu0
        %v1540 = vadd.f32 %v1475, %v1539
        %1541 = vmatmul.f32.gmra.mxu0 %v306
        %v1542 = vpop.f32.mrf.mxu0
        %v1543 = vadd.f32 %v1478, %v1542
        %1544 = vmatmul.f32.gmra.mxu0 %v314
        %v1545 = vpop.f32.mrf.mxu0
        %v1546 = vadd.f32 %v1481, %v1545
        %1547 = vmatmul.f32.gmra.mxu0 %v322
        %v1548 = vpop.f32.mrf.mxu0
        %v1549 = vadd.f32 %v1484, %v1548
        %1550 = vmatmul.f32.gmra.mxu0 %v330
        %v1551 = vpop.f32.mrf.mxu0
        %v1552 = vadd.f32 %v1487, %v1551
        %1553 = vmatmul.f32.gmra.mxu0 %v338
        %v1554 = vpop.f32.mrf.mxu0
        %v1555 = vadd.f32 %v1490, %v1554
        %1556 = vmatmul.f32.gmra.mxu0 %v346
        %v1557 = vpop.f32.mrf.mxu0
        %v1558 = vadd.f32 %v1493, %v1557
        %1559 = vmatmul.f32.gmra.mxu0 %v354
        %v1560 = vpop.f32.mrf.mxu0
        %v1561 = vadd.f32 %v1496, %v1560
        %1562 = vmatmul.f32.gmra.mxu0 %v362
        %v1563 = vpop.f32.mrf.mxu0
        %v1564 = vadd.f32 %v1499, %v1563
        %1565 = vmatmul.f32.gmra.mxu0 %v370
        %v1566 = vpop.f32.mrf.mxu0
        %v1567 = vadd.f32 %v1502, %v1566
        %1568 = vmatmul.f32.gmra.mxu0 %v378
        %v1569 = vpop.f32.mrf.mxu0
        %v1570 = vadd.f32 %v1505, %v1569
        %1571 = vmatmul.f32.gmra.mxu0 %v386
        %v1572 = vpop.f32.mrf.mxu0
        %v1573 = vadd.f32 %v1508, %v1572
        %1574 = vmatmul.f32.gmra.mxu0 %v394
        %v1575 = vpop.f32.mrf.mxu0
        %v1576 = vadd.f32 %v1511, %v1575
        %1577 = vmatmul.f32.gmra.mxu0 %v402
        %v1578 = vpop.f32.mrf.mxu0
        %v1579 = vadd.f32 %v1514, %v1578
        %1580 = vdwg.mxu0
        %1581 = vmatpush.xpose.msra.mxu0 %v659
        %1582 = vmatpush.xpose.msra.mxu0 %v651
        %1583 = vmatpush.xpose.msra.mxu0 %v643
        %1584 = vmatpush.xpose.msra.mxu0 %v635
        %1585 = vmatpush.xpose.msra.mxu0 %v627
        %1586 = vmatpush.xpose.msra.mxu0 %v619
        %1587 = vmatpush.xpose.msra.mxu0 %v611
        %1588 = vmatpush.xpose.msra.mxu0 %v603
        %1589 = vmatpush.xpose.msra.mxu0 %v595
        %1590 = vmatpush.xpose.msra.mxu0 %v587
        %1591 = vmatpush.xpose.msra.mxu0 %v579
        %1592 = vmatpush.xpose.msra.mxu0 %v571
        %1593 = vmatpush.xpose.msra.mxu0 %v563
        %1594 = vmatpush.xpose.msra.mxu0 %v555
        %1595 = vmatpush.xpose.msra.mxu0 %v547
        %1596 = vmatpush.xpose.msra.mxu0 %v539
        %1597 = vmatmul.f32.gmra.mxu0 %v283
        %v1598 = vpop.f32.mrf.mxu0
        %v1599 = vadd.f32 %v1534, %v1598
        %1600 = vmatmul.f32.gmra.mxu0 %v291
        %v1601 = vpop.f32.mrf.mxu0
        %v1602 = vadd.f32 %v1537, %v1601
        %1603 = vmatmul.f32.gmra.mxu0 %v299
        %v1604 = vpop.f32.mrf.mxu0
        %v1605 = vadd.f32 %v1540, %v1604
        %1606 = vmatmul.f32.gmra.mxu0 %v307
        %v1607 = vpop.f32.mrf.mxu0
        %v1608 = vadd.f32 %v1543, %v1607
        %1609 = vmatmul.f32.gmra.mxu0 %v315
        %v1610 = vpop.f32.mrf.mxu0
        %v1611 = vadd.f32 %v1546, %v1610
        %1612 = vmatmul.f32.gmra.mxu0 %v323
        %v1613 = vpop.f32.mrf.mxu0
        %v1614 = vadd.f32 %v1549, %v1613
        %1615 = vmatmul.f32.gmra.mxu0 %v331
        %v1616 = vpop.f32.mrf.mxu0
        %v1617 = vadd.f32 %v1552, %v1616
        %1618 = vmatmul.f32.gmra.mxu0 %v339
        %v1619 = vpop.f32.mrf.mxu0
        %v1620 = vadd.f32 %v1555, %v1619
        %1621 = vmatmul.f32.gmra.mxu0 %v347
        %v1622 = vpop.f32.mrf.mxu0
        %v1623 = vadd.f32 %v1558, %v1622
        %1624 = vmatmul.f32.gmra.mxu0 %v355
        %v1625 = vpop.f32.mrf.mxu0
        %v1626 = vadd.f32 %v1561, %v1625
        %1627 = vmatmul.f32.gmra.mxu0 %v363
        %v1628 = vpop.f32.mrf.mxu0
        %v1629 = vadd.f32 %v1564, %v1628
        %1630 = vmatmul.f32.gmra.mxu0 %v371
        %v1631 = vpop.f32.mrf.mxu0
        %v1632 = vadd.f32 %v1567, %v1631
        %1633 = vmatmul.f32.gmra.mxu0 %v379
        %v1634 = vpop.f32.mrf.mxu0
        %v1635 = vadd.f32 %v1570, %v1634
        %1636 = vmatmul.f32.gmra.mxu0 %v387
        %v1637 = vpop.f32.mrf.mxu0
        %v1638 = vadd.f32 %v1573, %v1637
        %1639 = vmatmul.f32.gmra.mxu0 %v395
        %v1640 = vpop.f32.mrf.mxu0
        %v1641 = vadd.f32 %v1576, %v1640
        %1642 = vmatmul.f32.gmra.mxu0 %v403
        %v1643 = vpop.f32.mrf.mxu0
        %v1644 = vadd.f32 %v1579, %v1643
        %1645 = vdwg.mxu0
        %1646 = vmatpush.xpose.msra.mxu0 %v660
        %1647 = vmatpush.xpose.msra.mxu0 %v652
        %1648 = vmatpush.xpose.msra.mxu0 %v644
        %1649 = vmatpush.xpose.msra.mxu0 %v636
        %1650 = vmatpush.xpose.msra.mxu0 %v628
        %1651 = vmatpush.xpose.msra.mxu0 %v620
        %1652 = vmatpush.xpose.msra.mxu0 %v612
        %1653 = vmatpush.xpose.msra.mxu0 %v604
        %1654 = vmatpush.xpose.msra.mxu0 %v596
        %1655 = vmatpush.xpose.msra.mxu0 %v588
        %1656 = vmatpush.xpose.msra.mxu0 %v580
        %1657 = vmatpush.xpose.msra.mxu0 %v572
        %1658 = vmatpush.xpose.msra.mxu0 %v564
        %1659 = vmatpush.xpose.msra.mxu0 %v556
        %1660 = vmatpush.xpose.msra.mxu0 %v548
        %1661 = vmatpush.xpose.msra.mxu0 %v540
        %1662 = vmatmul.f32.gmra.mxu0 %v284
        %v1663 = vpop.f32.mrf.mxu0
        %v1664 = vadd.f32 %v1599, %v1663
        %1665 = vmatmul.f32.gmra.mxu0 %v292
        %v1666 = vpop.f32.mrf.mxu0
        %v1667 = vadd.f32 %v1602, %v1666
        %1668 = vmatmul.f32.gmra.mxu0 %v300
        %v1669 = vpop.f32.mrf.mxu0
        %v1670 = vadd.f32 %v1605, %v1669
        %1671 = vmatmul.f32.gmra.mxu0 %v308
        %v1672 = vpop.f32.mrf.mxu0
        %v1673 = vadd.f32 %v1608, %v1672
        %1674 = vmatmul.f32.gmra.mxu0 %v316
        %v1675 = vpop.f32.mrf.mxu0
        %v1676 = vadd.f32 %v1611, %v1675
        %1677 = vmatmul.f32.gmra.mxu0 %v324
        %v1678 = vpop.f32.mrf.mxu0
        %v1679 = vadd.f32 %v1614, %v1678
        %1680 = vmatmul.f32.gmra.mxu0 %v332
        %v1681 = vpop.f32.mrf.mxu0
        %v1682 = vadd.f32 %v1617, %v1681
        %1683 = vmatmul.f32.gmra.mxu0 %v340
        %v1684 = vpop.f32.mrf.mxu0
        %v1685 = vadd.f32 %v1620, %v1684
        %1686 = vmatmul.f32.gmra.mxu0 %v348
        %v1687 = vpop.f32.mrf.mxu0
        %v1688 = vadd.f32 %v1623, %v1687
        %1689 = vmatmul.f32.gmra.mxu0 %v356
        %v1690 = vpop.f32.mrf.mxu0
        %v1691 = vadd.f32 %v1626, %v1690
        %1692 = vmatmul.f32.gmra.mxu0 %v364
        %v1693 = vpop.f32.mrf.mxu0
        %v1694 = vadd.f32 %v1629, %v1693
        %1695 = vmatmul.f32.gmra.mxu0 %v372
        %v1696 = vpop.f32.mrf.mxu0
        %v1697 = vadd.f32 %v1632, %v1696
        %1698 = vmatmul.f32.gmra.mxu0 %v380
        %v1699 = vpop.f32.mrf.mxu0
        %v1700 = vadd.f32 %v1635, %v1699
        %1701 = vmatmul.f32.gmra.mxu0 %v388
        %v1702 = vpop.f32.mrf.mxu0
        %v1703 = vadd.f32 %v1638, %v1702
        %1704 = vmatmul.f32.gmra.mxu0 %v396
        %v1705 = vpop.f32.mrf.mxu0
        %v1706 = vadd.f32 %v1641, %v1705
        %1707 = vmatmul.f32.gmra.mxu0 %v404
        %v1708 = vpop.f32.mrf.mxu0
        %v1709 = vadd.f32 %v1644, %v1708
        %1710 = vdwg.mxu0
        %1711 = vmatpush.xpose.msra.mxu0 %v661
        %1712 = vmatpush.xpose.msra.mxu0 %v653
        %1713 = vmatpush.xpose.msra.mxu0 %v645
        %1714 = vmatpush.xpose.msra.mxu0 %v637
        %1715 = vmatpush.xpose.msra.mxu0 %v629
        %1716 = vmatpush.xpose.msra.mxu0 %v621
        %1717 = vmatpush.xpose.msra.mxu0 %v613
        %1718 = vmatpush.xpose.msra.mxu0 %v605
        %1719 = vmatpush.xpose.msra.mxu0 %v597
        %1720 = vmatpush.xpose.msra.mxu0 %v589
        %1721 = vmatpush.xpose.msra.mxu0 %v581
        %1722 = vmatpush.xpose.msra.mxu0 %v573
        %1723 = vmatpush.xpose.msra.mxu0 %v565
        %1724 = vmatpush.xpose.msra.mxu0 %v557
        %1725 = vmatpush.xpose.msra.mxu0 %v549
        %1726 = vmatpush.xpose.msra.mxu0 %v541
        %1727 = vmatmul.f32.gmra.mxu0 %v285
        %v1728 = vpop.f32.mrf.mxu0
        %v1729 = vadd.f32 %v1664, %v1728
        %1730 = vmatmul.f32.gmra.mxu0 %v293
        %v1731 = vpop.f32.mrf.mxu0
        %v1732 = vadd.f32 %v1667, %v1731
        %1733 = vmatmul.f32.gmra.mxu0 %v301
        %v1734 = vpop.f32.mrf.mxu0
        %v1735 = vadd.f32 %v1670, %v1734
        %1736 = vmatmul.f32.gmra.mxu0 %v309
        %v1737 = vpop.f32.mrf.mxu0
        %v1738 = vadd.f32 %v1673, %v1737
        %1739 = vmatmul.f32.gmra.mxu0 %v317
        %v1740 = vpop.f32.mrf.mxu0
        %v1741 = vadd.f32 %v1676, %v1740
        %1742 = vmatmul.f32.gmra.mxu0 %v325
        %v1743 = vpop.f32.mrf.mxu0
        %v1744 = vadd.f32 %v1679, %v1743
        %1745 = vmatmul.f32.gmra.mxu0 %v333
        %v1746 = vpop.f32.mrf.mxu0
        %v1747 = vadd.f32 %v1682, %v1746
        %1748 = vmatmul.f32.gmra.mxu0 %v341
        %v1749 = vpop.f32.mrf.mxu0
        %v1750 = vadd.f32 %v1685, %v1749
        %1751 = vmatmul.f32.gmra.mxu0 %v349
        %v1752 = vpop.f32.mrf.mxu0
        %v1753 = vadd.f32 %v1688, %v1752
        %1754 = vmatmul.f32.gmra.mxu0 %v357
        %v1755 = vpop.f32.mrf.mxu0
        %v1756 = vadd.f32 %v1691, %v1755
        %1757 = vmatmul.f32.gmra.mxu0 %v365
        %v1758 = vpop.f32.mrf.mxu0
        %v1759 = vadd.f32 %v1694, %v1758
        %1760 = vmatmul.f32.gmra.mxu0 %v373
        %v1761 = vpop.f32.mrf.mxu0
        %v1762 = vadd.f32 %v1697, %v1761
        %1763 = vmatmul.f32.gmra.mxu0 %v381
        %v1764 = vpop.f32.mrf.mxu0
        %v1765 = vadd.f32 %v1700, %v1764
        %1766 = vmatmul.f32.gmra.mxu0 %v389
        %v1767 = vpop.f32.mrf.mxu0
        %v1768 = vadd.f32 %v1703, %v1767
        %1769 = vmatmul.f32.gmra.mxu0 %v397
        %v1770 = vpop.f32.mrf.mxu0
        %v1771 = vadd.f32 %v1706, %v1770
        %1772 = vmatmul.f32.gmra.mxu0 %v405
        %v1773 = vpop.f32.mrf.mxu0
        %v1774 = vadd.f32 %v1709, %v1773
        %1775 = vdwg.mxu0
        %1776 = vmatpush.xpose.msra.mxu0 %v662
        %1777 = vmatpush.xpose.msra.mxu0 %v654
        %1778 = vmatpush.xpose.msra.mxu0 %v646
        %1779 = vmatpush.xpose.msra.mxu0 %v638
        %1780 = vmatpush.xpose.msra.mxu0 %v630
        %1781 = vmatpush.xpose.msra.mxu0 %v622
        %1782 = vmatpush.xpose.msra.mxu0 %v614
        %1783 = vmatpush.xpose.msra.mxu0 %v606
        %1784 = vmatpush.xpose.msra.mxu0 %v598
        %1785 = vmatpush.xpose.msra.mxu0 %v590
        %1786 = vmatpush.xpose.msra.mxu0 %v582
        %1787 = vmatpush.xpose.msra.mxu0 %v574
        %1788 = vmatpush.xpose.msra.mxu0 %v566
        %1789 = vmatpush.xpose.msra.mxu0 %v558
        %1790 = vmatpush.xpose.msra.mxu0 %v550
        %1791 = vmatpush.xpose.msra.mxu0 %v542
        %1792 = vmatmul.f32.gmra.mxu0 %v286
        %v1793 = vpop.f32.mrf.mxu0
        %v1794 = vadd.f32 %v1729, %v1793
        %1795 = vmatmul.f32.gmra.mxu0 %v294
        %v1796 = vpop.f32.mrf.mxu0
        %v1797 = vadd.f32 %v1732, %v1796
        %1798 = vmatmul.f32.gmra.mxu0 %v302
        %v1799 = vpop.f32.mrf.mxu0
        %v1800 = vadd.f32 %v1735, %v1799
        %1801 = vmatmul.f32.gmra.mxu0 %v310
        %v1802 = vpop.f32.mrf.mxu0
        %v1803 = vadd.f32 %v1738, %v1802
        %1804 = vmatmul.f32.gmra.mxu0 %v318
        %v1805 = vpop.f32.mrf.mxu0
        %v1806 = vadd.f32 %v1741, %v1805
        %1807 = vmatmul.f32.gmra.mxu0 %v326
        %v1808 = vpop.f32.mrf.mxu0
        %v1809 = vadd.f32 %v1744, %v1808
        %1810 = vmatmul.f32.gmra.mxu0 %v334
        %v1811 = vpop.f32.mrf.mxu0
        %v1812 = vadd.f32 %v1747, %v1811
        %1813 = vmatmul.f32.gmra.mxu0 %v342
        %v1814 = vpop.f32.mrf.mxu0
        %v1815 = vadd.f32 %v1750, %v1814
        %1816 = vmatmul.f32.gmra.mxu0 %v350
        %v1817 = vpop.f32.mrf.mxu0
        %v1818 = vadd.f32 %v1753, %v1817
        %1819 = vmatmul.f32.gmra.mxu0 %v358
        %v1820 = vpop.f32.mrf.mxu0
        %v1821 = vadd.f32 %v1756, %v1820
        %1822 = vmatmul.f32.gmra.mxu0 %v366
        %v1823 = vpop.f32.mrf.mxu0
        %v1824 = vadd.f32 %v1759, %v1823
        %1825 = vmatmul.f32.gmra.mxu0 %v374
        %v1826 = vpop.f32.mrf.mxu0
        %v1827 = vadd.f32 %v1762, %v1826
        %1828 = vmatmul.f32.gmra.mxu0 %v382
        %v1829 = vpop.f32.mrf.mxu0
        %v1830 = vadd.f32 %v1765, %v1829
        %1831 = vmatmul.f32.gmra.mxu0 %v390
        %v1832 = vpop.f32.mrf.mxu0
        %v1833 = vadd.f32 %v1768, %v1832
        %1834 = vmatmul.f32.gmra.mxu0 %v398
        %v1835 = vpop.f32.mrf.mxu0
        %v1836 = vadd.f32 %v1771, %v1835
        %1837 = vmatmul.f32.gmra.mxu0 %v406
        %v1838 = vpop.f32.mrf.mxu0
        %v1839 = vadd.f32 %v1774, %v1838
        %1840 = vdwg.mxu0
        %1841 = vmatpush.xpose.msra.mxu0 %v663
        %1842 = vmatpush.xpose.msra.mxu0 %v655
        %1843 = vmatpush.xpose.msra.mxu0 %v647
        %1844 = vmatpush.xpose.msra.mxu0 %v639
        %1845 = vmatpush.xpose.msra.mxu0 %v631
        %1846 = vmatpush.xpose.msra.mxu0 %v623
        %1847 = vmatpush.xpose.msra.mxu0 %v615
        %1848 = vmatpush.xpose.msra.mxu0 %v607
        %1849 = vmatpush.xpose.msra.mxu0 %v599
        %1850 = vmatpush.xpose.msra.mxu0 %v591
        %1851 = vmatpush.xpose.msra.mxu0 %v583
        %1852 = vmatpush.xpose.msra.mxu0 %v575
        %1853 = vmatpush.xpose.msra.mxu0 %v567
        %1854 = vmatpush.xpose.msra.mxu0 %v559
        %1855 = vmatpush.xpose.msra.mxu0 %v551
        %1856 = vmatpush.xpose.msra.mxu0 %v543
        %1857 = vmatmul.f32.gmra.mxu0 %v287
        %v1858 = vpop.f32.mrf.mxu0
        %v1859 = vadd.f32 %v1794, %v1858
        %1860 = vmatmul.f32.gmra.mxu0 %v295
        %v1861 = vpop.f32.mrf.mxu0
        %v1862 = vadd.f32 %v1797, %v1861
        %1863 = vmatmul.f32.gmra.mxu0 %v303
        %v1864 = vpop.f32.mrf.mxu0
        %v1865 = vadd.f32 %v1800, %v1864
        %1866 = vmatmul.f32.gmra.mxu0 %v311
        %v1867 = vpop.f32.mrf.mxu0
        %v1868 = vadd.f32 %v1803, %v1867
        %1869 = vmatmul.f32.gmra.mxu0 %v319
        %v1870 = vpop.f32.mrf.mxu0
        %v1871 = vadd.f32 %v1806, %v1870
        %1872 = vmatmul.f32.gmra.mxu0 %v327
        %v1873 = vpop.f32.mrf.mxu0
        %v1874 = vadd.f32 %v1809, %v1873
        %1875 = vmatmul.f32.gmra.mxu0 %v335
        %v1876 = vpop.f32.mrf.mxu0
        %v1877 = vadd.f32 %v1812, %v1876
        %1878 = vmatmul.f32.gmra.mxu0 %v343
        %v1879 = vpop.f32.mrf.mxu0
        %v1880 = vadd.f32 %v1815, %v1879
        %1881 = vmatmul.f32.gmra.mxu0 %v351
        %v1882 = vpop.f32.mrf.mxu0
        %v1883 = vadd.f32 %v1818, %v1882
        %1884 = vmatmul.f32.gmra.mxu0 %v359
        %v1885 = vpop.f32.mrf.mxu0
        %v1886 = vadd.f32 %v1821, %v1885
        %1887 = vmatmul.f32.gmra.mxu0 %v367
        %v1888 = vpop.f32.mrf.mxu0
        %v1889 = vadd.f32 %v1824, %v1888
        %1890 = vmatmul.f32.gmra.mxu0 %v375
        %v1891 = vpop.f32.mrf.mxu0
        %v1892 = vadd.f32 %v1827, %v1891
        %1893 = vmatmul.f32.gmra.mxu0 %v383
        %v1894 = vpop.f32.mrf.mxu0
        %v1895 = vadd.f32 %v1830, %v1894
        %1896 = vmatmul.f32.gmra.mxu0 %v391
        %v1897 = vpop.f32.mrf.mxu0
        %v1898 = vadd.f32 %v1833, %v1897
        %1899 = vmatmul.f32.gmra.mxu0 %v399
        %v1900 = vpop.f32.mrf.mxu0
        %v1901 = vadd.f32 %v1836, %v1900
        %1902 = vmatmul.f32.gmra.mxu0 %v407
        %v1903 = vpop.f32.mrf.mxu0
        %v1904 = vadd.f32 %v1839, %v1903
        %1905 = vdwg.mxu0
        %1906 = vmatpush.xpose.msra.mxu0 %v664
        %1907 = vmatpush.xpose.msra.mxu0 %v656
        %1908 = vmatpush.xpose.msra.mxu0 %v648
        %1909 = vmatpush.xpose.msra.mxu0 %v640
        %1910 = vmatpush.xpose.msra.mxu0 %v632
        %1911 = vmatpush.xpose.msra.mxu0 %v624
        %1912 = vmatpush.xpose.msra.mxu0 %v616
        %1913 = vmatpush.xpose.msra.mxu0 %v608
        %1914 = vmatpush.xpose.msra.mxu0 %v600
        %1915 = vmatpush.xpose.msra.mxu0 %v592
        %1916 = vmatpush.xpose.msra.mxu0 %v584
        %1917 = vmatpush.xpose.msra.mxu0 %v576
        %1918 = vmatpush.xpose.msra.mxu0 %v568
        %1919 = vmatpush.xpose.msra.mxu0 %v560
        %1920 = vmatpush.xpose.msra.mxu0 %v552
        %1921 = vmatpush.xpose.msra.mxu0 %v544
        %1922 = vmatmul.f32.gmra.mxu0 %v288
        %v1923 = vpop.f32.mrf.mxu0
        %v1924 = vadd.f32 %v1859, %v1923
        %1925 = vmatmul.f32.gmra.mxu0 %v296
        %v1926 = vpop.f32.mrf.mxu0
        %v1927 = vadd.f32 %v1862, %v1926
        %1928 = vmatmul.f32.gmra.mxu0 %v304
        %v1929 = vpop.f32.mrf.mxu0
        %v1930 = vadd.f32 %v1865, %v1929
        %1931 = vmatmul.f32.gmra.mxu0 %v312
        %v1932 = vpop.f32.mrf.mxu0
        %v1933 = vadd.f32 %v1868, %v1932
        %1934 = vmatmul.f32.gmra.mxu0 %v320
        %v1935 = vpop.f32.mrf.mxu0
        %v1936 = vadd.f32 %v1871, %v1935
        %1937 = vmatmul.f32.gmra.mxu0 %v328
        %v1938 = vpop.f32.mrf.mxu0
        %v1939 = vadd.f32 %v1874, %v1938
        %1940 = vmatmul.f32.gmra.mxu0 %v336
        %v1941 = vpop.f32.mrf.mxu0
        %v1942 = vadd.f32 %v1877, %v1941
        %1943 = vmatmul.f32.gmra.mxu0 %v344
        %v1944 = vpop.f32.mrf.mxu0
        %v1945 = vadd.f32 %v1880, %v1944
        %1946 = vmatmul.f32.gmra.mxu0 %v352
        %v1947 = vpop.f32.mrf.mxu0
        %v1948 = vadd.f32 %v1883, %v1947
        %1949 = vmatmul.f32.gmra.mxu0 %v360
        %v1950 = vpop.f32.mrf.mxu0
        %v1951 = vadd.f32 %v1886, %v1950
        %1952 = vmatmul.f32.gmra.mxu0 %v368
        %v1953 = vpop.f32.mrf.mxu0
        %v1954 = vadd.f32 %v1889, %v1953
        %1955 = vmatmul.f32.gmra.mxu0 %v376
        %v1956 = vpop.f32.mrf.mxu0
        %v1957 = vadd.f32 %v1892, %v1956
        %1958 = vmatmul.f32.gmra.mxu0 %v384
        %v1959 = vpop.f32.mrf.mxu0
        %v1960 = vadd.f32 %v1895, %v1959
        %1961 = vmatmul.f32.gmra.mxu0 %v392
        %v1962 = vpop.f32.mrf.mxu0
        %v1963 = vadd.f32 %v1898, %v1962
        %1964 = vmatmul.f32.gmra.mxu0 %v400
        %v1965 = vpop.f32.mrf.mxu0
        %v1966 = vadd.f32 %v1901, %v1965
        %1967 = vmatmul.f32.gmra.mxu0 %v408
        %v1968 = vpop.f32.mrf.mxu0
        %v1969 = vadd.f32 %v1904, %v1968
        %1970 = vdwg.mxu0
        %1971 = vmatpush.xpose.msra.mxu0 %v785
        %1972 = vmatpush.xpose.msra.mxu0 %v777
        %1973 = vmatpush.xpose.msra.mxu0 %v769
        %1974 = vmatpush.xpose.msra.mxu0 %v761
        %1975 = vmatpush.xpose.msra.mxu0 %v753
        %1976 = vmatpush.xpose.msra.mxu0 %v745
        %1977 = vmatpush.xpose.msra.mxu0 %v737
        %1978 = vmatpush.xpose.msra.mxu0 %v729
        %1979 = vmatpush.xpose.msra.mxu0 %v721
        %1980 = vmatpush.xpose.msra.mxu0 %v713
        %1981 = vmatpush.xpose.msra.mxu0 %v705
        %1982 = vmatpush.xpose.msra.mxu0 %v697
        %1983 = vmatpush.xpose.msra.mxu0 %v689
        %1984 = vmatpush.xpose.msra.mxu0 %v681
        %1985 = vmatpush.xpose.msra.mxu0 %v673
        %1986 = vmatpush.xpose.msra.mxu0 %v665
        %1987 = vmatmul.f32.gmra.mxu0 %v281
        %v1988 = vpop.f32.mrf.mxu0
        %v1989 = vadd.f32 %v925, %v1988
        %1990 = vmatmul.f32.gmra.mxu0 %v289
        %v1991 = vpop.f32.mrf.mxu0
        %v1992 = vadd.f32 %v925, %v1991
        %1993 = vmatmul.f32.gmra.mxu0 %v297
        %v1994 = vpop.f32.mrf.mxu0
        %v1995 = vadd.f32 %v925, %v1994
        %1996 = vmatmul.f32.gmra.mxu0 %v305
        %v1997 = vpop.f32.mrf.mxu0
        %v1998 = vadd.f32 %v925, %v1997
        %1999 = vmatmul.f32.gmra.mxu0 %v313
        %v2000 = vpop.f32.mrf.mxu0
        %v2001 = vadd.f32 %v925, %v2000
        %2002 = vmatmul.f32.gmra.mxu0 %v321
        %v2003 = vpop.f32.mrf.mxu0
        %v2004 = vadd.f32 %v925, %v2003
        %2005 = vmatmul.f32.gmra.mxu0 %v329
        %v2006 = vpop.f32.mrf.mxu0
        %v2007 = vadd.f32 %v925, %v2006
        %2008 = vmatmul.f32.gmra.mxu0 %v337
        %v2009 = vpop.f32.mrf.mxu0
        %v2010 = vadd.f32 %v925, %v2009
        %2011 = vmatmul.f32.gmra.mxu0 %v345
        %v2012 = vpop.f32.mrf.mxu0
        %v2013 = vadd.f32 %v925, %v2012
        %2014 = vmatmul.f32.gmra.mxu0 %v353
        %v2015 = vpop.f32.mrf.mxu0
        %v2016 = vadd.f32 %v925, %v2015
        %2017 = vmatmul.f32.gmra.mxu0 %v361
        %v2018 = vpop.f32.mrf.mxu0
        %v2019 = vadd.f32 %v925, %v2018
        %2020 = vmatmul.f32.gmra.mxu0 %v369
        %v2021 = vpop.f32.mrf.mxu0
        %v2022 = vadd.f32 %v925, %v2021
        %2023 = vmatmul.f32.gmra.mxu0 %v377
        %v2024 = vpop.f32.mrf.mxu0
        %v2025 = vadd.f32 %v925, %v2024
        %2026 = vmatmul.f32.gmra.mxu0 %v385
        %v2027 = vpop.f32.mrf.mxu0
        %v2028 = vadd.f32 %v925, %v2027
        %2029 = vmatmul.f32.gmra.mxu0 %v393
        %v2030 = vpop.f32.mrf.mxu0
        %v2031 = vadd.f32 %v925, %v2030
        %2032 = vmatmul.f32.gmra.mxu0 %v401
        %v2033 = vpop.f32.mrf.mxu0
        %v2034 = vadd.f32 %v925, %v2033
        %2035 = vdwg.mxu0
        %2036 = vmatpush.xpose.msra.mxu0 %v786
        %2037 = vmatpush.xpose.msra.mxu0 %v778
        %2038 = vmatpush.xpose.msra.mxu0 %v770
        %2039 = vmatpush.xpose.msra.mxu0 %v762
        %2040 = vmatpush.xpose.msra.mxu0 %v754
        %2041 = vmatpush.xpose.msra.mxu0 %v746
        %2042 = vmatpush.xpose.msra.mxu0 %v738
        %2043 = vmatpush.xpose.msra.mxu0 %v730
        %2044 = vmatpush.xpose.msra.mxu0 %v722
        %2045 = vmatpush.xpose.msra.mxu0 %v714
        %2046 = vmatpush.xpose.msra.mxu0 %v706
        %2047 = vmatpush.xpose.msra.mxu0 %v698
        %2048 = vmatpush.xpose.msra.mxu0 %v690
        %2049 = vmatpush.xpose.msra.mxu0 %v682
        %2050 = vmatpush.xpose.msra.mxu0 %v674
        %2051 = vmatpush.xpose.msra.mxu0 %v666
        %2052 = vmatmul.f32.gmra.mxu0 %v282
        %v2053 = vpop.f32.mrf.mxu0
        %v2054 = vadd.f32 %v1989, %v2053
        %2055 = vmatmul.f32.gmra.mxu0 %v290
        %v2056 = vpop.f32.mrf.mxu0
        %v2057 = vadd.f32 %v1992, %v2056
        %2058 = vmatmul.f32.gmra.mxu0 %v298
        %v2059 = vpop.f32.mrf.mxu0
        %v2060 = vadd.f32 %v1995, %v2059
        %2061 = vmatmul.f32.gmra.mxu0 %v306
        %v2062 = vpop.f32.mrf.mxu0
        %v2063 = vadd.f32 %v1998, %v2062
        %2064 = vmatmul.f32.gmra.mxu0 %v314
        %v2065 = vpop.f32.mrf.mxu0
        %v2066 = vadd.f32 %v2001, %v2065
        %2067 = vmatmul.f32.gmra.mxu0 %v322
        %v2068 = vpop.f32.mrf.mxu0
        %v2069 = vadd.f32 %v2004, %v2068
        %2070 = vmatmul.f32.gmra.mxu0 %v330
        %v2071 = vpop.f32.mrf.mxu0
        %v2072 = vadd.f32 %v2007, %v2071
        %2073 = vmatmul.f32.gmra.mxu0 %v338
        %v2074 = vpop.f32.mrf.mxu0
        %v2075 = vadd.f32 %v2010, %v2074
        %2076 = vmatmul.f32.gmra.mxu0 %v346
        %v2077 = vpop.f32.mrf.mxu0
        %v2078 = vadd.f32 %v2013, %v2077
        %2079 = vmatmul.f32.gmra.mxu0 %v354
        %v2080 = vpop.f32.mrf.mxu0
        %v2081 = vadd.f32 %v2016, %v2080
        %2082 = vmatmul.f32.gmra.mxu0 %v362
        %v2083 = vpop.f32.mrf.mxu0
        %v2084 = vadd.f32 %v2019, %v2083
        %2085 = vmatmul.f32.gmra.mxu0 %v370
        %v2086 = vpop.f32.mrf.mxu0
        %v2087 = vadd.f32 %v2022, %v2086
        %2088 = vmatmul.f32.gmra.mxu0 %v378
        %v2089 = vpop.f32.mrf.mxu0
        %v2090 = vadd.f32 %v2025, %v2089
        %2091 = vmatmul.f32.gmra.mxu0 %v386
        %v2092 = vpop.f32.mrf.mxu0
        %v2093 = vadd.f32 %v2028, %v2092
        %2094 = vmatmul.f32.gmra.mxu0 %v394
        %v2095 = vpop.f32.mrf.mxu0
        %v2096 = vadd.f32 %v2031, %v2095
        %2097 = vmatmul.f32.gmra.mxu0 %v402
        %v2098 = vpop.f32.mrf.mxu0
        %v2099 = vadd.f32 %v2034, %v2098
        %2100 = vdwg.mxu0
        %2101 = vmatpush.xpose.msra.mxu0 %v787
        %2102 = vmatpush.xpose.msra.mxu0 %v779
        %2103 = vmatpush.xpose.msra.mxu0 %v771
        %2104 = vmatpush.xpose.msra.mxu0 %v763
        %2105 = vmatpush.xpose.msra.mxu0 %v755
        %2106 = vmatpush.xpose.msra.mxu0 %v747
        %2107 = vmatpush.xpose.msra.mxu0 %v739
        %2108 = vmatpush.xpose.msra.mxu0 %v731
        %2109 = vmatpush.xpose.msra.mxu0 %v723
        %2110 = vmatpush.xpose.msra.mxu0 %v715
        %2111 = vmatpush.xpose.msra.mxu0 %v707
        %2112 = vmatpush.xpose.msra.mxu0 %v699
        %2113 = vmatpush.xpose.msra.mxu0 %v691
        %2114 = vmatpush.xpose.msra.mxu0 %v683
        %2115 = vmatpush.xpose.msra.mxu0 %v675
        %2116 = vmatpush.xpose.msra.mxu0 %v667
        %2117 = vmatmul.f32.gmra.mxu0 %v283
        %v2118 = vpop.f32.mrf.mxu0
        %v2119 = vadd.f32 %v2054, %v2118
        %2120 = vmatmul.f32.gmra.mxu0 %v291
        %v2121 = vpop.f32.mrf.mxu0
        %v2122 = vadd.f32 %v2057, %v2121
        %2123 = vmatmul.f32.gmra.mxu0 %v299
        %v2124 = vpop.f32.mrf.mxu0
        %v2125 = vadd.f32 %v2060, %v2124
        %2126 = vmatmul.f32.gmra.mxu0 %v307
        %v2127 = vpop.f32.mrf.mxu0
        %v2128 = vadd.f32 %v2063, %v2127
        %2129 = vmatmul.f32.gmra.mxu0 %v315
        %v2130 = vpop.f32.mrf.mxu0
        %v2131 = vadd.f32 %v2066, %v2130
        %2132 = vmatmul.f32.gmra.mxu0 %v323
        %v2133 = vpop.f32.mrf.mxu0
        %v2134 = vadd.f32 %v2069, %v2133
        %2135 = vmatmul.f32.gmra.mxu0 %v331
        %v2136 = vpop.f32.mrf.mxu0
        %v2137 = vadd.f32 %v2072, %v2136
        %2138 = vmatmul.f32.gmra.mxu0 %v339
        %v2139 = vpop.f32.mrf.mxu0
        %v2140 = vadd.f32 %v2075, %v2139
        %2141 = vmatmul.f32.gmra.mxu0 %v347
        %v2142 = vpop.f32.mrf.mxu0
        %v2143 = vadd.f32 %v2078, %v2142
        %2144 = vmatmul.f32.gmra.mxu0 %v355
        %v2145 = vpop.f32.mrf.mxu0
        %v2146 = vadd.f32 %v2081, %v2145
        %2147 = vmatmul.f32.gmra.mxu0 %v363
        %v2148 = vpop.f32.mrf.mxu0
        %v2149 = vadd.f32 %v2084, %v2148
        %2150 = vmatmul.f32.gmra.mxu0 %v371
        %v2151 = vpop.f32.mrf.mxu0
        %v2152 = vadd.f32 %v2087, %v2151
        %2153 = vmatmul.f32.gmra.mxu0 %v379
        %v2154 = vpop.f32.mrf.mxu0
        %v2155 = vadd.f32 %v2090, %v2154
        %2156 = vmatmul.f32.gmra.mxu0 %v387
        %v2157 = vpop.f32.mrf.mxu0
        %v2158 = vadd.f32 %v2093, %v2157
        %2159 = vmatmul.f32.gmra.mxu0 %v395
        %v2160 = vpop.f32.mrf.mxu0
        %v2161 = vadd.f32 %v2096, %v2160
        %2162 = vmatmul.f32.gmra.mxu0 %v403
        %v2163 = vpop.f32.mrf.mxu0
        %v2164 = vadd.f32 %v2099, %v2163
        %2165 = vdwg.mxu0
        %2166 = vmatpush.xpose.msra.mxu0 %v788
        %2167 = vmatpush.xpose.msra.mxu0 %v780
        %2168 = vmatpush.xpose.msra.mxu0 %v772
        %2169 = vmatpush.xpose.msra.mxu0 %v764
        %2170 = vmatpush.xpose.msra.mxu0 %v756
        %2171 = vmatpush.xpose.msra.mxu0 %v748
        %2172 = vmatpush.xpose.msra.mxu0 %v740
        %2173 = vmatpush.xpose.msra.mxu0 %v732
        %2174 = vmatpush.xpose.msra.mxu0 %v724
        %2175 = vmatpush.xpose.msra.mxu0 %v716
        %2176 = vmatpush.xpose.msra.mxu0 %v708
        %2177 = vmatpush.xpose.msra.mxu0 %v700
        %2178 = vmatpush.xpose.msra.mxu0 %v692
        %2179 = vmatpush.xpose.msra.mxu0 %v684
        %2180 = vmatpush.xpose.msra.mxu0 %v676
        %2181 = vmatpush.xpose.msra.mxu0 %v668
        %2182 = vmatmul.f32.gmra.mxu0 %v284
        %v2183 = vpop.f32.mrf.mxu0
        %v2184 = vadd.f32 %v2119, %v2183
        %2185 = vmatmul.f32.gmra.mxu0 %v292
        %v2186 = vpop.f32.mrf.mxu0
        %v2187 = vadd.f32 %v2122, %v2186
        %2188 = vmatmul.f32.gmra.mxu0 %v300
        %v2189 = vpop.f32.mrf.mxu0
        %v2190 = vadd.f32 %v2125, %v2189
        %2191 = vmatmul.f32.gmra.mxu0 %v308
        %v2192 = vpop.f32.mrf.mxu0
        %v2193 = vadd.f32 %v2128, %v2192
        %2194 = vmatmul.f32.gmra.mxu0 %v316
        %v2195 = vpop.f32.mrf.mxu0
        %v2196 = vadd.f32 %v2131, %v2195
        %2197 = vmatmul.f32.gmra.mxu0 %v324
        %v2198 = vpop.f32.mrf.mxu0
        %v2199 = vadd.f32 %v2134, %v2198
        %2200 = vmatmul.f32.gmra.mxu0 %v332
        %v2201 = vpop.f32.mrf.mxu0
        %v2202 = vadd.f32 %v2137, %v2201
        %2203 = vmatmul.f32.gmra.mxu0 %v340
        %v2204 = vpop.f32.mrf.mxu0
        %v2205 = vadd.f32 %v2140, %v2204
        %2206 = vmatmul.f32.gmra.mxu0 %v348
        %v2207 = vpop.f32.mrf.mxu0
        %v2208 = vadd.f32 %v2143, %v2207
        %2209 = vmatmul.f32.gmra.mxu0 %v356
        %v2210 = vpop.f32.mrf.mxu0
        %v2211 = vadd.f32 %v2146, %v2210
        %2212 = vmatmul.f32.gmra.mxu0 %v364
        %v2213 = vpop.f32.mrf.mxu0
        %v2214 = vadd.f32 %v2149, %v2213
        %2215 = vmatmul.f32.gmra.mxu0 %v372
        %v2216 = vpop.f32.mrf.mxu0
        %v2217 = vadd.f32 %v2152, %v2216
        %2218 = vmatmul.f32.gmra.mxu0 %v380
        %v2219 = vpop.f32.mrf.mxu0
        %v2220 = vadd.f32 %v2155, %v2219
        %2221 = vmatmul.f32.gmra.mxu0 %v388
        %v2222 = vpop.f32.mrf.mxu0
        %v2223 = vadd.f32 %v2158, %v2222
        %2224 = vmatmul.f32.gmra.mxu0 %v396
        %v2225 = vpop.f32.mrf.mxu0
        %v2226 = vadd.f32 %v2161, %v2225
        %2227 = vmatmul.f32.gmra.mxu0 %v404
        %v2228 = vpop.f32.mrf.mxu0
        %v2229 = vadd.f32 %v2164, %v2228
        %2230 = vdwg.mxu0
        %2231 = vmatpush.xpose.msra.mxu0 %v789
        %2232 = vmatpush.xpose.msra.mxu0 %v781
        %2233 = vmatpush.xpose.msra.mxu0 %v773
        %2234 = vmatpush.xpose.msra.mxu0 %v765
        %2235 = vmatpush.xpose.msra.mxu0 %v757
        %2236 = vmatpush.xpose.msra.mxu0 %v749
        %2237 = vmatpush.xpose.msra.mxu0 %v741
        %2238 = vmatpush.xpose.msra.mxu0 %v733
        %2239 = vmatpush.xpose.msra.mxu0 %v725
        %2240 = vmatpush.xpose.msra.mxu0 %v717
        %2241 = vmatpush.xpose.msra.mxu0 %v709
        %2242 = vmatpush.xpose.msra.mxu0 %v701
        %2243 = vmatpush.xpose.msra.mxu0 %v693
        %2244 = vmatpush.xpose.msra.mxu0 %v685
        %2245 = vmatpush.xpose.msra.mxu0 %v677
        %2246 = vmatpush.xpose.msra.mxu0 %v669
        %2247 = vmatmul.f32.gmra.mxu0 %v285
        %v2248 = vpop.f32.mrf.mxu0
        %v2249 = vadd.f32 %v2184, %v2248
        %2250 = vmatmul.f32.gmra.mxu0 %v293
        %v2251 = vpop.f32.mrf.mxu0
        %v2252 = vadd.f32 %v2187, %v2251
        %2253 = vmatmul.f32.gmra.mxu0 %v301
        %v2254 = vpop.f32.mrf.mxu0
        %v2255 = vadd.f32 %v2190, %v2254
        %2256 = vmatmul.f32.gmra.mxu0 %v309
        %v2257 = vpop.f32.mrf.mxu0
        %v2258 = vadd.f32 %v2193, %v2257
        %2259 = vmatmul.f32.gmra.mxu0 %v317
        %v2260 = vpop.f32.mrf.mxu0
        %v2261 = vadd.f32 %v2196, %v2260
        %2262 = vmatmul.f32.gmra.mxu0 %v325
        %v2263 = vpop.f32.mrf.mxu0
        %v2264 = vadd.f32 %v2199, %v2263
        %2265 = vmatmul.f32.gmra.mxu0 %v333
        %v2266 = vpop.f32.mrf.mxu0
        %v2267 = vadd.f32 %v2202, %v2266
        %2268 = vmatmul.f32.gmra.mxu0 %v341
        %v2269 = vpop.f32.mrf.mxu0
        %v2270 = vadd.f32 %v2205, %v2269
        %2271 = vmatmul.f32.gmra.mxu0 %v349
        %v2272 = vpop.f32.mrf.mxu0
        %v2273 = vadd.f32 %v2208, %v2272
        %2274 = vmatmul.f32.gmra.mxu0 %v357
        %v2275 = vpop.f32.mrf.mxu0
        %v2276 = vadd.f32 %v2211, %v2275
        %2277 = vmatmul.f32.gmra.mxu0 %v365
        %v2278 = vpop.f32.mrf.mxu0
        %v2279 = vadd.f32 %v2214, %v2278
        %2280 = vmatmul.f32.gmra.mxu0 %v373
        %v2281 = vpop.f32.mrf.mxu0
        %v2282 = vadd.f32 %v2217, %v2281
        %2283 = vmatmul.f32.gmra.mxu0 %v381
        %v2284 = vpop.f32.mrf.mxu0
        %v2285 = vadd.f32 %v2220, %v2284
        %2286 = vmatmul.f32.gmra.mxu0 %v389
        %v2287 = vpop.f32.mrf.mxu0
        %v2288 = vadd.f32 %v2223, %v2287
        %2289 = vmatmul.f32.gmra.mxu0 %v397
        %v2290 = vpop.f32.mrf.mxu0
        %v2291 = vadd.f32 %v2226, %v2290
        %2292 = vmatmul.f32.gmra.mxu0 %v405
        %v2293 = vpop.f32.mrf.mxu0
        %v2294 = vadd.f32 %v2229, %v2293
        %2295 = vdwg.mxu0
        %2296 = vmatpush.xpose.msra.mxu0 %v790
        %2297 = vmatpush.xpose.msra.mxu0 %v782
        %2298 = vmatpush.xpose.msra.mxu0 %v774
        %2299 = vmatpush.xpose.msra.mxu0 %v766
        %2300 = vmatpush.xpose.msra.mxu0 %v758
        %2301 = vmatpush.xpose.msra.mxu0 %v750
        %2302 = vmatpush.xpose.msra.mxu0 %v742
        %2303 = vmatpush.xpose.msra.mxu0 %v734
        %2304 = vmatpush.xpose.msra.mxu0 %v726
        %2305 = vmatpush.xpose.msra.mxu0 %v718
        %2306 = vmatpush.xpose.msra.mxu0 %v710
        %2307 = vmatpush.xpose.msra.mxu0 %v702
        %2308 = vmatpush.xpose.msra.mxu0 %v694
        %2309 = vmatpush.xpose.msra.mxu0 %v686
        %2310 = vmatpush.xpose.msra.mxu0 %v678
        %2311 = vmatpush.xpose.msra.mxu0 %v670
        %2312 = vmatmul.f32.gmra.mxu0 %v286
        %v2313 = vpop.f32.mrf.mxu0
        %v2314 = vadd.f32 %v2249, %v2313
        %2315 = vmatmul.f32.gmra.mxu0 %v294
        %v2316 = vpop.f32.mrf.mxu0
        %v2317 = vadd.f32 %v2252, %v2316
        %2318 = vmatmul.f32.gmra.mxu0 %v302
        %v2319 = vpop.f32.mrf.mxu0
        %v2320 = vadd.f32 %v2255, %v2319
        %2321 = vmatmul.f32.gmra.mxu0 %v310
        %v2322 = vpop.f32.mrf.mxu0
        %v2323 = vadd.f32 %v2258, %v2322
        %2324 = vmatmul.f32.gmra.mxu0 %v318
        %v2325 = vpop.f32.mrf.mxu0
        %v2326 = vadd.f32 %v2261, %v2325
        %2327 = vmatmul.f32.gmra.mxu0 %v326
        %v2328 = vpop.f32.mrf.mxu0
        %v2329 = vadd.f32 %v2264, %v2328
        %2330 = vmatmul.f32.gmra.mxu0 %v334
        %v2331 = vpop.f32.mrf.mxu0
        %v2332 = vadd.f32 %v2267, %v2331
        %2333 = vmatmul.f32.gmra.mxu0 %v342
        %v2334 = vpop.f32.mrf.mxu0
        %v2335 = vadd.f32 %v2270, %v2334
        %2336 = vmatmul.f32.gmra.mxu0 %v350
        %v2337 = vpop.f32.mrf.mxu0
        %v2338 = vadd.f32 %v2273, %v2337
        %2339 = vmatmul.f32.gmra.mxu0 %v358
        %v2340 = vpop.f32.mrf.mxu0
        %v2341 = vadd.f32 %v2276, %v2340
        %2342 = vmatmul.f32.gmra.mxu0 %v366
        %v2343 = vpop.f32.mrf.mxu0
        %v2344 = vadd.f32 %v2279, %v2343
        %2345 = vmatmul.f32.gmra.mxu0 %v374
        %v2346 = vpop.f32.mrf.mxu0
        %v2347 = vadd.f32 %v2282, %v2346
        %2348 = vmatmul.f32.gmra.mxu0 %v382
        %v2349 = vpop.f32.mrf.mxu0
        %v2350 = vadd.f32 %v2285, %v2349
        %2351 = vmatmul.f32.gmra.mxu0 %v390
        %v2352 = vpop.f32.mrf.mxu0
        %v2353 = vadd.f32 %v2288, %v2352
        %2354 = vmatmul.f32.gmra.mxu0 %v398
        %v2355 = vpop.f32.mrf.mxu0
        %v2356 = vadd.f32 %v2291, %v2355
        %2357 = vmatmul.f32.gmra.mxu0 %v406
        %v2358 = vpop.f32.mrf.mxu0
        %v2359 = vadd.f32 %v2294, %v2358
        %2360 = vdwg.mxu0
        %2361 = vmatpush.xpose.msra.mxu0 %v791
        %2362 = vmatpush.xpose.msra.mxu0 %v783
        %2363 = vmatpush.xpose.msra.mxu0 %v775
        %2364 = vmatpush.xpose.msra.mxu0 %v767
        %2365 = vmatpush.xpose.msra.mxu0 %v759
        %2366 = vmatpush.xpose.msra.mxu0 %v751
        %2367 = vmatpush.xpose.msra.mxu0 %v743
        %2368 = vmatpush.xpose.msra.mxu0 %v735
        %2369 = vmatpush.xpose.msra.mxu0 %v727
        %2370 = vmatpush.xpose.msra.mxu0 %v719
        %2371 = vmatpush.xpose.msra.mxu0 %v711
        %2372 = vmatpush.xpose.msra.mxu0 %v703
        %2373 = vmatpush.xpose.msra.mxu0 %v695
        %2374 = vmatpush.xpose.msra.mxu0 %v687
        %2375 = vmatpush.xpose.msra.mxu0 %v679
        %2376 = vmatpush.xpose.msra.mxu0 %v671
        %2377 = vmatmul.f32.gmra.mxu0 %v287
        %v2378 = vpop.f32.mrf.mxu0
        %v2379 = vadd.f32 %v2314, %v2378
        %2380 = vmatmul.f32.gmra.mxu0 %v295
        %v2381 = vpop.f32.mrf.mxu0
        %v2382 = vadd.f32 %v2317, %v2381
        %2383 = vmatmul.f32.gmra.mxu0 %v303
        %v2384 = vpop.f32.mrf.mxu0
        %v2385 = vadd.f32 %v2320, %v2384
        %2386 = vmatmul.f32.gmra.mxu0 %v311
        %v2387 = vpop.f32.mrf.mxu0
        %v2388 = vadd.f32 %v2323, %v2387
        %2389 = vmatmul.f32.gmra.mxu0 %v319
        %v2390 = vpop.f32.mrf.mxu0
        %v2391 = vadd.f32 %v2326, %v2390
        %2392 = vmatmul.f32.gmra.mxu0 %v327
        %v2393 = vpop.f32.mrf.mxu0
        %v2394 = vadd.f32 %v2329, %v2393
        %2395 = vmatmul.f32.gmra.mxu0 %v335
        %v2396 = vpop.f32.mrf.mxu0
        %v2397 = vadd.f32 %v2332, %v2396
        %2398 = vmatmul.f32.gmra.mxu0 %v343
        %v2399 = vpop.f32.mrf.mxu0
        %v2400 = vadd.f32 %v2335, %v2399
        %2401 = vmatmul.f32.gmra.mxu0 %v351
        %v2402 = vpop.f32.mrf.mxu0
        %v2403 = vadd.f32 %v2338, %v2402
        %2404 = vmatmul.f32.gmra.mxu0 %v359
        %v2405 = vpop.f32.mrf.mxu0
        %v2406 = vadd.f32 %v2341, %v2405
        %2407 = vmatmul.f32.gmra.mxu0 %v367
        %v2408 = vpop.f32.mrf.mxu0
        %v2409 = vadd.f32 %v2344, %v2408
        %2410 = vmatmul.f32.gmra.mxu0 %v375
        %v2411 = vpop.f32.mrf.mxu0
        %v2412 = vadd.f32 %v2347, %v2411
        %2413 = vmatmul.f32.gmra.mxu0 %v383
        %v2414 = vpop.f32.mrf.mxu0
        %v2415 = vadd.f32 %v2350, %v2414
        %2416 = vmatmul.f32.gmra.mxu0 %v391
        %v2417 = vpop.f32.mrf.mxu0
        %v2418 = vadd.f32 %v2353, %v2417
        %2419 = vmatmul.f32.gmra.mxu0 %v399
        %v2420 = vpop.f32.mrf.mxu0
        %v2421 = vadd.f32 %v2356, %v2420
        %2422 = vmatmul.f32.gmra.mxu0 %v407
        %v2423 = vpop.f32.mrf.mxu0
        %v2424 = vadd.f32 %v2359, %v2423
        %2425 = vdwg.mxu0
        %2426 = vmatpush.xpose.msra.mxu0 %v792
        %2427 = vmatpush.xpose.msra.mxu0 %v784
        %2428 = vmatpush.xpose.msra.mxu0 %v776
        %2429 = vmatpush.xpose.msra.mxu0 %v768
        %2430 = vmatpush.xpose.msra.mxu0 %v760
        %2431 = vmatpush.xpose.msra.mxu0 %v752
        %2432 = vmatpush.xpose.msra.mxu0 %v744
        %2433 = vmatpush.xpose.msra.mxu0 %v736
        %2434 = vmatpush.xpose.msra.mxu0 %v728
        %2435 = vmatpush.xpose.msra.mxu0 %v720
        %2436 = vmatpush.xpose.msra.mxu0 %v712
        %2437 = vmatpush.xpose.msra.mxu0 %v704
        %2438 = vmatpush.xpose.msra.mxu0 %v696
        %2439 = vmatpush.xpose.msra.mxu0 %v688
        %2440 = vmatpush.xpose.msra.mxu0 %v680
        %2441 = vmatpush.xpose.msra.mxu0 %v672
        %2442 = vmatmul.f32.gmra.mxu0 %v288
        %v2443 = vpop.f32.mrf.mxu0
        %v2444 = vadd.f32 %v2379, %v2443
        %2445 = vmatmul.f32.gmra.mxu0 %v296
        %v2446 = vpop.f32.mrf.mxu0
        %v2447 = vadd.f32 %v2382, %v2446
        %2448 = vmatmul.f32.gmra.mxu0 %v304
        %v2449 = vpop.f32.mrf.mxu0
        %v2450 = vadd.f32 %v2385, %v2449
        %2451 = vmatmul.f32.gmra.mxu0 %v312
        %v2452 = vpop.f32.mrf.mxu0
        %v2453 = vadd.f32 %v2388, %v2452
        %2454 = vmatmul.f32.gmra.mxu0 %v320
        %v2455 = vpop.f32.mrf.mxu0
        %v2456 = vadd.f32 %v2391, %v2455
        %2457 = vmatmul.f32.gmra.mxu0 %v328
        %v2458 = vpop.f32.mrf.mxu0
        %v2459 = vadd.f32 %v2394, %v2458
        %2460 = vmatmul.f32.gmra.mxu0 %v336
        %v2461 = vpop.f32.mrf.mxu0
        %v2462 = vadd.f32 %v2397, %v2461
        %2463 = vmatmul.f32.gmra.mxu0 %v344
        %v2464 = vpop.f32.mrf.mxu0
        %v2465 = vadd.f32 %v2400, %v2464
        %2466 = vmatmul.f32.gmra.mxu0 %v352
        %v2467 = vpop.f32.mrf.mxu0
        %v2468 = vadd.f32 %v2403, %v2467
        %2469 = vmatmul.f32.gmra.mxu0 %v360
        %v2470 = vpop.f32.mrf.mxu0
        %v2471 = vadd.f32 %v2406, %v2470
        %2472 = vmatmul.f32.gmra.mxu0 %v368
        %v2473 = vpop.f32.mrf.mxu0
        %v2474 = vadd.f32 %v2409, %v2473
        %2475 = vmatmul.f32.gmra.mxu0 %v376
        %v2476 = vpop.f32.mrf.mxu0
        %v2477 = vadd.f32 %v2412, %v2476
        %2478 = vmatmul.f32.gmra.mxu0 %v384
        %v2479 = vpop.f32.mrf.mxu0
        %v2480 = vadd.f32 %v2415, %v2479
        %2481 = vmatmul.f32.gmra.mxu0 %v392
        %v2482 = vpop.f32.mrf.mxu0
        %v2483 = vadd.f32 %v2418, %v2482
        %2484 = vmatmul.f32.gmra.mxu0 %v400
        %v2485 = vpop.f32.mrf.mxu0
        %v2486 = vadd.f32 %v2421, %v2485
        %2487 = vmatmul.f32.gmra.mxu0 %v408
        %v2488 = vpop.f32.mrf.mxu0
        %v2489 = vadd.f32 %v2424, %v2488
        %2490 = vdwg.mxu0
        %2491 = vmatpush.xpose.msra.mxu0 %v913
        %2492 = vmatpush.xpose.msra.mxu0 %v905
        %2493 = vmatpush.xpose.msra.mxu0 %v897
        %2494 = vmatpush.xpose.msra.mxu0 %v889
        %2495 = vmatpush.xpose.msra.mxu0 %v881
        %2496 = vmatpush.xpose.msra.mxu0 %v873
        %2497 = vmatpush.xpose.msra.mxu0 %v865
        %2498 = vmatpush.xpose.msra.mxu0 %v857
        %2499 = vmatpush.xpose.msra.mxu0 %v849
        %2500 = vmatpush.xpose.msra.mxu0 %v841
        %2501 = vmatpush.xpose.msra.mxu0 %v833
        %2502 = vmatpush.xpose.msra.mxu0 %v825
        %2503 = vmatpush.xpose.msra.mxu0 %v817
        %2504 = vmatpush.xpose.msra.mxu0 %v809
        %2505 = vmatpush.xpose.msra.mxu0 %v801
        %2506 = vmatpush.xpose.msra.mxu0 %v793
        %2507 = vmatmul.f32.gmra.mxu0 %v281
        %v2508 = vpop.f32.mrf.mxu0
        %v2509 = vadd.f32 %v926, %v2508
        %2510 = vmatmul.f32.gmra.mxu0 %v289
        %v2511 = vpop.f32.mrf.mxu0
        %v2512 = vadd.f32 %v926, %v2511
        %2513 = vmatmul.f32.gmra.mxu0 %v297
        %v2514 = vpop.f32.mrf.mxu0
        %v2515 = vadd.f32 %v926, %v2514
        %2516 = vmatmul.f32.gmra.mxu0 %v305
        %v2517 = vpop.f32.mrf.mxu0
        %v2518 = vadd.f32 %v926, %v2517
        %2519 = vmatmul.f32.gmra.mxu0 %v313
        %v2520 = vpop.f32.mrf.mxu0
        %v2521 = vadd.f32 %v926, %v2520
        %2522 = vmatmul.f32.gmra.mxu0 %v321
        %v2523 = vpop.f32.mrf.mxu0
        %v2524 = vadd.f32 %v926, %v2523
        %2525 = vmatmul.f32.gmra.mxu0 %v329
        %v2526 = vpop.f32.mrf.mxu0
        %v2527 = vadd.f32 %v926, %v2526
        %2528 = vmatmul.f32.gmra.mxu0 %v337
        %v2529 = vpop.f32.mrf.mxu0
        %v2530 = vadd.f32 %v926, %v2529
        %2531 = vmatmul.f32.gmra.mxu0 %v345
        %v2532 = vpop.f32.mrf.mxu0
        %v2533 = vadd.f32 %v926, %v2532
        %2534 = vmatmul.f32.gmra.mxu0 %v353
        %v2535 = vpop.f32.mrf.mxu0
        %v2536 = vadd.f32 %v926, %v2535
        %2537 = vmatmul.f32.gmra.mxu0 %v361
        %v2538 = vpop.f32.mrf.mxu0
        %v2539 = vadd.f32 %v926, %v2538
        %2540 = vmatmul.f32.gmra.mxu0 %v369
        %v2541 = vpop.f32.mrf.mxu0
        %v2542 = vadd.f32 %v926, %v2541
        %2543 = vmatmul.f32.gmra.mxu0 %v377
        %v2544 = vpop.f32.mrf.mxu0
        %v2545 = vadd.f32 %v926, %v2544
        %2546 = vmatmul.f32.gmra.mxu0 %v385
        %v2547 = vpop.f32.mrf.mxu0
        %v2548 = vadd.f32 %v926, %v2547
        %2549 = vmatmul.f32.gmra.mxu0 %v393
        %v2550 = vpop.f32.mrf.mxu0
        %v2551 = vadd.f32 %v926, %v2550
        %2552 = vmatmul.f32.gmra.mxu0 %v401
        %v2553 = vpop.f32.mrf.mxu0
        %v2554 = vadd.f32 %v926, %v2553
        %2555 = vdwg.mxu0
        %2556 = vmatpush.xpose.msra.mxu0 %v914
        %2557 = vmatpush.xpose.msra.mxu0 %v906
        %2558 = vmatpush.xpose.msra.mxu0 %v898
        %2559 = vmatpush.xpose.msra.mxu0 %v890
        %2560 = vmatpush.xpose.msra.mxu0 %v882
        %2561 = vmatpush.xpose.msra.mxu0 %v874
        %2562 = vmatpush.xpose.msra.mxu0 %v866
        %2563 = vmatpush.xpose.msra.mxu0 %v858
        %2564 = vmatpush.xpose.msra.mxu0 %v850
        %2565 = vmatpush.xpose.msra.mxu0 %v842
        %2566 = vmatpush.xpose.msra.mxu0 %v834
        %2567 = vmatpush.xpose.msra.mxu0 %v826
        %2568 = vmatpush.xpose.msra.mxu0 %v818
        %2569 = vmatpush.xpose.msra.mxu0 %v810
        %2570 = vmatpush.xpose.msra.mxu0 %v802
        %2571 = vmatpush.xpose.msra.mxu0 %v794
        %2572 = vmatmul.f32.gmra.mxu0 %v282
        %v2573 = vpop.f32.mrf.mxu0
        %v2574 = vadd.f32 %v2509, %v2573
        %2575 = vmatmul.f32.gmra.mxu0 %v290
        %v2576 = vpop.f32.mrf.mxu0
        %v2577 = vadd.f32 %v2512, %v2576
        %2578 = vmatmul.f32.gmra.mxu0 %v298
        %v2579 = vpop.f32.mrf.mxu0
        %v2580 = vadd.f32 %v2515, %v2579
        %2581 = vmatmul.f32.gmra.mxu0 %v306
        %v2582 = vpop.f32.mrf.mxu0
        %v2583 = vadd.f32 %v2518, %v2582
        %2584 = vmatmul.f32.gmra.mxu0 %v314
        %v2585 = vpop.f32.mrf.mxu0
        %v2586 = vadd.f32 %v2521, %v2585
        %2587 = vmatmul.f32.gmra.mxu0 %v322
        %v2588 = vpop.f32.mrf.mxu0
        %v2589 = vadd.f32 %v2524, %v2588
        %2590 = vmatmul.f32.gmra.mxu0 %v330
        %v2591 = vpop.f32.mrf.mxu0
        %v2592 = vadd.f32 %v2527, %v2591
        %2593 = vmatmul.f32.gmra.mxu0 %v338
        %v2594 = vpop.f32.mrf.mxu0
        %v2595 = vadd.f32 %v2530, %v2594
        %2596 = vmatmul.f32.gmra.mxu0 %v346
        %v2597 = vpop.f32.mrf.mxu0
        %v2598 = vadd.f32 %v2533, %v2597
        %2599 = vmatmul.f32.gmra.mxu0 %v354
        %v2600 = vpop.f32.mrf.mxu0
        %v2601 = vadd.f32 %v2536, %v2600
        %2602 = vmatmul.f32.gmra.mxu0 %v362
        %v2603 = vpop.f32.mrf.mxu0
        %v2604 = vadd.f32 %v2539, %v2603
        %2605 = vmatmul.f32.gmra.mxu0 %v370
        %v2606 = vpop.f32.mrf.mxu0
        %v2607 = vadd.f32 %v2542, %v2606
        %2608 = vmatmul.f32.gmra.mxu0 %v378
        %v2609 = vpop.f32.mrf.mxu0
        %v2610 = vadd.f32 %v2545, %v2609
        %2611 = vmatmul.f32.gmra.mxu0 %v386
        %v2612 = vpop.f32.mrf.mxu0
        %v2613 = vadd.f32 %v2548, %v2612
        %2614 = vmatmul.f32.gmra.mxu0 %v394
        %v2615 = vpop.f32.mrf.mxu0
        %v2616 = vadd.f32 %v2551, %v2615
        %2617 = vmatmul.f32.gmra.mxu0 %v402
        %v2618 = vpop.f32.mrf.mxu0
        %v2619 = vadd.f32 %v2554, %v2618
        %2620 = vdwg.mxu0
        %2621 = vmatpush.xpose.msra.mxu0 %v915
        %2622 = vmatpush.xpose.msra.mxu0 %v907
        %2623 = vmatpush.xpose.msra.mxu0 %v899
        %2624 = vmatpush.xpose.msra.mxu0 %v891
        %2625 = vmatpush.xpose.msra.mxu0 %v883
        %2626 = vmatpush.xpose.msra.mxu0 %v875
        %2627 = vmatpush.xpose.msra.mxu0 %v867
        %2628 = vmatpush.xpose.msra.mxu0 %v859
        %2629 = vmatpush.xpose.msra.mxu0 %v851
        %2630 = vmatpush.xpose.msra.mxu0 %v843
        %2631 = vmatpush.xpose.msra.mxu0 %v835
        %2632 = vmatpush.xpose.msra.mxu0 %v827
        %2633 = vmatpush.xpose.msra.mxu0 %v819
        %2634 = vmatpush.xpose.msra.mxu0 %v811
        %2635 = vmatpush.xpose.msra.mxu0 %v803
        %2636 = vmatpush.xpose.msra.mxu0 %v795
        %2637 = vmatmul.f32.gmra.mxu0 %v283
        %v2638 = vpop.f32.mrf.mxu0
        %v2639 = vadd.f32 %v2574, %v2638
        %2640 = vmatmul.f32.gmra.mxu0 %v291
        %v2641 = vpop.f32.mrf.mxu0
        %v2642 = vadd.f32 %v2577, %v2641
        %2643 = vmatmul.f32.gmra.mxu0 %v299
        %v2644 = vpop.f32.mrf.mxu0
        %v2645 = vadd.f32 %v2580, %v2644
        %2646 = vmatmul.f32.gmra.mxu0 %v307
        %v2647 = vpop.f32.mrf.mxu0
        %v2648 = vadd.f32 %v2583, %v2647
        %2649 = vmatmul.f32.gmra.mxu0 %v315
        %v2650 = vpop.f32.mrf.mxu0
        %v2651 = vadd.f32 %v2586, %v2650
        %2652 = vmatmul.f32.gmra.mxu0 %v323
        %v2653 = vpop.f32.mrf.mxu0
        %v2654 = vadd.f32 %v2589, %v2653
        %2655 = vmatmul.f32.gmra.mxu0 %v331
        %v2656 = vpop.f32.mrf.mxu0
        %v2657 = vadd.f32 %v2592, %v2656
        %2658 = vmatmul.f32.gmra.mxu0 %v339
        %v2659 = vpop.f32.mrf.mxu0
        %v2660 = vadd.f32 %v2595, %v2659
        %2661 = vmatmul.f32.gmra.mxu0 %v347
        %v2662 = vpop.f32.mrf.mxu0
        %v2663 = vadd.f32 %v2598, %v2662
        %2664 = vmatmul.f32.gmra.mxu0 %v355
        %v2665 = vpop.f32.mrf.mxu0
        %v2666 = vadd.f32 %v2601, %v2665
        %2667 = vmatmul.f32.gmra.mxu0 %v363
        %v2668 = vpop.f32.mrf.mxu0
        %v2669 = vadd.f32 %v2604, %v2668
        %2670 = vmatmul.f32.gmra.mxu0 %v371
        %v2671 = vpop.f32.mrf.mxu0
        %v2672 = vadd.f32 %v2607, %v2671
        %2673 = vmatmul.f32.gmra.mxu0 %v379
        %v2674 = vpop.f32.mrf.mxu0
        %v2675 = vadd.f32 %v2610, %v2674
        %2676 = vmatmul.f32.gmra.mxu0 %v387
        %v2677 = vpop.f32.mrf.mxu0
        %v2678 = vadd.f32 %v2613, %v2677
        %2679 = vmatmul.f32.gmra.mxu0 %v395
        %v2680 = vpop.f32.mrf.mxu0
        %v2681 = vadd.f32 %v2616, %v2680
        %2682 = vmatmul.f32.gmra.mxu0 %v403
        %v2683 = vpop.f32.mrf.mxu0
        %v2684 = vadd.f32 %v2619, %v2683
        %2685 = vdwg.mxu0
        %2686 = vmatpush.xpose.msra.mxu0 %v916
        %2687 = vmatpush.xpose.msra.mxu0 %v908
        %2688 = vmatpush.xpose.msra.mxu0 %v900
        %2689 = vmatpush.xpose.msra.mxu0 %v892
        %2690 = vmatpush.xpose.msra.mxu0 %v884
        %2691 = vmatpush.xpose.msra.mxu0 %v876
        %2692 = vmatpush.xpose.msra.mxu0 %v868
        %2693 = vmatpush.xpose.msra.mxu0 %v860
        %2694 = vmatpush.xpose.msra.mxu0 %v852
        %2695 = vmatpush.xpose.msra.mxu0 %v844
        %2696 = vmatpush.xpose.msra.mxu0 %v836
        %2697 = vmatpush.xpose.msra.mxu0 %v828
        %2698 = vmatpush.xpose.msra.mxu0 %v820
        %2699 = vmatpush.xpose.msra.mxu0 %v812
        %2700 = vmatpush.xpose.msra.mxu0 %v804
        %2701 = vmatpush.xpose.msra.mxu0 %v796
        %2702 = vmatmul.f32.gmra.mxu0 %v284
        %v2703 = vpop.f32.mrf.mxu0
        %v2704 = vadd.f32 %v2639, %v2703
        %2705 = vmatmul.f32.gmra.mxu0 %v292
        %v2706 = vpop.f32.mrf.mxu0
        %v2707 = vadd.f32 %v2642, %v2706
        %2708 = vmatmul.f32.gmra.mxu0 %v300
        %v2709 = vpop.f32.mrf.mxu0
        %v2710 = vadd.f32 %v2645, %v2709
        %2711 = vmatmul.f32.gmra.mxu0 %v308
        %v2712 = vpop.f32.mrf.mxu0
        %v2713 = vadd.f32 %v2648, %v2712
        %2714 = vmatmul.f32.gmra.mxu0 %v316
        %v2715 = vpop.f32.mrf.mxu0
        %v2716 = vadd.f32 %v2651, %v2715
        %2717 = vmatmul.f32.gmra.mxu0 %v324
        %v2718 = vpop.f32.mrf.mxu0
        %v2719 = vadd.f32 %v2654, %v2718
        %2720 = vmatmul.f32.gmra.mxu0 %v332
        %v2721 = vpop.f32.mrf.mxu0
        %v2722 = vadd.f32 %v2657, %v2721
        %2723 = vmatmul.f32.gmra.mxu0 %v340
        %v2724 = vpop.f32.mrf.mxu0
        %v2725 = vadd.f32 %v2660, %v2724
        %2726 = vmatmul.f32.gmra.mxu0 %v348
        %v2727 = vpop.f32.mrf.mxu0
        %v2728 = vadd.f32 %v2663, %v2727
        %2729 = vmatmul.f32.gmra.mxu0 %v356
        %v2730 = vpop.f32.mrf.mxu0
        %v2731 = vadd.f32 %v2666, %v2730
        %2732 = vmatmul.f32.gmra.mxu0 %v364
        %v2733 = vpop.f32.mrf.mxu0
        %v2734 = vadd.f32 %v2669, %v2733
        %2735 = vmatmul.f32.gmra.mxu0 %v372
        %v2736 = vpop.f32.mrf.mxu0
        %v2737 = vadd.f32 %v2672, %v2736
        %2738 = vmatmul.f32.gmra.mxu0 %v380
        %v2739 = vpop.f32.mrf.mxu0
        %v2740 = vadd.f32 %v2675, %v2739
        %2741 = vmatmul.f32.gmra.mxu0 %v388
        %v2742 = vpop.f32.mrf.mxu0
        %v2743 = vadd.f32 %v2678, %v2742
        %2744 = vmatmul.f32.gmra.mxu0 %v396
        %v2745 = vpop.f32.mrf.mxu0
        %v2746 = vadd.f32 %v2681, %v2745
        %2747 = vmatmul.f32.gmra.mxu0 %v404
        %v2748 = vpop.f32.mrf.mxu0
        %v2749 = vadd.f32 %v2684, %v2748
        %2750 = vdwg.mxu0
        %2751 = vmatpush.xpose.msra.mxu0 %v917
        %2752 = vmatpush.xpose.msra.mxu0 %v909
        %2753 = vmatpush.xpose.msra.mxu0 %v901
        %2754 = vmatpush.xpose.msra.mxu0 %v893
        %2755 = vmatpush.xpose.msra.mxu0 %v885
        %2756 = vmatpush.xpose.msra.mxu0 %v877
        %2757 = vmatpush.xpose.msra.mxu0 %v869
        %2758 = vmatpush.xpose.msra.mxu0 %v861
        %2759 = vmatpush.xpose.msra.mxu0 %v853
        %2760 = vmatpush.xpose.msra.mxu0 %v845
        %2761 = vmatpush.xpose.msra.mxu0 %v837
        %2762 = vmatpush.xpose.msra.mxu0 %v829
        %2763 = vmatpush.xpose.msra.mxu0 %v821
        %2764 = vmatpush.xpose.msra.mxu0 %v813
        %2765 = vmatpush.xpose.msra.mxu0 %v805
        %2766 = vmatpush.xpose.msra.mxu0 %v797
        %2767 = vmatmul.f32.gmra.mxu0 %v285
        %v2768 = vpop.f32.mrf.mxu0
        %v2769 = vadd.f32 %v2704, %v2768
        %2770 = vmatmul.f32.gmra.mxu0 %v293
        %v2771 = vpop.f32.mrf.mxu0
        %v2772 = vadd.f32 %v2707, %v2771
        %2773 = vmatmul.f32.gmra.mxu0 %v301
        %v2774 = vpop.f32.mrf.mxu0
        %v2775 = vadd.f32 %v2710, %v2774
        %2776 = vmatmul.f32.gmra.mxu0 %v309
        %v2777 = vpop.f32.mrf.mxu0
        %v2778 = vadd.f32 %v2713, %v2777
        %2779 = vmatmul.f32.gmra.mxu0 %v317
        %v2780 = vpop.f32.mrf.mxu0
        %v2781 = vadd.f32 %v2716, %v2780
        %2782 = vmatmul.f32.gmra.mxu0 %v325
        %v2783 = vpop.f32.mrf.mxu0
        %v2784 = vadd.f32 %v2719, %v2783
        %2785 = vmatmul.f32.gmra.mxu0 %v333
        %v2786 = vpop.f32.mrf.mxu0
        %v2787 = vadd.f32 %v2722, %v2786
        %2788 = vmatmul.f32.gmra.mxu0 %v341
        %v2789 = vpop.f32.mrf.mxu0
        %v2790 = vadd.f32 %v2725, %v2789
        %2791 = vmatmul.f32.gmra.mxu0 %v349
        %v2792 = vpop.f32.mrf.mxu0
        %v2793 = vadd.f32 %v2728, %v2792
        %2794 = vmatmul.f32.gmra.mxu0 %v357
        %v2795 = vpop.f32.mrf.mxu0
        %v2796 = vadd.f32 %v2731, %v2795
        %2797 = vmatmul.f32.gmra.mxu0 %v365
        %v2798 = vpop.f32.mrf.mxu0
        %v2799 = vadd.f32 %v2734, %v2798
        %2800 = vmatmul.f32.gmra.mxu0 %v373
        %v2801 = vpop.f32.mrf.mxu0
        %v2802 = vadd.f32 %v2737, %v2801
        %2803 = vmatmul.f32.gmra.mxu0 %v381
        %v2804 = vpop.f32.mrf.mxu0
        %v2805 = vadd.f32 %v2740, %v2804
        %2806 = vmatmul.f32.gmra.mxu0 %v389
        %v2807 = vpop.f32.mrf.mxu0
        %v2808 = vadd.f32 %v2743, %v2807
        %2809 = vmatmul.f32.gmra.mxu0 %v397
        %v2810 = vpop.f32.mrf.mxu0
        %v2811 = vadd.f32 %v2746, %v2810
        %2812 = vmatmul.f32.gmra.mxu0 %v405
        %v2813 = vpop.f32.mrf.mxu0
        %v2814 = vadd.f32 %v2749, %v2813
        %2815 = vdwg.mxu0
        %2816 = vmatpush.xpose.msra.mxu0 %v918
        %2817 = vmatpush.xpose.msra.mxu0 %v910
        %2818 = vmatpush.xpose.msra.mxu0 %v902
        %2819 = vmatpush.xpose.msra.mxu0 %v894
        %2820 = vmatpush.xpose.msra.mxu0 %v886
        %2821 = vmatpush.xpose.msra.mxu0 %v878
        %2822 = vmatpush.xpose.msra.mxu0 %v870
        %2823 = vmatpush.xpose.msra.mxu0 %v862
        %2824 = vmatpush.xpose.msra.mxu0 %v854
        %2825 = vmatpush.xpose.msra.mxu0 %v846
        %2826 = vmatpush.xpose.msra.mxu0 %v838
        %2827 = vmatpush.xpose.msra.mxu0 %v830
        %2828 = vmatpush.xpose.msra.mxu0 %v822
        %2829 = vmatpush.xpose.msra.mxu0 %v814
        %2830 = vmatpush.xpose.msra.mxu0 %v806
        %2831 = vmatpush.xpose.msra.mxu0 %v798
        %2832 = vmatmul.f32.gmra.mxu0 %v286
        %v2833 = vpop.f32.mrf.mxu0
        %v2834 = vadd.f32 %v2769, %v2833
        %2835 = vmatmul.f32.gmra.mxu0 %v294
        %v2836 = vpop.f32.mrf.mxu0
        %v2837 = vadd.f32 %v2772, %v2836
        %2838 = vmatmul.f32.gmra.mxu0 %v302
        %v2839 = vpop.f32.mrf.mxu0
        %v2840 = vadd.f32 %v2775, %v2839
        %2841 = vmatmul.f32.gmra.mxu0 %v310
        %v2842 = vpop.f32.mrf.mxu0
        %v2843 = vadd.f32 %v2778, %v2842
        %2844 = vmatmul.f32.gmra.mxu0 %v318
        %v2845 = vpop.f32.mrf.mxu0
        %v2846 = vadd.f32 %v2781, %v2845
        %2847 = vmatmul.f32.gmra.mxu0 %v326
        %v2848 = vpop.f32.mrf.mxu0
        %v2849 = vadd.f32 %v2784, %v2848
        %2850 = vmatmul.f32.gmra.mxu0 %v334
        %v2851 = vpop.f32.mrf.mxu0
        %v2852 = vadd.f32 %v2787, %v2851
        %2853 = vmatmul.f32.gmra.mxu0 %v342
        %v2854 = vpop.f32.mrf.mxu0
        %v2855 = vadd.f32 %v2790, %v2854
        %2856 = vmatmul.f32.gmra.mxu0 %v350
        %v2857 = vpop.f32.mrf.mxu0
        %v2858 = vadd.f32 %v2793, %v2857
        %2859 = vmatmul.f32.gmra.mxu0 %v358
        %v2860 = vpop.f32.mrf.mxu0
        %v2861 = vadd.f32 %v2796, %v2860
        %2862 = vmatmul.f32.gmra.mxu0 %v366
        %v2863 = vpop.f32.mrf.mxu0
        %v2864 = vadd.f32 %v2799, %v2863
        %2865 = vmatmul.f32.gmra.mxu0 %v374
        %v2866 = vpop.f32.mrf.mxu0
        %v2867 = vadd.f32 %v2802, %v2866
        %2868 = vmatmul.f32.gmra.mxu0 %v382
        %v2869 = vpop.f32.mrf.mxu0
        %v2870 = vadd.f32 %v2805, %v2869
        %2871 = vmatmul.f32.gmra.mxu0 %v390
        %v2872 = vpop.f32.mrf.mxu0
        %v2873 = vadd.f32 %v2808, %v2872
        %2874 = vmatmul.f32.gmra.mxu0 %v398
        %v2875 = vpop.f32.mrf.mxu0
        %v2876 = vadd.f32 %v2811, %v2875
        %2877 = vmatmul.f32.gmra.mxu0 %v406
        %v2878 = vpop.f32.mrf.mxu0
        %v2879 = vadd.f32 %v2814, %v2878
        %2880 = vdwg.mxu0
        %2881 = vmatpush.xpose.msra.mxu0 %v919
        %2882 = vmatpush.xpose.msra.mxu0 %v911
        %2883 = vmatpush.xpose.msra.mxu0 %v903
        %2884 = vmatpush.xpose.msra.mxu0 %v895
        %2885 = vmatpush.xpose.msra.mxu0 %v887
        %2886 = vmatpush.xpose.msra.mxu0 %v879
        %2887 = vmatpush.xpose.msra.mxu0 %v871
        %2888 = vmatpush.xpose.msra.mxu0 %v863
        %2889 = vmatpush.xpose.msra.mxu0 %v855
        %2890 = vmatpush.xpose.msra.mxu0 %v847
        %2891 = vmatpush.xpose.msra.mxu0 %v839
        %2892 = vmatpush.xpose.msra.mxu0 %v831
        %2893 = vmatpush.xpose.msra.mxu0 %v823
        %2894 = vmatpush.xpose.msra.mxu0 %v815
        %2895 = vmatpush.xpose.msra.mxu0 %v807
        %2896 = vmatpush.xpose.msra.mxu0 %v799
        %2897 = vmatmul.f32.gmra.mxu0 %v287
        %v2898 = vpop.f32.mrf.mxu0
        %v2899 = vadd.f32 %v2834, %v2898
        %2900 = vmatmul.f32.gmra.mxu0 %v295
        %v2901 = vpop.f32.mrf.mxu0
        %v2902 = vadd.f32 %v2837, %v2901
        %2903 = vmatmul.f32.gmra.mxu0 %v303
        %v2904 = vpop.f32.mrf.mxu0
        %v2905 = vadd.f32 %v2840, %v2904
        %2906 = vmatmul.f32.gmra.mxu0 %v311
        %v2907 = vpop.f32.mrf.mxu0
        %v2908 = vadd.f32 %v2843, %v2907
        %2909 = vmatmul.f32.gmra.mxu0 %v319
        %v2910 = vpop.f32.mrf.mxu0
        %v2911 = vadd.f32 %v2846, %v2910
        %2912 = vmatmul.f32.gmra.mxu0 %v327
        %v2913 = vpop.f32.mrf.mxu0
        %v2914 = vadd.f32 %v2849, %v2913
        %2915 = vmatmul.f32.gmra.mxu0 %v335
        %v2916 = vpop.f32.mrf.mxu0
        %v2917 = vadd.f32 %v2852, %v2916
        %2918 = vmatmul.f32.gmra.mxu0 %v343
        %v2919 = vpop.f32.mrf.mxu0
        %v2920 = vadd.f32 %v2855, %v2919
        %2921 = vmatmul.f32.gmra.mxu0 %v351
        %v2922 = vpop.f32.mrf.mxu0
        %v2923 = vadd.f32 %v2858, %v2922
        %2924 = vmatmul.f32.gmra.mxu0 %v359
        %v2925 = vpop.f32.mrf.mxu0
        %v2926 = vadd.f32 %v2861, %v2925
        %2927 = vmatmul.f32.gmra.mxu0 %v367
        %v2928 = vpop.f32.mrf.mxu0
        %v2929 = vadd.f32 %v2864, %v2928
        %2930 = vmatmul.f32.gmra.mxu0 %v375
        %v2931 = vpop.f32.mrf.mxu0
        %v2932 = vadd.f32 %v2867, %v2931
        %2933 = vmatmul.f32.gmra.mxu0 %v383
        %v2934 = vpop.f32.mrf.mxu0
        %v2935 = vadd.f32 %v2870, %v2934
        %2936 = vmatmul.f32.gmra.mxu0 %v391
        %v2937 = vpop.f32.mrf.mxu0
        %v2938 = vadd.f32 %v2873, %v2937
        %2939 = vmatmul.f32.gmra.mxu0 %v399
        %v2940 = vpop.f32.mrf.mxu0
        %v2941 = vadd.f32 %v2876, %v2940
        %2942 = vmatmul.f32.gmra.mxu0 %v407
        %v2943 = vpop.f32.mrf.mxu0
        %v2944 = vadd.f32 %v2879, %v2943
        %2945 = vdwg.mxu0
        %2946 = vmatpush.xpose.msra.mxu0 %v920
        %2947 = vmatpush.xpose.msra.mxu0 %v912
        %2948 = vmatpush.xpose.msra.mxu0 %v904
        %2949 = vmatpush.xpose.msra.mxu0 %v896
        %2950 = vmatpush.xpose.msra.mxu0 %v888
        %2951 = vmatpush.xpose.msra.mxu0 %v880
        %2952 = vmatpush.xpose.msra.mxu0 %v872
        %2953 = vmatpush.xpose.msra.mxu0 %v864
        %2954 = vmatpush.xpose.msra.mxu0 %v856
        %2955 = vmatpush.xpose.msra.mxu0 %v848
        %2956 = vmatpush.xpose.msra.mxu0 %v840
        %2957 = vmatpush.xpose.msra.mxu0 %v832
        %2958 = vmatpush.xpose.msra.mxu0 %v824
        %2959 = vmatpush.xpose.msra.mxu0 %v816
        %2960 = vmatpush.xpose.msra.mxu0 %v808
        %2961 = vmatpush.xpose.msra.mxu0 %v800
        %2962 = vmatmul.f32.gmra.mxu0 %v288
        %v2963 = vpop.f32.mrf.mxu0
        %v2964 = vadd.f32 %v2899, %v2963
        %2965 = vmatmul.f32.gmra.mxu0 %v296
        %v2966 = vpop.f32.mrf.mxu0
        %v2967 = vadd.f32 %v2902, %v2966
        %2968 = vmatmul.f32.gmra.mxu0 %v304
        %v2969 = vpop.f32.mrf.mxu0
        %v2970 = vadd.f32 %v2905, %v2969
        %2971 = vmatmul.f32.gmra.mxu0 %v312
        %v2972 = vpop.f32.mrf.mxu0
        %v2973 = vadd.f32 %v2908, %v2972
        %2974 = vmatmul.f32.gmra.mxu0 %v320
        %v2975 = vpop.f32.mrf.mxu0
        %v2976 = vadd.f32 %v2911, %v2975
        %2977 = vmatmul.f32.gmra.mxu0 %v328
        %v2978 = vpop.f32.mrf.mxu0
        %v2979 = vadd.f32 %v2914, %v2978
        %2980 = vmatmul.f32.gmra.mxu0 %v336
        %v2981 = vpop.f32.mrf.mxu0
        %v2982 = vadd.f32 %v2917, %v2981
        %2983 = vmatmul.f32.gmra.mxu0 %v344
        %v2984 = vpop.f32.mrf.mxu0
        %v2985 = vadd.f32 %v2920, %v2984
        %2986 = vmatmul.f32.gmra.mxu0 %v352
        %v2987 = vpop.f32.mrf.mxu0
        %v2988 = vadd.f32 %v2923, %v2987
        %2989 = vmatmul.f32.gmra.mxu0 %v360
        %v2990 = vpop.f32.mrf.mxu0
        %v2991 = vadd.f32 %v2926, %v2990
        %2992 = vmatmul.f32.gmra.mxu0 %v368
        %v2993 = vpop.f32.mrf.mxu0
        %v2994 = vadd.f32 %v2929, %v2993
        %2995 = vmatmul.f32.gmra.mxu0 %v376
        %v2996 = vpop.f32.mrf.mxu0
        %v2997 = vadd.f32 %v2932, %v2996
        %2998 = vmatmul.f32.gmra.mxu0 %v384
        %v2999 = vpop.f32.mrf.mxu0
        %v3000 = vadd.f32 %v2935, %v2999
        %3001 = vmatmul.f32.gmra.mxu0 %v392
        %v3002 = vpop.f32.mrf.mxu0
        %v3003 = vadd.f32 %v2938, %v3002
        %3004 = vmatmul.f32.gmra.mxu0 %v400
        %v3005 = vpop.f32.mrf.mxu0
        %v3006 = vadd.f32 %v2941, %v3005
        %3007 = vmatmul.f32.gmra.mxu0 %v408
        %v3008 = vpop.f32.mrf.mxu0
        %v3009 = vadd.f32 %v2944, %v3008
        %3010 = vdwg.mxu0
        %v3011 = vmax.f32 %v1404, 0.0
        %v3012 = vmax.f32 %v1924, 0.0
        %v3013 = vmax.f32 %v2444, 0.0
        %v3014 = vmax.f32 %v2964, 0.0
        %v3015 = vmax.f32 %v1407, 0.0
        %v3016 = vmax.f32 %v1927, 0.0
        %v3017 = vmax.f32 %v2447, 0.0
        %v3018 = vmax.f32 %v2967, 0.0
        %v3019 = vmax.f32 %v1410, 0.0
        %v3020 = vmax.f32 %v1930, 0.0
        %v3021 = vmax.f32 %v2450, 0.0
        %v3022 = vmax.f32 %v2970, 0.0
        %v3023 = vmax.f32 %v1413, 0.0
        %v3024 = vmax.f32 %v1933, 0.0
        %v3025 = vmax.f32 %v2453, 0.0
        %v3026 = vmax.f32 %v2973, 0.0
        %v3027 = vmax.f32 %v1416, 0.0
        %v3028 = vmax.f32 %v1936, 0.0
        %v3029 = vmax.f32 %v2456, 0.0
        %v3030 = vmax.f32 %v2976, 0.0
        %v3031 = vmax.f32 %v1419, 0.0
        %v3032 = vmax.f32 %v1939, 0.0
        %v3033 = vmax.f32 %v2459, 0.0
        %v3034 = vmax.f32 %v2979, 0.0
        %v3035 = vmax.f32 %v1422, 0.0
        %v3036 = vmax.f32 %v1942, 0.0
        %v3037 = vmax.f32 %v2462, 0.0
        %v3038 = vmax.f32 %v2982, 0.0
        %v3039 = vmax.f32 %v1425, 0.0
        %v3040 = vmax.f32 %v1945, 0.0
        %v3041 = vmax.f32 %v2465, 0.0
        %v3042 = vmax.f32 %v2985, 0.0
        %v3043 = vmax.f32 %v1428, 0.0
        %v3044 = vmax.f32 %v1948, 0.0
        %v3045 = vmax.f32 %v2468, 0.0
        %v3046 = vmax.f32 %v2988, 0.0
        %v3047 = vmax.f32 %v1431, 0.0
        %v3048 = vmax.f32 %v1951, 0.0
        %v3049 = vmax.f32 %v2471, 0.0
        %v3050 = vmax.f32 %v2991, 0.0
        %v3051 = vmax.f32 %v1434, 0.0
        %v3052 = vmax.f32 %v1954, 0.0
        %v3053 = vmax.f32 %v2474, 0.0
        %v3054 = vmax.f32 %v2994, 0.0
        %v3055 = vmax.f32 %v1437, 0.0
        %v3056 = vmax.f32 %v1957, 0.0
        %v3057 = vmax.f32 %v2477, 0.0
        %v3058 = vmax.f32 %v2997, 0.0
        %v3059 = vmax.f32 %v1440, 0.0
        %v3060 = vmax.f32 %v1960, 0.0
        %v3061 = vmax.f32 %v2480, 0.0
        %v3062 = vmax.f32 %v3000, 0.0
        %v3063 = vmax.f32 %v1443, 0.0
        %v3064 = vmax.f32 %v1963, 0.0
        %v3065 = vmax.f32 %v2483, 0.0
        %v3066 = vmax.f32 %v3003, 0.0
        %v3067 = vmax.f32 %v1446, 0.0
        %v3068 = vmax.f32 %v1966, 0.0
        %v3069 = vmax.f32 %v2486, 0.0
        %v3070 = vmax.f32 %v3006, 0.0
        %v3071 = vmax.f32 %v1449, 0.0
        %v3072 = vmax.f32 %v1969, 0.0
        %v3073 = vmax.f32 %v2489, 0.0
        %v3074 = vmax.f32 %v3009, 0.0
        %v3075 = vld [vmem:[%s3] sm:$0xff]
        %v3076 = vld [vmem:[%s3 + $0x8] sm:$0xff]
        %v3077 = vld [vmem:[%s3 + $0x10] sm:$0xff]
        %v3078 = vld [vmem:[%s3 + $0x18] sm:$0xff]
        %v3079 = vld [vmem:[%s3 + $0x20] sm:$0xff]
        %v3080 = vld [vmem:[%s3 + $0x28] sm:$0xff]
        %v3081 = vld [vmem:[%s3 + $0x30] sm:$0xff]
        %v3082 = vld [vmem:[%s3 + $0x38] sm:$0xff]
        %v3083 = vld [vmem:[%s3 + $0x40] sm:$0xff]
        %v3084 = vld [vmem:[%s3 + $0x48] sm:$0xff]
        %v3085 = vld [vmem:[%s3 + $0x50] sm:$0xff]
        %v3086 = vld [vmem:[%s3 + $0x58] sm:$0xff]
        %v3087 = vld [vmem:[%s3 + $0x60] sm:$0xff]
        %v3088 = vld [vmem:[%s3 + $0x68] sm:$0xff]
        %v3089 = vld [vmem:[%s3 + $0x70] sm:$0xff]
        %v3090 = vld [vmem:[%s3 + $0x78] sm:$0xff]
        %v3091 = vld [vmem:[%s3 + $0x80] sm:$0xff]
        %v3092 = vld [vmem:[%s3 + $0x88] sm:$0xff]
        %v3093 = vld [vmem:[%s3 + $0x90] sm:$0xff]
        %v3094 = vld [vmem:[%s3 + $0x98] sm:$0xff]
        %v3095 = vld [vmem:[%s3 + $0xa0] sm:$0xff]
        %v3096 = vld [vmem:[%s3 + $0xa8] sm:$0xff]
        %v3097 = vld [vmem:[%s3 + $0xb0] sm:$0xff]
        %v3098 = vld [vmem:[%s3 + $0xb8] sm:$0xff]
        %v3099 = vld [vmem:[%s3 + $0xc0] sm:$0xff]
        %v3100 = vld [vmem:[%s3 + $0xc8] sm:$0xff]
        %v3101 = vld [vmem:[%s3 + $0xd0] sm:$0xff]
        %v3102 = vld [vmem:[%s3 + $0xd8] sm:$0xff]
        %v3103 = vld [vmem:[%s3 + $0xe0] sm:$0xff]
        %v3104 = vld [vmem:[%s3 + $0xe8] sm:$0xff]
        %v3105 = vld [vmem:[%s3 + $0xf0] sm:$0xff]
        %v3106 = vld [vmem:[%s3 + $0xf8] sm:$0xff]
        %v3107 = vld [vmem:[%s3 + $0x100] sm:$0xff]
        %v3108 = vld [vmem:[%s3 + $0x108] sm:$0xff]
        %v3109 = vld [vmem:[%s3 + $0x110] sm:$0xff]
        %v3110 = vld [vmem:[%s3 + $0x118] sm:$0xff]
        %v3111 = vld [vmem:[%s3 + $0x120] sm:$0xff]
        %v3112 = vld [vmem:[%s3 + $0x128] sm:$0xff]
        %v3113 = vld [vmem:[%s3 + $0x130] sm:$0xff]
        %v3114 = vld [vmem:[%s3 + $0x138] sm:$0xff]
        %v3115 = vld [vmem:[%s3 + $0x140] sm:$0xff]
        %v3116 = vld [vmem:[%s3 + $0x148] sm:$0xff]
        %v3117 = vld [vmem:[%s3 + $0x150] sm:$0xff]
        %v3118 = vld [vmem:[%s3 + $0x158] sm:$0xff]
        %v3119 = vld [vmem:[%s3 + $0x160] sm:$0xff]
        %v3120 = vld [vmem:[%s3 + $0x168] sm:$0xff]
        %v3121 = vld [vmem:[%s3 + $0x170] sm:$0xff]
        %v3122 = vld [vmem:[%s3 + $0x178] sm:$0xff]
        %v3123 = vld [vmem:[%s3 + $0x180] sm:$0xff]
        %v3124 = vld [vmem:[%s3 + $0x188] sm:$0xff]
        %v3125 = vld [vmem:[%s3 + $0x190] sm:$0xff]
        %v3126 = vld [vmem:[%s3 + $0x198] sm:$0xff]
        %v3127 = vld [vmem:[%s3 + $0x1a0] sm:$0xff]
        %v3128 = vld [vmem:[%s3 + $0x1a8] sm:$0xff]
        %v3129 = vld [vmem:[%s3 + $0x1b0] sm:$0xff]
        %v3130 = vld [vmem:[%s3 + $0x1b8] sm:$0xff]
        %v3131 = vld [vmem:[%s3 + $0x1c0] sm:$0xff]
        %v3132 = vld [vmem:[%s3 + $0x1c8] sm:$0xff]
        %v3133 = vld [vmem:[%s3 + $0x1d0] sm:$0xff]
        %v3134 = vld [vmem:[%s3 + $0x1d8] sm:$0xff]
        %v3135 = vld [vmem:[%s3 + $0x1e0] sm:$0xff]
        %v3136 = vld [vmem:[%s3 + $0x1e8] sm:$0xff]
        %v3137 = vld [vmem:[%s3 + $0x1f0] sm:$0xff]
        %v3138 = vld [vmem:[%s3 + $0x1f8] sm:$0xff]
        %v3139 = vld [vmem:[%s4] sm:$0x1]
        %v3141 = vperm.slane %v3139, 0
        %3143 = vmatpush.xpose.msra.mxu0 %v3135
        %3144 = vmatpush.xpose.msra.mxu0 %v3131
        %3145 = vmatpush.xpose.msra.mxu0 %v3127
        %3146 = vmatpush.xpose.msra.mxu0 %v3123
        %3147 = vmatpush.xpose.msra.mxu0 %v3119
        %3148 = vmatpush.xpose.msra.mxu0 %v3115
        %3149 = vmatpush.xpose.msra.mxu0 %v3111
        %3150 = vmatpush.xpose.msra.mxu0 %v3107
        %3151 = vmatpush.xpose.msra.mxu0 %v3103
        %3152 = vmatpush.xpose.msra.mxu0 %v3099
        %3153 = vmatpush.xpose.msra.mxu0 %v3095
        %3154 = vmatpush.xpose.msra.mxu0 %v3091
        %3155 = vmatpush.xpose.msra.mxu0 %v3087
        %3156 = vmatpush.xpose.msra.mxu0 %v3083
        %3157 = vmatpush.xpose.msra.mxu0 %v3079
        %3158 = vmatpush.xpose.msra.mxu0 %v3075
        %3159 = vmatmul.f32.gmra.mxu0 %v3011
        %v3160 = vpop.f32.mrf.mxu0
        %v3161 = vadd.f32 %v3141, %v3160
        %3162 = vmatmul.f32.gmra.mxu0 %v3015
        %v3163 = vpop.f32.mrf.mxu0
        %v3164 = vadd.f32 %v3141, %v3163
        %3165 = vmatmul.f32.gmra.mxu0 %v3019
        %v3166 = vpop.f32.mrf.mxu0
        %v3167 = vadd.f32 %v3141, %v3166
        %3168 = vmatmul.f32.gmra.mxu0 %v3023
        %v3169 = vpop.f32.mrf.mxu0
        %v3170 = vadd.f32 %v3141, %v3169
        %3171 = vmatmul.f32.gmra.mxu0 %v3027
        %v3172 = vpop.f32.mrf.mxu0
        %v3173 = vadd.f32 %v3141, %v3172
        %3174 = vmatmul.f32.gmra.mxu0 %v3031
        %v3175 = vpop.f32.mrf.mxu0
        %v3176 = vadd.f32 %v3141, %v3175
        %3177 = vmatmul.f32.gmra.mxu0 %v3035
        %v3178 = vpop.f32.mrf.mxu0
        %v3179 = vadd.f32 %v3141, %v3178
        %3180 = vmatmul.f32.gmra.mxu0 %v3039
        %v3181 = vpop.f32.mrf.mxu0
        %v3182 = vadd.f32 %v3141, %v3181
        %3183 = vmatmul.f32.gmra.mxu0 %v3043
        %v3184 = vpop.f32.mrf.mxu0
        %v3185 = vadd.f32 %v3141, %v3184
        %3186 = vmatmul.f32.gmra.mxu0 %v3047
        %v3187 = vpop.f32.mrf.mxu0
        %v3188 = vadd.f32 %v3141, %v3187
        %3189 = vmatmul.f32.gmra.mxu0 %v3051
        %v3190 = vpop.f32.mrf.mxu0
        %v3191 = vadd.f32 %v3141, %v3190
        %3192 = vmatmul.f32.gmra.mxu0 %v3055
        %v3193 = vpop.f32.mrf.mxu0
        %v3194 = vadd.f32 %v3141, %v3193
        %3195 = vmatmul.f32.gmra.mxu0 %v3059
        %v3196 = vpop.f32.mrf.mxu0
        %v3197 = vadd.f32 %v3141, %v3196
        %3198 = vmatmul.f32.gmra.mxu0 %v3063
        %v3199 = vpop.f32.mrf.mxu0
        %v3200 = vadd.f32 %v3141, %v3199
        %3201 = vmatmul.f32.gmra.mxu0 %v3067
        %v3202 = vpop.f32.mrf.mxu0
        %v3203 = vadd.f32 %v3141, %v3202
        %3204 = vmatmul.f32.gmra.mxu0 %v3071
        %v3205 = vpop.f32.mrf.mxu0
        %v3206 = vadd.f32 %v3141, %v3205
        %3207 = vdwg.mxu0
        %3208 = vmatpush.xpose.msra.mxu0 %v3136
        %3209 = vmatpush.xpose.msra.mxu0 %v3132
        %3210 = vmatpush.xpose.msra.mxu0 %v3128
        %3211 = vmatpush.xpose.msra.mxu0 %v3124
        %3212 = vmatpush.xpose.msra.mxu0 %v3120
        %3213 = vmatpush.xpose.msra.mxu0 %v3116
        %3214 = vmatpush.xpose.msra.mxu0 %v3112
        %3215 = vmatpush.xpose.msra.mxu0 %v3108
        %3216 = vmatpush.xpose.msra.mxu0 %v3104
        %3217 = vmatpush.xpose.msra.mxu0 %v3100
        %3218 = vmatpush.xpose.msra.mxu0 %v3096
        %3219 = vmatpush.xpose.msra.mxu0 %v3092
        %3220 = vmatpush.xpose.msra.mxu0 %v3088
        %3221 = vmatpush.xpose.msra.mxu0 %v3084
        %3222 = vmatpush.xpose.msra.mxu0 %v3080
        %3223 = vmatpush.xpose.msra.mxu0 %v3076
        %3224 = vmatmul.f32.gmra.mxu0 %v3012
        %v3225 = vpop.f32.mrf.mxu0
        %v3226 = vadd.f32 %v3161, %v3225
        %3227 = vmatmul.f32.gmra.mxu0 %v3016
        %v3228 = vpop.f32.mrf.mxu0
        %v3229 = vadd.f32 %v3164, %v3228
        %3230 = vmatmul.f32.gmra.mxu0 %v3020
        %v3231 = vpop.f32.mrf.mxu0
        %v3232 = vadd.f32 %v3167, %v3231
        %3233 = vmatmul.f32.gmra.mxu0 %v3024
        %v3234 = vpop.f32.mrf.mxu0
        %v3235 = vadd.f32 %v3170, %v3234
        %3236 = vmatmul.f32.gmra.mxu0 %v3028
        %v3237 = vpop.f32.mrf.mxu0
        %v3238 = vadd.f32 %v3173, %v3237
        %3239 = vmatmul.f32.gmra.mxu0 %v3032
        %v3240 = vpop.f32.mrf.mxu0
        %v3241 = vadd.f32 %v3176, %v3240
        %3242 = vmatmul.f32.gmra.mxu0 %v3036
        %v3243 = vpop.f32.mrf.mxu0
        %v3244 = vadd.f32 %v3179, %v3243
        %3245 = vmatmul.f32.gmra.mxu0 %v3040
        %v3246 = vpop.f32.mrf.mxu0
        %v3247 = vadd.f32 %v3182, %v3246
        %3248 = vmatmul.f32.gmra.mxu0 %v3044
        %v3249 = vpop.f32.mrf.mxu0
        %v3250 = vadd.f32 %v3185, %v3249
        %3251 = vmatmul.f32.gmra.mxu0 %v3048
        %v3252 = vpop.f32.mrf.mxu0
        %v3253 = vadd.f32 %v3188, %v3252
        %3254 = vmatmul.f32.gmra.mxu0 %v3052
        %v3255 = vpop.f32.mrf.mxu0
        %v3256 = vadd.f32 %v3191, %v3255
        %3257 = vmatmul.f32.gmra.mxu0 %v3056
        %v3258 = vpop.f32.mrf.mxu0
        %v3259 = vadd.f32 %v3194, %v3258
        %3260 = vmatmul.f32.gmra.mxu0 %v3060
        %v3261 = vpop.f32.mrf.mxu0
        %v3262 = vadd.f32 %v3197, %v3261
        %3263 = vmatmul.f32.gmra.mxu0 %v3064
        %v3264 = vpop.f32.mrf.mxu0
        %v3265 = vadd.f32 %v3200, %v3264
        %3266 = vmatmul.f32.gmra.mxu0 %v3068
        %v3267 = vpop.f32.mrf.mxu0
        %v3268 = vadd.f32 %v3203, %v3267
        %3269 = vmatmul.f32.gmra.mxu0 %v3072
        %v3270 = vpop.f32.mrf.mxu0
        %v3271 = vadd.f32 %v3206, %v3270
        %3272 = vdwg.mxu0
        %3273 = vmatpush.xpose.msra.mxu0 %v3137
        %3274 = vmatpush.xpose.msra.mxu0 %v3133
        %3275 = vmatpush.xpose.msra.mxu0 %v3129
        %3276 = vmatpush.xpose.msra.mxu0 %v3125
        %3277 = vmatpush.xpose.msra.mxu0 %v3121
        %3278 = vmatpush.xpose.msra.mxu0 %v3117
        %3279 = vmatpush.xpose.msra.mxu0 %v3113
        %3280 = vmatpush.xpose.msra.mxu0 %v3109
        %3281 = vmatpush.xpose.msra.mxu0 %v3105
        %3282 = vmatpush.xpose.msra.mxu0 %v3101
        %3283 = vmatpush.xpose.msra.mxu0 %v3097
        %3284 = vmatpush.xpose.msra.mxu0 %v3093
        %3285 = vmatpush.xpose.msra.mxu0 %v3089
        %3286 = vmatpush.xpose.msra.mxu0 %v3085
        %3287 = vmatpush.xpose.msra.mxu0 %v3081
        %3288 = vmatpush.xpose.msra.mxu0 %v3077
        %3289 = vmatmul.f32.gmra.mxu0 %v3013
        %v3290 = vpop.f32.mrf.mxu0
        %v3291 = vadd.f32 %v3226, %v3290
        %3292 = vmatmul.f32.gmra.mxu0 %v3017
        %v3293 = vpop.f32.mrf.mxu0
        %v3294 = vadd.f32 %v3229, %v3293
        %3295 = vmatmul.f32.gmra.mxu0 %v3021
        %v3296 = vpop.f32.mrf.mxu0
        %v3297 = vadd.f32 %v3232, %v3296
        %3298 = vmatmul.f32.gmra.mxu0 %v3025
        %v3299 = vpop.f32.mrf.mxu0
        %v3300 = vadd.f32 %v3235, %v3299
        %3301 = vmatmul.f32.gmra.mxu0 %v3029
        %v3302 = vpop.f32.mrf.mxu0
        %v3303 = vadd.f32 %v3238, %v3302
        %3304 = vmatmul.f32.gmra.mxu0 %v3033
        %v3305 = vpop.f32.mrf.mxu0
        %v3306 = vadd.f32 %v3241, %v3305
        %3307 = vmatmul.f32.gmra.mxu0 %v3037
        %v3308 = vpop.f32.mrf.mxu0
        %v3309 = vadd.f32 %v3244, %v3308
        %3310 = vmatmul.f32.gmra.mxu0 %v3041
        %v3311 = vpop.f32.mrf.mxu0
        %v3312 = vadd.f32 %v3247, %v3311
        %3313 = vmatmul.f32.gmra.mxu0 %v3045
        %v3314 = vpop.f32.mrf.mxu0
        %v3315 = vadd.f32 %v3250, %v3314
        %3316 = vmatmul.f32.gmra.mxu0 %v3049
        %v3317 = vpop.f32.mrf.mxu0
        %v3318 = vadd.f32 %v3253, %v3317
        %3319 = vmatmul.f32.gmra.mxu0 %v3053
        %v3320 = vpop.f32.mrf.mxu0
        %v3321 = vadd.f32 %v3256, %v3320
        %3322 = vmatmul.f32.gmra.mxu0 %v3057
        %v3323 = vpop.f32.mrf.mxu0
        %v3324 = vadd.f32 %v3259, %v3323
        %3325 = vmatmul.f32.gmra.mxu0 %v3061
        %v3326 = vpop.f32.mrf.mxu0
        %v3327 = vadd.f32 %v3262, %v3326
        %3328 = vmatmul.f32.gmra.mxu0 %v3065
        %v3329 = vpop.f32.mrf.mxu0
        %v3330 = vadd.f32 %v3265, %v3329
        %3331 = vmatmul.f32.gmra.mxu0 %v3069
        %v3332 = vpop.f32.mrf.mxu0
        %v3333 = vadd.f32 %v3268, %v3332
        %3334 = vmatmul.f32.gmra.mxu0 %v3073
        %v3335 = vpop.f32.mrf.mxu0
        %v3336 = vadd.f32 %v3271, %v3335
        %3337 = vdwg.mxu0
        %3338 = vmatpush.xpose.msra.mxu0 %v3138
        %3339 = vmatpush.xpose.msra.mxu0 %v3134
        %3340 = vmatpush.xpose.msra.mxu0 %v3130
        %3341 = vmatpush.xpose.msra.mxu0 %v3126
        %3342 = vmatpush.xpose.msra.mxu0 %v3122
        %3343 = vmatpush.xpose.msra.mxu0 %v3118
        %3344 = vmatpush.xpose.msra.mxu0 %v3114
        %3345 = vmatpush.xpose.msra.mxu0 %v3110
        %3346 = vmatpush.xpose.msra.mxu0 %v3106
        %3347 = vmatpush.xpose.msra.mxu0 %v3102
        %3348 = vmatpush.xpose.msra.mxu0 %v3098
        %3349 = vmatpush.xpose.msra.mxu0 %v3094
        %3350 = vmatpush.xpose.msra.mxu0 %v3090
        %3351 = vmatpush.xpose.msra.mxu0 %v3086
        %3352 = vmatpush.xpose.msra.mxu0 %v3082
        %3353 = vmatpush.xpose.msra.mxu0 %v3078
        %3354 = vmatmul.f32.gmra.mxu0 %v3014
        %v3355 = vpop.f32.mrf.mxu0
        %v3356 = vadd.f32 %v3291, %v3355
        %3357 = vmatmul.f32.gmra.mxu0 %v3018
        %v3358 = vpop.f32.mrf.mxu0
        %v3359 = vadd.f32 %v3294, %v3358
        %3360 = vmatmul.f32.gmra.mxu0 %v3022
        %v3361 = vpop.f32.mrf.mxu0
        %v3362 = vadd.f32 %v3297, %v3361
        %3363 = vmatmul.f32.gmra.mxu0 %v3026
        %v3364 = vpop.f32.mrf.mxu0
        %v3365 = vadd.f32 %v3300, %v3364
        %3366 = vmatmul.f32.gmra.mxu0 %v3030
        %v3367 = vpop.f32.mrf.mxu0
        %v3368 = vadd.f32 %v3303, %v3367
        %3369 = vmatmul.f32.gmra.mxu0 %v3034
        %v3370 = vpop.f32.mrf.mxu0
        %v3371 = vadd.f32 %v3306, %v3370
        %3372 = vmatmul.f32.gmra.mxu0 %v3038
        %v3373 = vpop.f32.mrf.mxu0
        %v3374 = vadd.f32 %v3309, %v3373
        %3375 = vmatmul.f32.gmra.mxu0 %v3042
        %v3376 = vpop.f32.mrf.mxu0
        %v3377 = vadd.f32 %v3312, %v3376
        %3378 = vmatmul.f32.gmra.mxu0 %v3046
        %v3379 = vpop.f32.mrf.mxu0
        %v3380 = vadd.f32 %v3315, %v3379
        %3381 = vmatmul.f32.gmra.mxu0 %v3050
        %v3382 = vpop.f32.mrf.mxu0
        %v3383 = vadd.f32 %v3318, %v3382
        %3384 = vmatmul.f32.gmra.mxu0 %v3054
        %v3385 = vpop.f32.mrf.mxu0
        %v3386 = vadd.f32 %v3321, %v3385
        %3387 = vmatmul.f32.gmra.mxu0 %v3058
        %v3388 = vpop.f32.mrf.mxu0
        %v3389 = vadd.f32 %v3324, %v3388
        %3390 = vmatmul.f32.gmra.mxu0 %v3062
        %v3391 = vpop.f32.mrf.mxu0
        %v3392 = vadd.f32 %v3327, %v3391
        %3393 = vmatmul.f32.gmra.mxu0 %v3066
        %v3394 = vpop.f32.mrf.mxu0
        %v3395 = vadd.f32 %v3330, %v3394
        %3396 = vmatmul.f32.gmra.mxu0 %v3070
        %v3397 = vpop.f32.mrf.mxu0
        %v3398 = vadd.f32 %v3333, %v3397
        %3399 = vmatmul.f32.gmra.mxu0 %v3074
        %v3400 = vpop.f32.mrf.mxu0
        %v3401 = vadd.f32 %v3336, %v3400
        %3402 = vdwg.mxu0
        %3403 = vst [vmem:[%s279] sm:$0xff] %v3356
        %3404 = vst [vmem:[%s279 + $0x8] sm:$0xff] %v3359
        %3405 = vst [vmem:[%s279 + $0x10] sm:$0xff] %v3362
        %3406 = vst [vmem:[%s279 + $0x18] sm:$0xff] %v3365
        %3407 = vst [vmem:[%s279 + $0x20] sm:$0xff] %v3368
        %3408 = vst [vmem:[%s279 + $0x28] sm:$0xff] %v3371
        %3409 = vst [vmem:[%s279 + $0x30] sm:$0xff] %v3374
        %3410 = vst [vmem:[%s279 + $0x38] sm:$0xff] %v3377
        %3411 = vst [vmem:[%s279 + $0x40] sm:$0xff] %v3380
        %3412 = vst [vmem:[%s279 + $0x48] sm:$0xff] %v3383
        %3413 = vst [vmem:[%s279 + $0x50] sm:$0xff] %v3386
        %3414 = vst [vmem:[%s279 + $0x58] sm:$0xff] %v3389
        %3415 = vst [vmem:[%s279 + $0x60] sm:$0xff] %v3392
        %3416 = vst [vmem:[%s279 + $0x68] sm:$0xff] %v3395
        %3417 = vst [vmem:[%s279 + $0x70] sm:$0xff] %v3398
        %3418 = vst [vmem:[%s279 + $0x78] sm:$0xff] %v3401
        %s3419 = smul.u32 16, %s20
        %p3420 = scmp.lt.s32.totalorder %s3419, 31
        %s3421 = scalar_select %p3420, %s3419, 31
        %s3422 = smul.addr %s3421, 8
        %s3423 = scalar_lea.vmem %s5, %s3422
        // Predicated region
        $region53: #{eva_classifier_forward.1} parent=39 // pred_check
          %p3424 = pneg %p148
        $region54: #{eva_classifier_forward.1} parent=39 // pred_check_branch
          %3426 = sbr.rel (%p3424) target = $region56
        $region55: #{eva_classifier_forward.1} parent=39 // pred_region
          %s3427 = smul.u32 16, %s20
        $region56: #{eva_classifier_forward.1} parent=39 // pred_fallthru
          _
      $region40: #{eva_classifier_forward.1} parent=5 // pred_fallthru
        _
      %p3428 = scmp.le.s32.totalorder 2, %s15
      // Predicated region
      $region57: #{eva_classifier_forward.1} parent=5 // pred_check
        %p3429 = pneg %p3428
      $region58: #{eva_classifier_forward.1} parent=5 // pred_check_branch
        %3431 = sbr.rel (%p3429) target = $region60
      $region59: #{eva_classifier_forward.1} parent=5 // pred_region
        %s3432 = ssub.s32 %s15, 2
        // Predicated region
        $region61: #{eva_classifier_forward.1} parent=59 // pred_check
          %p3433 = pneg %p154
        $region62: #{eva_classifier_forward.1} parent=59 // pred_check_branch
          %3435 = sbr.rel (%p3433) target = $region64
        $region63: #{eva_classifier_forward.1} parent=59 // pred_region
          %s3436 = smul.u32 16, %s21
          %p3437 = scmp.lt.s32.totalorder %s3436, 31
          %s3438 = scalar_select %p3437, %s3436, 31
          %s3439 = smul.addr %s3438, 8
          %s3440 = scalar_lea.vmem %s5, %s3439
        $region64: #{eva_classifier_forward.1} parent=59 // pred_fallthru
          _
      $region60: #{eva_classifier_forward.1} parent=5 // pred_fallthru
        _
    $region6: #{eva_classifier_forward.1} parent=1 // loop_footer
      %s19 = sadd.s32 1, %s15
    $region7: #{eva_classifier_forward.1} parent=1 // loop_footer_branch
      %14 = sbr.rel target = $region3
    $region8: #{eva_classifier_forward.1} parent=1 // loop_exit
      _
    %3441 = vsyncpa [#allocation3], 1
    %s3442 = scalar_lea.sflag [#allocation3], 1
    %3443 = vsyncpa %s3442, 1
    %3444 = vsyncpa [#allocation5], 1

</llo_original>
